<compile_context>
chip_gen: v6e
topology: v6e:2x2x1
jax: 0.10.0
libtpu: 0.0.40
codegen_flags: <defaults>
</compile_context>

<pallas_src>
import functools

import jax
import jax.numpy as jnp
from jax import lax
from jax.experimental import pallas as pl
from jax.experimental.pallas import tpu as pltpu

_LANES = 128


def _mse_kernel(bpc, n_rows, n_full_blocks,
                pred_ref, true_ref, out_ref, acc_ref):
    c = pl.program_id(0)            # "parallel" axis: one per TensorCore on v7x
    i = pl.program_id(1)            # "arbitrary" reduction axis over row tiles
    last_i = pl.num_programs(1) - 1
    block = c * bpc + i             # logical (unclamped) row-tile index

    @pl.when(i == 0)
    def _():
        acc_ref[...] = jnp.zeros_like(acc_ref)

    diff = pred_ref[...].astype(jnp.float32) - true_ref[...].astype(jnp.float32)
    rows, cols = diff.shape

    # Hot path: tile fully in bounds -> plain VPU sub/mul + vreg-wise adds into
    # the small (8, 128) accumulator (no per-step iota/mask/cross-lane reduce).
    @pl.when(block < n_full_blocks)
    def _():
        sq = diff * diff
        acc_ref[...] += sq.reshape(rows // 8, 8, cols).sum(axis=0)

    # Cold path (at most one ragged / over-allocated tile per core): mask the
    # diff BEFORE squaring so garbage rows beyond n_rows (possibly Inf/NaN)
    # never pass through an arithmetic op on their way to the accumulator.
    @pl.when(block >= n_full_blocks)
    def _():
        row_ids = lax.broadcasted_iota(jnp.int32, (rows, cols), 0) + block * rows
        d = jnp.where(row_ids < n_rows, diff, jnp.float32(0.0))
        acc_ref[...] += (d * d).reshape(rows // 8, 8, cols).sum(axis=0)

    # NOTE: the output block index is (c, 0) for every i, so this SMEM block
    # stays resident across the whole reduction axis and is written back to
    # HBM exactly once after this final write.  Do not change the out
    # index_map without revisiting this invariant.
    @pl.when(i == last_i)
    def _():
        out_ref[0, 0] = jnp.sum(acc_ref[...])


def mse_loss(y_pred, y_true, *, tile_rows=None):
    """torch.nn.MSELoss(reduction='mean') equivalent; returns an f32 scalar."""
    assert y_pred.shape == y_true.shape, "Shape mismatch."
    n_total = int(y_pred.size)

    # Dtype-aware tile rows: same 2 MiB of bytes per DMA step for f32 and bf16.
    if tile_rows is None:
        tile_rows = 4096 if jnp.dtype(y_pred.dtype).itemsize >= 4 else 8192
    assert tile_rows % 8 == 0

    flat_pred = jnp.ravel(y_pred)   # row-major flatten: layout-preserving
    flat_true = jnp.ravel(y_true)

    n_rows = n_total // _LANES
    n_aligned = n_rows * _LANES
    rem = n_total - n_aligned

    # Tail (<128 elements): tiny jnp expression instead of padding BOTH inputs
    # through HBM just to reach a multiple of 128.
    if rem:
        tail_sum = jnp.sum(
            (flat_pred[n_aligned:].astype(jnp.float32)
             - flat_true[n_aligned:].astype(jnp.float32)) ** 2)
    else:
        tail_sum = jnp.float32(0.0)

    if n_rows == 0:  # fewer than 128 elements: no kernel work needed
        return tail_sum / jnp.float32(n_total)

    if rem:
        pred2d = flat_pred[:n_aligned].reshape(n_rows, _LANES)
        true2d = flat_true[:n_aligned].reshape(n_rows, _LANES)
    else:
        pred2d = flat_pred.reshape(n_rows, _LANES)   # free reshape, no copy
        true2d = flat_true.reshape(n_rows, _LANES)

    n_blocks = pl.cdiv(n_rows, tile_rows)
    num_cores = 2 if n_blocks >= 2 else 1            # v7x: 2 TCs; else serial
    bpc = pl.cdiv(n_blocks, num_cores)               # row-tile blocks per core
    n_full = n_rows // tile_rows                     # fully in-bounds blocks

    def in_map(c, i):
        # Clamp so an over-allocated trailing block on the last core never
        # DMAs out of range; the kernel masks it to zero by its LOGICAL index.
        return (jnp.minimum(c * bpc + i, n_blocks - 1), 0)

    partials = pl.pallas_call(
        functools.partial(_mse_kernel, bpc, n_rows, n_full),
        out_shape=jax.ShapeDtypeStruct((num_cores, 1), jnp.float32),
        grid_spec=pltpu.PrefetchScalarGridSpec(
            num_scalar_prefetch=0,
            grid=(num_cores, bpc),
            in_specs=[
                pl.BlockSpec((tile_rows, _LANES), in_map),
                pl.BlockSpec((tile_rows, _LANES), in_map),
            ],
            out_specs=pl.BlockSpec((1, 1), lambda c, i: (c, 0),
                                   memory_space=pltpu.SMEM),
            scratch_shapes=[pltpu.VMEM((8, _LANES), jnp.float32)],
        ),
        compiler_params=pltpu.CompilerParams(
            dimension_semantics=("parallel", "arbitrary"),
            vmem_limit_bytes=32 * 1024 * 1024,
        ),
    )(pred2d, true2d)

    # Intentionally return f32 (accumulation dtype) regardless of input dtype.
    return (jnp.sum(partials) + tail_sum) / jnp.float32(n_total)
    # TODO(synk): `to_numpy=True` (host float()) has no in-kernel equivalent;
    # callers can np.asarray() the returned scalar.


if __name__ == "__main__":
    key = jax.random.PRNGKey(0)
    k1, k2, k3, k4, k5, k6 = jax.random.split(key, 6)

    # (n_nodes, n_samples): lane-aligned total (8*32 = 256 -> 2 rows of 128).
    y_pred = jax.random.normal(k1, (8, 32), dtype=jnp.float32)
    y_true = jax.random.normal(k2, (8, 32), dtype=jnp.float32)
    loss = mse_loss(y_pred, y_true)
    jax.block_until_ready(loss)
    ref = jnp.mean((y_pred - y_true) ** 2)
    assert jnp.allclose(loss, ref, rtol=1e-5, atol=1e-6), (loss, ref)

    # (n_nodes,): non-lane-aligned length -> 128-aligned prefix + jnp tail.
    y_pred1 = jax.random.normal(k3, (1000,), dtype=jnp.float32)
    y_true1 = jax.random.normal(k4, (1000,), dtype=jnp.float32)
    loss1 = mse_loss(y_pred1, y_true1)
    jax.block_until_ready(loss1)
    ref1 = jnp.mean((y_pred1 - y_true1) ** 2)
    assert jnp.allclose(loss1, ref1, rtol=1e-5, atol=1e-6), (loss1, ref1)

    # Small-tile run exercising the multi-block / dual-core grid, the ragged
    # last tile, the fully-masked clamped tile, and the <128-element tail.
    y_pred2 = jax.random.normal(k5, (40, 321), dtype=jnp.float32)
    y_true2 = jax.random.normal(k6, (40, 321), dtype=jnp.float32)
    loss2 = mse_loss(y_pred2, y_true2, tile_rows=16)
    jax.block_until_ready(loss2)
    ref2 = jnp.mean((y_pred2 - y_true2) ** 2)
    assert jnp.allclose(loss2, ref2, rtol=1e-4, atol=1e-6), (loss2, ref2)

    print("KERNEL_OK")
</pallas_src>

<mosaic_0001>
module attributes {stable_mosaic.version = 11 : i64} {
  func.func @_mse_kernel(%arg0: i32, %arg1: i32, %arg2: memref<4096x128xf32, #tpu.memory_space<vmem>>, %arg3: memref<4096x128xf32, #tpu.memory_space<vmem>>, %arg4: memref<1x1xf32, #tpu.memory_space<smem>>, %arg5: memref<8x128xf32, #tpu.memory_space<vmem>>) attributes {dimension_semantics = [#tpu.dimension_semantics<parallel>, #tpu.dimension_semantics<arbitrary>], iteration_bounds = array<i64: 1, 1>, scalar_prefetch = 0 : i64, scratch_operands = 1 : i64, tpu.core_type = #tpu.core_type<tc>, window_params = [{transform_indices = @transform_0, window_bounds = array<i64: 4096, 128>}, {transform_indices = @transform_1, window_bounds = array<i64: 4096, 128>}, {transform_indices = @transform_2, window_bounds = array<i64: 1, 1>}]} {
    %c1_i32 = arith.constant 1 : i32
    %0 = arith.muli %arg0, %c1_i32 : i32
    %1 = arith.addi %0, %arg1 : i32
    %c0_i32 = arith.constant 0 : i32
    %2 = arith.cmpi eq, %arg1, %c0_i32 : i32
    %3 = arith.extui %2 : i1 to i32
    %c0_i32_0 = arith.constant 0 : i32
    %4 = arith.cmpi ne, %3, %c0_i32_0 : i32
    scf.if %4 {
      %cst = arith.constant 0.000000e+00 : f32
      %17 = vector.broadcast %cst : f32 to vector<8x128xf32>
      %c0_10 = arith.constant 0 : index
      %c0_11 = arith.constant 0 : index
      %18 = vector.load %arg5[%c0_10, %c0_11] : memref<8x128xf32, #tpu.memory_space<vmem>>, vector<8x128xf32>
      tpu.vector_store %arg5[%c0_10, %c0_11], %17 {strides = array<i32>} : memref<8x128xf32, #tpu.memory_space<vmem>>, vector<8x128xf32>,
    } else {
    }
    %c0 = arith.constant 0 : index
    %c0_1 = arith.constant 0 : index
    %5 = vector.load %arg2[%c0, %c0_1] : memref<4096x128xf32, #tpu.memory_space<vmem>>, vector<4096x128xf32>
    %c0_2 = arith.constant 0 : index
    %c0_3 = arith.constant 0 : index
    %6 = vector.load %arg3[%c0_2, %c0_3] : memref<4096x128xf32, #tpu.memory_space<vmem>>, vector<4096x128xf32>
    %7 = arith.subf %5, %6 : vector<4096x128xf32>
    %c0_i32_4 = arith.constant 0 : i32
    %8 = arith.cmpi slt, %1, %c0_i32_4 : i32
    %9 = arith.extui %8 : i1 to i32
    %c0_i32_5 = arith.constant 0 : i32
    %10 = arith.cmpi ne, %9, %c0_i32_5 : i32
    scf.if %10 {
      %17 = arith.mulf %7, %7 : vector<4096x128xf32>
      %c0_10 = arith.constant 0 : index
      %c0_11 = arith.constant 0 : index
      %18 = vector.load %arg5[%c0_10, %c0_11] : memref<8x128xf32, #tpu.memory_space<vmem>>, vector<8x128xf32>
      %19 = vector.shape_cast %17 : vector<4096x128xf32> to vector<512x8x128xf32>
      %cst = arith.constant dense<0.000000e+00> : vector<8x128xf32>
      %20 = vector.multi_reduction <add>, %19, %cst [0] : vector<512x8x128xf32> to vector<8x128xf32>
      %21 = arith.addf %18, %20 : vector<8x128xf32>
      %c0_12 = arith.constant 0 : index
      %c0_13 = arith.constant 0 : index
      %22 = vector.load %arg5[%c0_12, %c0_13] : memref<8x128xf32, #tpu.memory_space<vmem>>, vector<8x128xf32>
      tpu.vector_store %arg5[%c0_12, %c0_13], %21 {strides = array<i32>} : memref<8x128xf32, #tpu.memory_space<vmem>>, vector<8x128xf32>,
    } else {
    }
    %c0_i32_6 = arith.constant 0 : i32
    %11 = arith.cmpi sge, %1, %c0_i32_6 : i32
    %12 = arith.extui %11 : i1 to i32
    %c0_i32_7 = arith.constant 0 : i32
    %13 = arith.cmpi ne, %12, %c0_i32_7 : i32
    scf.if %13 {
      %17 = tpu.iota {dimensions = array<i32: 0>} : vector<4096x128xi32>
      %c4096_i32 = arith.constant 4096 : i32
      %18 = arith.muli %1, %c4096_i32 : i32
      %19 = vector.broadcast %18 : i32 to vector<4096x128xi32>
      %20 = arith.addi %17, %19 : vector<4096x128xi32>
      %c2_i32 = arith.constant 2 : i32
      %21 = vector.broadcast %c2_i32 : i32 to vector<4096x128xi32>
      %22 = arith.cmpi slt, %20, %21 : vector<4096x128xi32>
      %cst = arith.constant 0.000000e+00 : f32
      %23 = vector.broadcast %cst : f32 to vector<4096x128xf32>
      %24 = arith.select %22, %7, %23 : vector<4096x128xi1>, vector<4096x128xf32>
      %c0_10 = arith.constant 0 : index
      %c0_11 = arith.constant 0 : index
      %25 = vector.load %arg5[%c0_10, %c0_11] : memref<8x128xf32, #tpu.memory_space<vmem>>, vector<8x128xf32>
      %26 = arith.mulf %24, %24 : vector<4096x128xf32>
      %27 = vector.shape_cast %26 : vector<4096x128xf32> to vector<512x8x128xf32>
      %cst_12 = arith.constant dense<0.000000e+00> : vector<8x128xf32>
      %28 = vector.multi_reduction <add>, %27, %cst_12 [0] : vector<512x8x128xf32> to vector<8x128xf32>
      %29 = arith.addf %25, %28 : vector<8x128xf32>
      %c0_13 = arith.constant 0 : index
      %c0_14 = arith.constant 0 : index
      %30 = vector.load %arg5[%c0_13, %c0_14] : memref<8x128xf32, #tpu.memory_space<vmem>>, vector<8x128xf32>
      tpu.vector_store %arg5[%c0_13, %c0_14], %29 {strides = array<i32>} : memref<8x128xf32, #tpu.memory_space<vmem>>, vector<8x128xf32>,
    } else {
    }
    %c0_i32_8 = arith.constant 0 : i32
    %14 = arith.cmpi eq, %arg1, %c0_i32_8 : i32
    %15 = arith.extui %14 : i1 to i32
    %c0_i32_9 = arith.constant 0 : i32
    %16 = arith.cmpi ne, %15, %c0_i32_9 : i32
    scf.if %16 {
      %c0_10 = arith.constant 0 : index
      %c0_11 = arith.constant 0 : index
      %17 = vector.load %arg5[%c0_10, %c0_11] : memref<8x128xf32, #tpu.memory_space<vmem>>, vector<8x128xf32>
      %18 = vector.shape_cast %17 : vector<8x128xf32> to vector<1x8x128xf32>
      %cst = arith.constant dense<0.000000e+00> : vector<1xf32>
      %19 = vector.multi_reduction <add>, %18, %cst [1, 2] : vector<1x8x128xf32> to vector<1xf32>
      %20 = vector.shape_cast %19 : vector<1xf32> to vector<1x1x1xf32>
      %21 = vector.extract %20[0, 0, 0] : f32 from vector<1x1x1xf32>
      %c0_12 = arith.constant 0 : index
      %c0_13 = arith.constant 0 : index
      %22 = memref.load %arg4[%c0_12, %c0_13] : memref<1x1xf32, #tpu.memory_space<smem>>
      memref.store %21, %arg4[%c0_12, %c0_13] : memref<1x1xf32, #tpu.memory_space<smem>>
    } else {
    }
    return
  }
  func.func @transform_0(%arg0: i32, %arg1: i32) -> (i32, i32) {
    %c1_i32 = arith.constant 1 : i32
    %0 = arith.muli %arg0, %c1_i32 : i32
    %1 = arith.addi %0, %arg1 : i32
    %c0_i32 = arith.constant 0 : i32
    %2 = arith.minsi %1, %c0_i32 : i32
    %c0_i32_0 = arith.constant 0 : i32
    %c0_i32_1 = arith.constant 0 : i32
    return %2, %c0_i32_0 : i32, i32
  }
  func.func @transform_1(%arg0: i32, %arg1: i32) -> (i32, i32) {
    %c1_i32 = arith.constant 1 : i32
    %0 = arith.muli %arg0, %c1_i32 : i32
    %1 = arith.addi %0, %arg1 : i32
    %c0_i32 = arith.constant 0 : i32
    %2 = arith.minsi %1, %c0_i32 : i32
    %c0_i32_0 = arith.constant 0 : i32
    %c0_i32_1 = arith.constant 0 : i32
    return %2, %c0_i32_0 : i32, i32
  }
  func.func @transform_2(%arg0: i32, %arg1: i32) -> (i32, i32) {
    %c0_i32 = arith.constant 0 : i32
    %c0_i32_0 = arith.constant 0 : i32
    return %arg0, %c0_i32 : i32, i32
  }
}

</mosaic_0001>

<llo_original>
// kernel: tpu_custom_call.1
$region0: #{tpu_custom_call.1}
  #allocation0 [shape = 'u32[]', space=smem, size = 0x4, offset = 0x4, fixed_abs, tag = 'smem constant byte address 0x4 - core index']
  #allocation1 [shape = 'u32[144,128]{1,0:T(1,128)}', space=vmem, size = 0x12000, scoped, tag = 'internal scratch']
  #allocation2 [shape = 'f32[8,128]{1,0:T(8,128)}', space=vmem, size = 0x1000, scoped, tag = 'scratch operand']
  %s0 = inlined_call_operand.hbm [shape: f32[2,128], index: 0, kind: input, shape index: {}]
  %s1 = inlined_call_operand.hbm [shape: f32[2,128], index: 1, kind: input, shape index: {}]
  %s2 = inlined_call_operand.hbm [shape: f32[1,1], index: 2, kind: output, shape index: {}]
  %s3 = sld [smem:[#allocation0]]
  $region42: #{tpu_custom_call.1} parent=0
    _
  %s5 = ssub.s32 1, %s3
  %s6 = scalar_select 0, %s5, %s3
  $region1: #{tpu_custom_call.1} parent=0
    #allocation3 [shape = 'u8[2097152]{0}', space=vmem, size = 0x200000, scoped, tag = 'input window, operand 0, single buffered']
    #allocation4 [shape = 's32[1]{0}', space=sflag, size = 0x4, scoped, tag = 'scoped memory for tpu_custom_call.1']
    #allocation5 [shape = 's32[1]{0}', space=sflag, size = 0x4, scoped, tag = 'scoped memory for tpu_custom_call.1']
    #allocation6 [shape = 'u8[2097152]{0}', space=vmem, size = 0x200000, scoped, tag = 'input window, operand 1, single buffered']
    #allocation7 [shape = 's32[1]{0}', space=sflag, size = 0x4, scoped, tag = 'scoped memory for tpu_custom_call.1']
    #allocation8 [shape = 'u8[512]{0}', space=smem, size = 0x200, scoped, tag = 'output window, operand 0, single buffered']
    %7 = vsyncpa [#allocation4], 0
    %8 = vsyncpa [#allocation7], 0
    %9 = vsyncpa [#allocation5], 0
    // Predicated region
    $region2: #{tpu_custom_call.1} parent=1 // pred_check
      _
    $region3: #{tpu_custom_call.1} parent=1 // pred_check_branch
      %11 = sbr.rel (0) target = $region5
    $region4: #{tpu_custom_call.1} parent=1 // pred_region
      %s12 = sadd.s32 0, 0
      %p13 = scmp.lt.s32.totalorder %s12, 0
      %s14 = scalar_select %p13, %s12, 0
      %s15 = smul.u32 2048, %s14
      %s16 = ssub.s32 1, %s15
      %s17 = smul.u32 32, %s16
      %s19 = ssub.s32 65536, %s17
      %20 = vsyncadd [#allocation4], %s19
      %p21 = scmp.ne.s32.totalorder 0, %s17
      %s22 = smul.addr %s15, 32
      %s23 = scalar_lea.hbm %s0, %s22
      %s24 = smul.u32 2, %s16
      %s25 = sshll.u32 [#allocation3], 4
      %s26 = int_to_ptr.vmem [resolvable:$true] %s25
      %s27 = sshll.u32 %s24, 4
      %31 = dma.hbm_to_vmem [thread:$0]  (%p21), %s23, %s27, %s26, [#allocation4], 32, 32, 2
    $region5: #{tpu_custom_call.1} parent=1 // pred_fallthru
      _
    // Predicated region
    $region6: #{tpu_custom_call.1} parent=1 // pred_check
      _
    $region7: #{tpu_custom_call.1} parent=1 // pred_check_branch
      %33 = sbr.rel (0) target = $region9
    $region8: #{tpu_custom_call.1} parent=1 // pred_region
      %s34 = sadd.s32 0, 0
      %p35 = scmp.lt.s32.totalorder %s34, 0
      %s36 = scalar_select %p35, %s34, 0
      %s37 = smul.u32 2048, %s36
      %s38 = ssub.s32 1, %s37
      %s39 = smul.u32 32, %s38
      %s41 = ssub.s32 65536, %s39
      %42 = vsyncadd [#allocation7], %s41
      %p43 = scmp.ne.s32.totalorder 0, %s39
      %s44 = smul.addr %s37, 32
      %s45 = scalar_lea.hbm %s1, %s44
      %s46 = smul.u32 2, %s38
      %s47 = sshll.u32 [#allocation6], 4
      %s48 = int_to_ptr.vmem [resolvable:$true] %s47
      %s49 = sshll.u32 %s46, 4
      %53 = dma.hbm_to_vmem [thread:$0]  (%p43), %s45, %s49, %s48, [#allocation7], 32, 32, 2
    $region9: #{tpu_custom_call.1} parent=1 // pred_fallthru
      _
    // Predicated region
    $region10: #{tpu_custom_call.1} parent=1 // pred_check
      _
    $region11: #{tpu_custom_call.1} parent=1 // pred_check_branch
      %55 = sbr.rel (0) target = $region13
    $region12: #{tpu_custom_call.1} parent=1 // pred_region
      %56 = dma.done [#allocation4], 65536
    $region13: #{tpu_custom_call.1} parent=1 // pred_fallthru
      _
    // Predicated region
    $region14: #{tpu_custom_call.1} parent=1 // pred_check
      _
    $region15: #{tpu_custom_call.1} parent=1 // pred_check_branch
      %58 = sbr.rel (0) target = $region17
    $region16: #{tpu_custom_call.1} parent=1 // pred_region
      %59 = dma.done [#allocation7], 65536
    $region17: #{tpu_custom_call.1} parent=1 // pred_fallthru
      _
    %s60 = sadd.s32 0, 0
    %p61 = scmp.lt.s32.totalorder %s60, 0
    %s62 = scalar_select %p61, %s60, 0
    %s63 = smul.u32 2048, %s62
    %s64 = ssub.s32 1, %s63
    %s65 = smul.u32 32, %s64
    %s66 = sadd.s32 0, 0
    %p67 = scmp.lt.s32.totalorder %s66, 0
    %s68 = scalar_select %p67, %s66, 0
    %s69 = smul.u32 2048, %s68
    %s70 = ssub.s32 1, %s69
    %s71 = smul.u32 32, %s70
    %s72 = sadd.s32 0, 0
    %p73 = scmp.eq.s32.totalorder 0, 0
    // Predicated region
    $region18: #{tpu_custom_call.1} parent=1 // pred_check
      %p74 = pneg %p73
    $region19: #{tpu_custom_call.1} parent=1 // pred_check_branch
      %76 = sbr.rel (%p74) target = $region21
    $region20: #{tpu_custom_call.1} parent=1 // pred_region
      %77 = vst [vmem:[#allocation2] sm:$0xff] 0.0
    $region21: #{tpu_custom_call.1} parent=1 // pred_fallthru
      _
    %v78 = vld [vmem:[#allocation3] sm:$0xff]
    %v79 = vld [vmem:[#allocation3 + $0x8] sm:$0xff]
    %v80 = vld [vmem:[#allocation3 + $0x10] sm:$0xff]
    %v81 = vld [vmem:[#allocation3 + $0x18] sm:$0xff]
    %v82 = vld [vmem:[#allocation3 + $0x20] sm:$0xff]
    %v83 = vld [vmem:[#allocation3 + $0x28] sm:$0xff]
    %v84 = vld [vmem:[#allocation3 + $0x30] sm:$0xff]
    %v85 = vld [vmem:[#allocation3 + $0x38] sm:$0xff]
    %v86 = vld [vmem:[#allocation3 + $0x40] sm:$0xff]
    %v87 = vld [vmem:[#allocation3 + $0x48] sm:$0xff]
    %v88 = vld [vmem:[#allocation3 + $0x50] sm:$0xff]
    %v89 = vld [vmem:[#allocation3 + $0x58] sm:$0xff]
    %v90 = vld [vmem:[#allocation3 + $0x60] sm:$0xff]
    %v91 = vld [vmem:[#allocation3 + $0x68] sm:$0xff]
    %v92 = vld [vmem:[#allocation3 + $0x70] sm:$0xff]
    %v93 = vld [vmem:[#allocation3 + $0x78] sm:$0xff]
    %v94 = vld [vmem:[#allocation3 + $0x80] sm:$0xff]
    %v95 = vld [vmem:[#allocation3 + $0x88] sm:$0xff]
    %v96 = vld [vmem:[#allocation3 + $0x90] sm:$0xff]
    %v97 = vld [vmem:[#allocation3 + $0x98] sm:$0xff]
    %v98 = vld [vmem:[#allocation3 + $0xa0] sm:$0xff]
    %v99 = vld [vmem:[#allocation3 + $0xa8] sm:$0xff]
    %v100 = vld [vmem:[#allocation3 + $0xb0] sm:$0xff]
    %v101 = vld [vmem:[#allocation3 + $0xb8] sm:$0xff]
    %v102 = vld [vmem:[#allocation3 + $0xc0] sm:$0xff]
    %v103 = vld [vmem:[#allocation3 + $0xc8] sm:$0xff]
    %v104 = vld [vmem:[#allocation3 + $0xd0] sm:$0xff]
    %v105 = vld [vmem:[#allocation3 + $0xd8] sm:$0xff]
    %v106 = vld [vmem:[#allocation3 + $0xe0] sm:$0xff]
    %v107 = vld [vmem:[#allocation3 + $0xe8] sm:$0xff]
    %v108 = vld [vmem:[#allocation3 + $0xf0] sm:$0xff]
    %v109 = vld [vmem:[#allocation3 + $0xf8] sm:$0xff]
    %v110 = vld [vmem:[#allocation3 + $0x100] sm:$0xff]
    %v111 = vld [vmem:[#allocation3 + $0x108] sm:$0xff]
    %v112 = vld [vmem:[#allocation3 + $0x110] sm:$0xff]
    %v113 = vld [vmem:[#allocation3 + $0x118] sm:$0xff]
    %v114 = vld [vmem:[#allocation3 + $0x120] sm:$0xff]
    %v115 = vld [vmem:[#allocation3 + $0x128] sm:$0xff]
    %v116 = vld [vmem:[#allocation3 + $0x130] sm:$0xff]
    %v117 = vld [vmem:[#allocation3 + $0x138] sm:$0xff]
    %v118 = vld [vmem:[#allocation3 + $0x140] sm:$0xff]
    %v119 = vld [vmem:[#allocation3 + $0x148] sm:$0xff]
    %v120 = vld [vmem:[#allocation3 + $0x150] sm:$0xff]
    %v121 = vld [vmem:[#allocation3 + $0x158] sm:$0xff]
    %v122 = vld [vmem:[#allocation3 + $0x160] sm:$0xff]
    %v123 = vld [vmem:[#allocation3 + $0x168] sm:$0xff]
    %v124 = vld [vmem:[#allocation3 + $0x170] sm:$0xff]
    %v125 = vld [vmem:[#allocation3 + $0x178] sm:$0xff]
    %v126 = vld [vmem:[#allocation3 + $0x180] sm:$0xff]
    %v127 = vld [vmem:[#allocation3 + $0x188] sm:$0xff]
    %v128 = vld [vmem:[#allocation3 + $0x190] sm:$0xff]
    %v129 = vld [vmem:[#allocation3 + $0x198] sm:$0xff]
    %v130 = vld [vmem:[#allocation3 + $0x1a0] sm:$0xff]
    %v131 = vld [vmem:[#allocation3 + $0x1a8] sm:$0xff]
    %v132 = vld [vmem:[#allocation3 + $0x1b0] sm:$0xff]
    %v133 = vld [vmem:[#allocation3 + $0x1b8] sm:$0xff]
    %v134 = vld [vmem:[#allocation3 + $0x1c0] sm:$0xff]
    %v135 = vld [vmem:[#allocation3 + $0x1c8] sm:$0xff]
    %v136 = vld [vmem:[#allocation3 + $0x1d0] sm:$0xff]
    %v137 = vld [vmem:[#allocation3 + $0x1d8] sm:$0xff]
    %v138 = vld [vmem:[#allocation3 + $0x1e0] sm:$0xff]
    %v139 = vld [vmem:[#allocation3 + $0x1e8] sm:$0xff]
    %v140 = vld [vmem:[#allocation3 + $0x1f0] sm:$0xff]
    %v141 = vld [vmem:[#allocation3 + $0x1f8] sm:$0xff]
    %v142 = vld [vmem:[#allocation3 + $0x200] sm:$0xff]
    %v143 = vld [vmem:[#allocation3 + $0x208] sm:$0xff]
    %v144 = vld [vmem:[#allocation3 + $0x210] sm:$0xff]
    %v145 = vld [vmem:[#allocation3 + $0x218] sm:$0xff]
    %v146 = vld [vmem:[#allocation3 + $0x220] sm:$0xff]
    %v147 = vld [vmem:[#allocation3 + $0x228] sm:$0xff]
    %v148 = vld [vmem:[#allocation3 + $0x230] sm:$0xff]
    %v149 = vld [vmem:[#allocation3 + $0x238] sm:$0xff]
    %v150 = vld [vmem:[#allocation3 + $0x240] sm:$0xff]
    %v151 = vld [vmem:[#allocation3 + $0x248] sm:$0xff]
    %v152 = vld [vmem:[#allocation3 + $0x250] sm:$0xff]
    %v153 = vld [vmem:[#allocation3 + $0x258] sm:$0xff]
    %v154 = vld [vmem:[#allocation3 + $0x260] sm:$0xff]
    %v155 = vld [vmem:[#allocation3 + $0x268] sm:$0xff]
    %v156 = vld [vmem:[#allocation3 + $0x270] sm:$0xff]
    %v157 = vld [vmem:[#allocation3 + $0x278] sm:$0xff]
    %v158 = vld [vmem:[#allocation3 + $0x280] sm:$0xff]
    %v159 = vld [vmem:[#allocation3 + $0x288] sm:$0xff]
    %v160 = vld [vmem:[#allocation3 + $0x290] sm:$0xff]
    %v161 = vld [vmem:[#allocation3 + $0x298] sm:$0xff]
    %v162 = vld [vmem:[#allocation3 + $0x2a0] sm:$0xff]
    %v163 = vld [vmem:[#allocation3 + $0x2a8] sm:$0xff]
    %v164 = vld [vmem:[#allocation3 + $0x2b0] sm:$0xff]
    %v165 = vld [vmem:[#allocation3 + $0x2b8] sm:$0xff]
    %v166 = vld [vmem:[#allocation3 + $0x2c0] sm:$0xff]
    %v167 = vld [vmem:[#allocation3 + $0x2c8] sm:$0xff]
    %v168 = vld [vmem:[#allocation3 + $0x2d0] sm:$0xff]
    %v169 = vld [vmem:[#allocation3 + $0x2d8] sm:$0xff]
    %v170 = vld [vmem:[#allocation3 + $0x2e0] sm:$0xff]
    %v171 = vld [vmem:[#allocation3 + $0x2e8] sm:$0xff]
    %v172 = vld [vmem:[#allocation3 + $0x2f0] sm:$0xff]
    %v173 = vld [vmem:[#allocation3 + $0x2f8] sm:$0xff]
    %v174 = vld [vmem:[#allocation3 + $0x300] sm:$0xff]
    %v175 = vld [vmem:[#allocation3 + $0x308] sm:$0xff]
    %v176 = vld [vmem:[#allocation3 + $0x310] sm:$0xff]
    %v177 = vld [vmem:[#allocation3 + $0x318] sm:$0xff]
    %v178 = vld [vmem:[#allocation3 + $0x320] sm:$0xff]
    %v179 = vld [vmem:[#allocation3 + $0x328] sm:$0xff]
    %v180 = vld [vmem:[#allocation3 + $0x330] sm:$0xff]
    %v181 = vld [vmem:[#allocation3 + $0x338] sm:$0xff]
    %v182 = vld [vmem:[#allocation3 + $0x340] sm:$0xff]
    %v183 = vld [vmem:[#allocation3 + $0x348] sm:$0xff]
    %v184 = vld [vmem:[#allocation3 + $0x350] sm:$0xff]
    %v185 = vld [vmem:[#allocation3 + $0x358] sm:$0xff]
    %v186 = vld [vmem:[#allocation3 + $0x360] sm:$0xff]
    %v187 = vld [vmem:[#allocation3 + $0x368] sm:$0xff]
    %v188 = vld [vmem:[#allocation3 + $0x370] sm:$0xff]
    %v189 = vld [vmem:[#allocation3 + $0x378] sm:$0xff]
    %v190 = vld [vmem:[#allocation3 + $0x380] sm:$0xff]
    %v191 = vld [vmem:[#allocation3 + $0x388] sm:$0xff]
    %v192 = vld [vmem:[#allocation3 + $0x390] sm:$0xff]
    %v193 = vld [vmem:[#allocation3 + $0x398] sm:$0xff]
    %v194 = vld [vmem:[#allocation3 + $0x3a0] sm:$0xff]
    %v195 = vld [vmem:[#allocation3 + $0x3a8] sm:$0xff]
    %v196 = vld [vmem:[#allocation3 + $0x3b0] sm:$0xff]
    %v197 = vld [vmem:[#allocation3 + $0x3b8] sm:$0xff]
    %v198 = vld [vmem:[#allocation3 + $0x3c0] sm:$0xff]
    %v199 = vld [vmem:[#allocation3 + $0x3c8] sm:$0xff]
    %v200 = vld [vmem:[#allocation3 + $0x3d0] sm:$0xff]
    %v201 = vld [vmem:[#allocation3 + $0x3d8] sm:$0xff]
    %v202 = vld [vmem:[#allocation3 + $0x3e0] sm:$0xff]
    %v203 = vld [vmem:[#allocation3 + $0x3e8] sm:$0xff]
    %v204 = vld [vmem:[#allocation3 + $0x3f0] sm:$0xff]
    %v205 = vld [vmem:[#allocation3 + $0x3f8] sm:$0xff]
    %v206 = vld [vmem:[#allocation3 + $0x400] sm:$0xff]
    %v207 = vld [vmem:[#allocation3 + $0x408] sm:$0xff]
    %v208 = vld [vmem:[#allocation3 + $0x410] sm:$0xff]
    %v209 = vld [vmem:[#allocation3 + $0x418] sm:$0xff]
    %v210 = vld [vmem:[#allocation3 + $0x420] sm:$0xff]
    %v211 = vld [vmem:[#allocation3 + $0x428] sm:$0xff]
    %v212 = vld [vmem:[#allocation3 + $0x430] sm:$0xff]
    %v213 = vld [vmem:[#allocation3 + $0x438] sm:$0xff]
    %v214 = vld [vmem:[#allocation3 + $0x440] sm:$0xff]
    %v215 = vld [vmem:[#allocation3 + $0x448] sm:$0xff]
    %v216 = vld [vmem:[#allocation3 + $0x450] sm:$0xff]
    %v217 = vld [vmem:[#allocation3 + $0x458] sm:$0xff]
    %v218 = vld [vmem:[#allocation3 + $0x460] sm:$0xff]
    %v219 = vld [vmem:[#allocation3 + $0x468] sm:$0xff]
    %v220 = vld [vmem:[#allocation3 + $0x470] sm:$0xff]
    %v221 = vld [vmem:[#allocation3 + $0x478] sm:$0xff]
    %v222 = vld [vmem:[#allocation3 + $0x480] sm:$0xff]
    %v223 = vld [vmem:[#allocation3 + $0x488] sm:$0xff]
    %v224 = vld [vmem:[#allocation3 + $0x490] sm:$0xff]
    %v225 = vld [vmem:[#allocation3 + $0x498] sm:$0xff]
    %v226 = vld [vmem:[#allocation3 + $0x4a0] sm:$0xff]
    %v227 = vld [vmem:[#allocation3 + $0x4a8] sm:$0xff]
    %v228 = vld [vmem:[#allocation3 + $0x4b0] sm:$0xff]
    %v229 = vld [vmem:[#allocation3 + $0x4b8] sm:$0xff]
    %v230 = vld [vmem:[#allocation3 + $0x4c0] sm:$0xff]
    %v231 = vld [vmem:[#allocation3 + $0x4c8] sm:$0xff]
    %v232 = vld [vmem:[#allocation3 + $0x4d0] sm:$0xff]
    %v233 = vld [vmem:[#allocation3 + $0x4d8] sm:$0xff]
    %v234 = vld [vmem:[#allocation3 + $0x4e0] sm:$0xff]
    %v235 = vld [vmem:[#allocation3 + $0x4e8] sm:$0xff]
    %v236 = vld [vmem:[#allocation3 + $0x4f0] sm:$0xff]
    %v237 = vld [vmem:[#allocation3 + $0x4f8] sm:$0xff]
    %v238 = vld [vmem:[#allocation3 + $0x500] sm:$0xff]
    %v239 = vld [vmem:[#allocation3 + $0x508] sm:$0xff]
    %v240 = vld [vmem:[#allocation3 + $0x510] sm:$0xff]
    %v241 = vld [vmem:[#allocation3 + $0x518] sm:$0xff]
    %v242 = vld [vmem:[#allocation3 + $0x520] sm:$0xff]
    %v243 = vld [vmem:[#allocation3 + $0x528] sm:$0xff]
    %v244 = vld [vmem:[#allocation3 + $0x530] sm:$0xff]
    %v245 = vld [vmem:[#allocation3 + $0x538] sm:$0xff]
    %v246 = vld [vmem:[#allocation3 + $0x540] sm:$0xff]
    %v247 = vld [vmem:[#allocation3 + $0x548] sm:$0xff]
    %v248 = vld [vmem:[#allocation3 + $0x550] sm:$0xff]
    %v249 = vld [vmem:[#allocation3 + $0x558] sm:$0xff]
    %v250 = vld [vmem:[#allocation3 + $0x560] sm:$0xff]
    %v251 = vld [vmem:[#allocation3 + $0x568] sm:$0xff]
    %v252 = vld [vmem:[#allocation3 + $0x570] sm:$0xff]
    %v253 = vld [vmem:[#allocation3 + $0x578] sm:$0xff]
    %v254 = vld [vmem:[#allocation3 + $0x580] sm:$0xff]
    %v255 = vld [vmem:[#allocation3 + $0x588] sm:$0xff]
    %v256 = vld [vmem:[#allocation3 + $0x590] sm:$0xff]
    %v257 = vld [vmem:[#allocation3 + $0x598] sm:$0xff]
    %v258 = vld [vmem:[#allocation3 + $0x5a0] sm:$0xff]
    %v259 = vld [vmem:[#allocation3 + $0x5a8] sm:$0xff]
    %v260 = vld [vmem:[#allocation3 + $0x5b0] sm:$0xff]
    %v261 = vld [vmem:[#allocation3 + $0x5b8] sm:$0xff]
    %v262 = vld [vmem:[#allocation3 + $0x5c0] sm:$0xff]
    %v263 = vld [vmem:[#allocation3 + $0x5c8] sm:$0xff]
    %v264 = vld [vmem:[#allocation3 + $0x5d0] sm:$0xff]
    %v265 = vld [vmem:[#allocation3 + $0x5d8] sm:$0xff]
    %v266 = vld [vmem:[#allocation3 + $0x5e0] sm:$0xff]
    %v267 = vld [vmem:[#allocation3 + $0x5e8] sm:$0xff]
    %v268 = vld [vmem:[#allocation3 + $0x5f0] sm:$0xff]
    %v269 = vld [vmem:[#allocation3 + $0x5f8] sm:$0xff]
    %v270 = vld [vmem:[#allocation3 + $0x600] sm:$0xff]
    %v271 = vld [vmem:[#allocation3 + $0x608] sm:$0xff]
    %v272 = vld [vmem:[#allocation3 + $0x610] sm:$0xff]
    %v273 = vld [vmem:[#allocation3 + $0x618] sm:$0xff]
    %v274 = vld [vmem:[#allocation3 + $0x620] sm:$0xff]
    %v275 = vld [vmem:[#allocation3 + $0x628] sm:$0xff]
    %v276 = vld [vmem:[#allocation3 + $0x630] sm:$0xff]
    %v277 = vld [vmem:[#allocation3 + $0x638] sm:$0xff]
    %v278 = vld [vmem:[#allocation3 + $0x640] sm:$0xff]
    %v279 = vld [vmem:[#allocation3 + $0x648] sm:$0xff]
    %v280 = vld [vmem:[#allocation3 + $0x650] sm:$0xff]
    %v281 = vld [vmem:[#allocation3 + $0x658] sm:$0xff]
    %v282 = vld [vmem:[#allocation3 + $0x660] sm:$0xff]
    %v283 = vld [vmem:[#allocation3 + $0x668] sm:$0xff]
    %v284 = vld [vmem:[#allocation3 + $0x670] sm:$0xff]
    %v285 = vld [vmem:[#allocation3 + $0x678] sm:$0xff]
    %v286 = vld [vmem:[#allocation3 + $0x680] sm:$0xff]
    %v287 = vld [vmem:[#allocation3 + $0x688] sm:$0xff]
    %v288 = vld [vmem:[#allocation3 + $0x690] sm:$0xff]
    %v289 = vld [vmem:[#allocation3 + $0x698] sm:$0xff]
    %v290 = vld [vmem:[#allocation3 + $0x6a0] sm:$0xff]
    %v291 = vld [vmem:[#allocation3 + $0x6a8] sm:$0xff]
    %v292 = vld [vmem:[#allocation3 + $0x6b0] sm:$0xff]
    %v293 = vld [vmem:[#allocation3 + $0x6b8] sm:$0xff]
    %v294 = vld [vmem:[#allocation3 + $0x6c0] sm:$0xff]
    %v295 = vld [vmem:[#allocation3 + $0x6c8] sm:$0xff]
    %v296 = vld [vmem:[#allocation3 + $0x6d0] sm:$0xff]
    %v297 = vld [vmem:[#allocation3 + $0x6d8] sm:$0xff]
    %v298 = vld [vmem:[#allocation3 + $0x6e0] sm:$0xff]
    %v299 = vld [vmem:[#allocation3 + $0x6e8] sm:$0xff]
    %v300 = vld [vmem:[#allocation3 + $0x6f0] sm:$0xff]
    %v301 = vld [vmem:[#allocation3 + $0x6f8] sm:$0xff]
    %v302 = vld [vmem:[#allocation3 + $0x700] sm:$0xff]
    %v303 = vld [vmem:[#allocation3 + $0x708] sm:$0xff]
    %v304 = vld [vmem:[#allocation3 + $0x710] sm:$0xff]
    %v305 = vld [vmem:[#allocation3 + $0x718] sm:$0xff]
    %v306 = vld [vmem:[#allocation3 + $0x720] sm:$0xff]
    %v307 = vld [vmem:[#allocation3 + $0x728] sm:$0xff]
    %v308 = vld [vmem:[#allocation3 + $0x730] sm:$0xff]
    %v309 = vld [vmem:[#allocation3 + $0x738] sm:$0xff]
    %v310 = vld [vmem:[#allocation3 + $0x740] sm:$0xff]
    %v311 = vld [vmem:[#allocation3 + $0x748] sm:$0xff]
    %v312 = vld [vmem:[#allocation3 + $0x750] sm:$0xff]
    %v313 = vld [vmem:[#allocation3 + $0x758] sm:$0xff]
    %v314 = vld [vmem:[#allocation3 + $0x760] sm:$0xff]
    %v315 = vld [vmem:[#allocation3 + $0x768] sm:$0xff]
    %v316 = vld [vmem:[#allocation3 + $0x770] sm:$0xff]
    %v317 = vld [vmem:[#allocation3 + $0x778] sm:$0xff]
    %v318 = vld [vmem:[#allocation3 + $0x780] sm:$0xff]
    %v319 = vld [vmem:[#allocation3 + $0x788] sm:$0xff]
    %v320 = vld [vmem:[#allocation3 + $0x790] sm:$0xff]
    %v321 = vld [vmem:[#allocation3 + $0x798] sm:$0xff]
    %v322 = vld [vmem:[#allocation3 + $0x7a0] sm:$0xff]
    %v323 = vld [vmem:[#allocation3 + $0x7a8] sm:$0xff]
    %v324 = vld [vmem:[#allocation3 + $0x7b0] sm:$0xff]
    %v325 = vld [vmem:[#allocation3 + $0x7b8] sm:$0xff]
    %v326 = vld [vmem:[#allocation3 + $0x7c0] sm:$0xff]
    %v327 = vld [vmem:[#allocation3 + $0x7c8] sm:$0xff]
    %v328 = vld [vmem:[#allocation3 + $0x7d0] sm:$0xff]
    %v329 = vld [vmem:[#allocation3 + $0x7d8] sm:$0xff]
    %v330 = vld [vmem:[#allocation3 + $0x7e0] sm:$0xff]
    %v331 = vld [vmem:[#allocation3 + $0x7e8] sm:$0xff]
    %v332 = vld [vmem:[#allocation3 + $0x7f0] sm:$0xff]
    %v333 = vld [vmem:[#allocation3 + $0x7f8] sm:$0xff]
    %v334 = vld [vmem:[#allocation3 + $0x800] sm:$0xff]
    %v335 = vld [vmem:[#allocation3 + $0x808] sm:$0xff]
    %v336 = vld [vmem:[#allocation3 + $0x810] sm:$0xff]
    %v337 = vld [vmem:[#allocation3 + $0x818] sm:$0xff]
    %v338 = vld [vmem:[#allocation3 + $0x820] sm:$0xff]
    %v339 = vld [vmem:[#allocation3 + $0x828] sm:$0xff]
    %v340 = vld [vmem:[#allocation3 + $0x830] sm:$0xff]
    %v341 = vld [vmem:[#allocation3 + $0x838] sm:$0xff]
    %v342 = vld [vmem:[#allocation3 + $0x840] sm:$0xff]
    %v343 = vld [vmem:[#allocation3 + $0x848] sm:$0xff]
    %v344 = vld [vmem:[#allocation3 + $0x850] sm:$0xff]
    %v345 = vld [vmem:[#allocation3 + $0x858] sm:$0xff]
    %v346 = vld [vmem:[#allocation3 + $0x860] sm:$0xff]
    %v347 = vld [vmem:[#allocation3 + $0x868] sm:$0xff]
    %v348 = vld [vmem:[#allocation3 + $0x870] sm:$0xff]
    %v349 = vld [vmem:[#allocation3 + $0x878] sm:$0xff]
    %v350 = vld [vmem:[#allocation3 + $0x880] sm:$0xff]
    %v351 = vld [vmem:[#allocation3 + $0x888] sm:$0xff]
    %v352 = vld [vmem:[#allocation3 + $0x890] sm:$0xff]
    %v353 = vld [vmem:[#allocation3 + $0x898] sm:$0xff]
    %v354 = vld [vmem:[#allocation3 + $0x8a0] sm:$0xff]
    %v355 = vld [vmem:[#allocation3 + $0x8a8] sm:$0xff]
    %v356 = vld [vmem:[#allocation3 + $0x8b0] sm:$0xff]
    %v357 = vld [vmem:[#allocation3 + $0x8b8] sm:$0xff]
    %v358 = vld [vmem:[#allocation3 + $0x8c0] sm:$0xff]
    %v359 = vld [vmem:[#allocation3 + $0x8c8] sm:$0xff]
    %v360 = vld [vmem:[#allocation3 + $0x8d0] sm:$0xff]
    %v361 = vld [vmem:[#allocation3 + $0x8d8] sm:$0xff]
    %v362 = vld [vmem:[#allocation3 + $0x8e0] sm:$0xff]
    %v363 = vld [vmem:[#allocation3 + $0x8e8] sm:$0xff]
    %v364 = vld [vmem:[#allocation3 + $0x8f0] sm:$0xff]
    %v365 = vld [vmem:[#allocation3 + $0x8f8] sm:$0xff]
    %v366 = vld [vmem:[#allocation3 + $0x900] sm:$0xff]
    %v367 = vld [vmem:[#allocation3 + $0x908] sm:$0xff]
    %v368 = vld [vmem:[#allocation3 + $0x910] sm:$0xff]
    %v369 = vld [vmem:[#allocation3 + $0x918] sm:$0xff]
    %v370 = vld [vmem:[#allocation3 + $0x920] sm:$0xff]
    %v371 = vld [vmem:[#allocation3 + $0x928] sm:$0xff]
    %v372 = vld [vmem:[#allocation3 + $0x930] sm:$0xff]
    %v373 = vld [vmem:[#allocation3 + $0x938] sm:$0xff]
    %v374 = vld [vmem:[#allocation3 + $0x940] sm:$0xff]
    %v375 = vld [vmem:[#allocation3 + $0x948] sm:$0xff]
    %v376 = vld [vmem:[#allocation3 + $0x950] sm:$0xff]
    %v377 = vld [vmem:[#allocation3 + $0x958] sm:$0xff]
    %v378 = vld [vmem:[#allocation3 + $0x960] sm:$0xff]
    %v379 = vld [vmem:[#allocation3 + $0x968] sm:$0xff]
    %v380 = vld [vmem:[#allocation3 + $0x970] sm:$0xff]
    %v381 = vld [vmem:[#allocation3 + $0x978] sm:$0xff]
    %v382 = vld [vmem:[#allocation3 + $0x980] sm:$0xff]
    %v383 = vld [vmem:[#allocation3 + $0x988] sm:$0xff]
    %v384 = vld [vmem:[#allocation3 + $0x990] sm:$0xff]
    %v385 = vld [vmem:[#allocation3 + $0x998] sm:$0xff]
    %v386 = vld [vmem:[#allocation3 + $0x9a0] sm:$0xff]
    %v387 = vld [vmem:[#allocation3 + $0x9a8] sm:$0xff]
    %v388 = vld [vmem:[#allocation3 + $0x9b0] sm:$0xff]
    %v389 = vld [vmem:[#allocation3 + $0x9b8] sm:$0xff]
    %v390 = vld [vmem:[#allocation3 + $0x9c0] sm:$0xff]
    %v391 = vld [vmem:[#allocation3 + $0x9c8] sm:$0xff]
    %v392 = vld [vmem:[#allocation3 + $0x9d0] sm:$0xff]
    %v393 = vld [vmem:[#allocation3 + $0x9d8] sm:$0xff]
    %v394 = vld [vmem:[#allocation3 + $0x9e0] sm:$0xff]
    %v395 = vld [vmem:[#allocation3 + $0x9e8] sm:$0xff]
    %v396 = vld [vmem:[#allocation3 + $0x9f0] sm:$0xff]
    %v397 = vld [vmem:[#allocation3 + $0x9f8] sm:$0xff]
    %v398 = vld [vmem:[#allocation3 + $0xa00] sm:$0xff]
    %v399 = vld [vmem:[#allocation3 + $0xa08] sm:$0xff]
    %v400 = vld [vmem:[#allocation3 + $0xa10] sm:$0xff]
    %v401 = vld [vmem:[#allocation3 + $0xa18] sm:$0xff]
    %v402 = vld [vmem:[#allocation3 + $0xa20] sm:$0xff]
    %v403 = vld [vmem:[#allocation3 + $0xa28] sm:$0xff]
    %v404 = vld [vmem:[#allocation3 + $0xa30] sm:$0xff]
    %v405 = vld [vmem:[#allocation3 + $0xa38] sm:$0xff]
    %v406 = vld [vmem:[#allocation3 + $0xa40] sm:$0xff]
    %v407 = vld [vmem:[#allocation3 + $0xa48] sm:$0xff]
    %v408 = vld [vmem:[#allocation3 + $0xa50] sm:$0xff]
    %v409 = vld [vmem:[#allocation3 + $0xa58] sm:$0xff]
    %v410 = vld [vmem:[#allocation3 + $0xa60] sm:$0xff]
    %v411 = vld [vmem:[#allocation3 + $0xa68] sm:$0xff]
    %v412 = vld [vmem:[#allocation3 + $0xa70] sm:$0xff]
    %v413 = vld [vmem:[#allocation3 + $0xa78] sm:$0xff]
    %v414 = vld [vmem:[#allocation3 + $0xa80] sm:$0xff]
    %v415 = vld [vmem:[#allocation3 + $0xa88] sm:$0xff]
    %v416 = vld [vmem:[#allocation3 + $0xa90] sm:$0xff]
    %v417 = vld [vmem:[#allocation3 + $0xa98] sm:$0xff]
    %v418 = vld [vmem:[#allocation3 + $0xaa0] sm:$0xff]
    %v419 = vld [vmem:[#allocation3 + $0xaa8] sm:$0xff]
    %v420 = vld [vmem:[#allocation3 + $0xab0] sm:$0xff]
    %v421 = vld [vmem:[#allocation3 + $0xab8] sm:$0xff]
    %v422 = vld [vmem:[#allocation3 + $0xac0] sm:$0xff]
    %v423 = vld [vmem:[#allocation3 + $0xac8] sm:$0xff]
    %v424 = vld [vmem:[#allocation3 + $0xad0] sm:$0xff]
    %v425 = vld [vmem:[#allocation3 + $0xad8] sm:$0xff]
    %v426 = vld [vmem:[#allocation3 + $0xae0] sm:$0xff]
    %v427 = vld [vmem:[#allocation3 + $0xae8] sm:$0xff]
    %v428 = vld [vmem:[#allocation3 + $0xaf0] sm:$0xff]
    %v429 = vld [vmem:[#allocation3 + $0xaf8] sm:$0xff]
    %v430 = vld [vmem:[#allocation3 + $0xb00] sm:$0xff]
    %v431 = vld [vmem:[#allocation3 + $0xb08] sm:$0xff]
    %v432 = vld [vmem:[#allocation3 + $0xb10] sm:$0xff]
    %v433 = vld [vmem:[#allocation3 + $0xb18] sm:$0xff]
    %v434 = vld [vmem:[#allocation3 + $0xb20] sm:$0xff]
    %v435 = vld [vmem:[#allocation3 + $0xb28] sm:$0xff]
    %v436 = vld [vmem:[#allocation3 + $0xb30] sm:$0xff]
    %v437 = vld [vmem:[#allocation3 + $0xb38] sm:$0xff]
    %v438 = vld [vmem:[#allocation3 + $0xb40] sm:$0xff]
    %v439 = vld [vmem:[#allocation3 + $0xb48] sm:$0xff]
    %v440 = vld [vmem:[#allocation3 + $0xb50] sm:$0xff]
    %v441 = vld [vmem:[#allocation3 + $0xb58] sm:$0xff]
    %v442 = vld [vmem:[#allocation3 + $0xb60] sm:$0xff]
    %v443 = vld [vmem:[#allocation3 + $0xb68] sm:$0xff]
    %v444 = vld [vmem:[#allocation3 + $0xb70] sm:$0xff]
    %v445 = vld [vmem:[#allocation3 + $0xb78] sm:$0xff]
    %v446 = vld [vmem:[#allocation3 + $0xb80] sm:$0xff]
    %v447 = vld [vmem:[#allocation3 + $0xb88] sm:$0xff]
    %v448 = vld [vmem:[#allocation3 + $0xb90] sm:$0xff]
    %v449 = vld [vmem:[#allocation3 + $0xb98] sm:$0xff]
    %v450 = vld [vmem:[#allocation3 + $0xba0] sm:$0xff]
    %v451 = vld [vmem:[#allocation3 + $0xba8] sm:$0xff]
    %v452 = vld [vmem:[#allocation3 + $0xbb0] sm:$0xff]
    %v453 = vld [vmem:[#allocation3 + $0xbb8] sm:$0xff]
    %v454 = vld [vmem:[#allocation3 + $0xbc0] sm:$0xff]
    %v455 = vld [vmem:[#allocation3 + $0xbc8] sm:$0xff]
    %v456 = vld [vmem:[#allocation3 + $0xbd0] sm:$0xff]
    %v457 = vld [vmem:[#allocation3 + $0xbd8] sm:$0xff]
    %v458 = vld [vmem:[#allocation3 + $0xbe0] sm:$0xff]
    %v459 = vld [vmem:[#allocation3 + $0xbe8] sm:$0xff]
    %v460 = vld [vmem:[#allocation3 + $0xbf0] sm:$0xff]
    %v461 = vld [vmem:[#allocation3 + $0xbf8] sm:$0xff]
    %v462 = vld [vmem:[#allocation3 + $0xc00] sm:$0xff]
    %v463 = vld [vmem:[#allocation3 + $0xc08] sm:$0xff]
    %v464 = vld [vmem:[#allocation3 + $0xc10] sm:$0xff]
    %v465 = vld [vmem:[#allocation3 + $0xc18] sm:$0xff]
    %v466 = vld [vmem:[#allocation3 + $0xc20] sm:$0xff]
    %v467 = vld [vmem:[#allocation3 + $0xc28] sm:$0xff]
    %v468 = vld [vmem:[#allocation3 + $0xc30] sm:$0xff]
    %v469 = vld [vmem:[#allocation3 + $0xc38] sm:$0xff]
    %v470 = vld [vmem:[#allocation3 + $0xc40] sm:$0xff]
    %v471 = vld [vmem:[#allocation3 + $0xc48] sm:$0xff]
    %v472 = vld [vmem:[#allocation3 + $0xc50] sm:$0xff]
    %v473 = vld [vmem:[#allocation3 + $0xc58] sm:$0xff]
    %v474 = vld [vmem:[#allocation3 + $0xc60] sm:$0xff]
    %v475 = vld [vmem:[#allocation3 + $0xc68] sm:$0xff]
    %v476 = vld [vmem:[#allocation3 + $0xc70] sm:$0xff]
    %v477 = vld [vmem:[#allocation3 + $0xc78] sm:$0xff]
    %v478 = vld [vmem:[#allocation3 + $0xc80] sm:$0xff]
    %v479 = vld [vmem:[#allocation3 + $0xc88] sm:$0xff]
    %v480 = vld [vmem:[#allocation3 + $0xc90] sm:$0xff]
    %v481 = vld [vmem:[#allocation3 + $0xc98] sm:$0xff]
    %v482 = vld [vmem:[#allocation3 + $0xca0] sm:$0xff]
    %v483 = vld [vmem:[#allocation3 + $0xca8] sm:$0xff]
    %v484 = vld [vmem:[#allocation3 + $0xcb0] sm:$0xff]
    %v485 = vld [vmem:[#allocation3 + $0xcb8] sm:$0xff]
    %v486 = vld [vmem:[#allocation3 + $0xcc0] sm:$0xff]
    %v487 = vld [vmem:[#allocation3 + $0xcc8] sm:$0xff]
    %v488 = vld [vmem:[#allocation3 + $0xcd0] sm:$0xff]
    %v489 = vld [vmem:[#allocation3 + $0xcd8] sm:$0xff]
    %v490 = vld [vmem:[#allocation3 + $0xce0] sm:$0xff]
    %v491 = vld [vmem:[#allocation3 + $0xce8] sm:$0xff]
    %v492 = vld [vmem:[#allocation3 + $0xcf0] sm:$0xff]
    %v493 = vld [vmem:[#allocation3 + $0xcf8] sm:$0xff]
    %v494 = vld [vmem:[#allocation3 + $0xd00] sm:$0xff]
    %v495 = vld [vmem:[#allocation3 + $0xd08] sm:$0xff]
    %v496 = vld [vmem:[#allocation3 + $0xd10] sm:$0xff]
    %v497 = vld [vmem:[#allocation3 + $0xd18] sm:$0xff]
    %v498 = vld [vmem:[#allocation3 + $0xd20] sm:$0xff]
    %v499 = vld [vmem:[#allocation3 + $0xd28] sm:$0xff]
    %v500 = vld [vmem:[#allocation3 + $0xd30] sm:$0xff]
    %v501 = vld [vmem:[#allocation3 + $0xd38] sm:$0xff]
    %v502 = vld [vmem:[#allocation3 + $0xd40] sm:$0xff]
    %v503 = vld [vmem:[#allocation3 + $0xd48] sm:$0xff]
    %v504 = vld [vmem:[#allocation3 + $0xd50] sm:$0xff]
    %v505 = vld [vmem:[#allocation3 + $0xd58] sm:$0xff]
    %v506 = vld [vmem:[#allocation3 + $0xd60] sm:$0xff]
    %v507 = vld [vmem:[#allocation3 + $0xd68] sm:$0xff]
    %v508 = vld [vmem:[#allocation3 + $0xd70] sm:$0xff]
    %v509 = vld [vmem:[#allocation3 + $0xd78] sm:$0xff]
    %v510 = vld [vmem:[#allocation3 + $0xd80] sm:$0xff]
    %v511 = vld [vmem:[#allocation3 + $0xd88] sm:$0xff]
    %v512 = vld [vmem:[#allocation3 + $0xd90] sm:$0xff]
    %v513 = vld [vmem:[#allocation3 + $0xd98] sm:$0xff]
    %v514 = vld [vmem:[#allocation3 + $0xda0] sm:$0xff]
    %v515 = vld [vmem:[#allocation3 + $0xda8] sm:$0xff]
    %v516 = vld [vmem:[#allocation3 + $0xdb0] sm:$0xff]
    %v517 = vld [vmem:[#allocation3 + $0xdb8] sm:$0xff]
    %v518 = vld [vmem:[#allocation3 + $0xdc0] sm:$0xff]
    %v519 = vld [vmem:[#allocation3 + $0xdc8] sm:$0xff]
    %v520 = vld [vmem:[#allocation3 + $0xdd0] sm:$0xff]
    %v521 = vld [vmem:[#allocation3 + $0xdd8] sm:$0xff]
    %v522 = vld [vmem:[#allocation3 + $0xde0] sm:$0xff]
    %v523 = vld [vmem:[#allocation3 + $0xde8] sm:$0xff]
    %v524 = vld [vmem:[#allocation3 + $0xdf0] sm:$0xff]
    %v525 = vld [vmem:[#allocation3 + $0xdf8] sm:$0xff]
    %v526 = vld [vmem:[#allocation3 + $0xe00] sm:$0xff]
    %v527 = vld [vmem:[#allocation3 + $0xe08] sm:$0xff]
    %v528 = vld [vmem:[#allocation3 + $0xe10] sm:$0xff]
    %v529 = vld [vmem:[#allocation3 + $0xe18] sm:$0xff]
    %v530 = vld [vmem:[#allocation3 + $0xe20] sm:$0xff]
    %v531 = vld [vmem:[#allocation3 + $0xe28] sm:$0xff]
    %v532 = vld [vmem:[#allocation3 + $0xe30] sm:$0xff]
    %v533 = vld [vmem:[#allocation3 + $0xe38] sm:$0xff]
    %v534 = vld [vmem:[#allocation3 + $0xe40] sm:$0xff]
    %v535 = vld [vmem:[#allocation3 + $0xe48] sm:$0xff]
    %v536 = vld [vmem:[#allocation3 + $0xe50] sm:$0xff]
    %v537 = vld [vmem:[#allocation3 + $0xe58] sm:$0xff]
    %v538 = vld [vmem:[#allocation3 + $0xe60] sm:$0xff]
    %v539 = vld [vmem:[#allocation3 + $0xe68] sm:$0xff]
    %v540 = vld [vmem:[#allocation3 + $0xe70] sm:$0xff]
    %v541 = vld [vmem:[#allocation3 + $0xe78] sm:$0xff]
    %v542 = vld [vmem:[#allocation3 + $0xe80] sm:$0xff]
    %v543 = vld [vmem:[#allocation3 + $0xe88] sm:$0xff]
    %v544 = vld [vmem:[#allocation3 + $0xe90] sm:$0xff]
    %v545 = vld [vmem:[#allocation3 + $0xe98] sm:$0xff]
    %v546 = vld [vmem:[#allocation3 + $0xea0] sm:$0xff]
    %v547 = vld [vmem:[#allocation3 + $0xea8] sm:$0xff]
    %v548 = vld [vmem:[#allocation3 + $0xeb0] sm:$0xff]
    %v549 = vld [vmem:[#allocation3 + $0xeb8] sm:$0xff]
    %v550 = vld [vmem:[#allocation3 + $0xec0] sm:$0xff]
    %v551 = vld [vmem:[#allocation3 + $0xec8] sm:$0xff]
    %v552 = vld [vmem:[#allocation3 + $0xed0] sm:$0xff]
    %v553 = vld [vmem:[#allocation3 + $0xed8] sm:$0xff]
    %v554 = vld [vmem:[#allocation3 + $0xee0] sm:$0xff]
    %v555 = vld [vmem:[#allocation3 + $0xee8] sm:$0xff]
    %v556 = vld [vmem:[#allocation3 + $0xef0] sm:$0xff]
    %v557 = vld [vmem:[#allocation3 + $0xef8] sm:$0xff]
    %v558 = vld [vmem:[#allocation3 + $0xf00] sm:$0xff]
    %v559 = vld [vmem:[#allocation3 + $0xf08] sm:$0xff]
    %v560 = vld [vmem:[#allocation3 + $0xf10] sm:$0xff]
    %v561 = vld [vmem:[#allocation3 + $0xf18] sm:$0xff]
    %v562 = vld [vmem:[#allocation3 + $0xf20] sm:$0xff]
    %v563 = vld [vmem:[#allocation3 + $0xf28] sm:$0xff]
    %v564 = vld [vmem:[#allocation3 + $0xf30] sm:$0xff]
    %v565 = vld [vmem:[#allocation3 + $0xf38] sm:$0xff]
    %v566 = vld [vmem:[#allocation3 + $0xf40] sm:$0xff]
    %v567 = vld [vmem:[#allocation3 + $0xf48] sm:$0xff]
    %v568 = vld [vmem:[#allocation3 + $0xf50] sm:$0xff]
    %v569 = vld [vmem:[#allocation3 + $0xf58] sm:$0xff]
    %v570 = vld [vmem:[#allocation3 + $0xf60] sm:$0xff]
    %v571 = vld [vmem:[#allocation3 + $0xf68] sm:$0xff]
    %v572 = vld [vmem:[#allocation3 + $0xf70] sm:$0xff]
    %v573 = vld [vmem:[#allocation3 + $0xf78] sm:$0xff]
    %v574 = vld [vmem:[#allocation3 + $0xf80] sm:$0xff]
    %v575 = vld [vmem:[#allocation3 + $0xf88] sm:$0xff]
    %v576 = vld [vmem:[#allocation3 + $0xf90] sm:$0xff]
    %v577 = vld [vmem:[#allocation3 + $0xf98] sm:$0xff]
    %v578 = vld [vmem:[#allocation3 + $0xfa0] sm:$0xff]
    %v579 = vld [vmem:[#allocation3 + $0xfa8] sm:$0xff]
    %v580 = vld [vmem:[#allocation3 + $0xfb0] sm:$0xff]
    %v581 = vld [vmem:[#allocation3 + $0xfb8] sm:$0xff]
    %v582 = vld [vmem:[#allocation3 + $0xfc0] sm:$0xff]
    %v583 = vld [vmem:[#allocation3 + $0xfc8] sm:$0xff]
    %v584 = vld [vmem:[#allocation3 + $0xfd0] sm:$0xff]
    %v585 = vld [vmem:[#allocation3 + $0xfd8] sm:$0xff]
    %v586 = vld [vmem:[#allocation3 + $0xfe0] sm:$0xff]
    %v587 = vld [vmem:[#allocation3 + $0xfe8] sm:$0xff]
    %v588 = vld [vmem:[#allocation3 + $0xff0] sm:$0xff]
    %v589 = vld [vmem:[#allocation3 + $0xff8] sm:$0xff]
    %v590 = vld [vmem:[#allocation6] sm:$0xff]
    %v591 = vld [vmem:[#allocation6 + $0x8] sm:$0xff]
    %v592 = vld [vmem:[#allocation6 + $0x10] sm:$0xff]
    %v593 = vld [vmem:[#allocation6 + $0x18] sm:$0xff]
    %v594 = vld [vmem:[#allocation6 + $0x20] sm:$0xff]
    %v595 = vld [vmem:[#allocation6 + $0x28] sm:$0xff]
    %v596 = vld [vmem:[#allocation6 + $0x30] sm:$0xff]
    %v597 = vld [vmem:[#allocation6 + $0x38] sm:$0xff]
    %v598 = vld [vmem:[#allocation6 + $0x40] sm:$0xff]
    %v599 = vld [vmem:[#allocation6 + $0x48] sm:$0xff]
    %v600 = vld [vmem:[#allocation6 + $0x50] sm:$0xff]
    %v601 = vld [vmem:[#allocation6 + $0x58] sm:$0xff]
    %v602 = vld [vmem:[#allocation6 + $0x60] sm:$0xff]
    %v603 = vld [vmem:[#allocation6 + $0x68] sm:$0xff]
    %v604 = vld [vmem:[#allocation6 + $0x70] sm:$0xff]
    %v605 = vld [vmem:[#allocation6 + $0x78] sm:$0xff]
    %v606 = vld [vmem:[#allocation6 + $0x80] sm:$0xff]
    %v607 = vld [vmem:[#allocation6 + $0x88] sm:$0xff]
    %v608 = vld [vmem:[#allocation6 + $0x90] sm:$0xff]
    %v609 = vld [vmem:[#allocation6 + $0x98] sm:$0xff]
    %v610 = vld [vmem:[#allocation6 + $0xa0] sm:$0xff]
    %v611 = vld [vmem:[#allocation6 + $0xa8] sm:$0xff]
    %v612 = vld [vmem:[#allocation6 + $0xb0] sm:$0xff]
    %v613 = vld [vmem:[#allocation6 + $0xb8] sm:$0xff]
    %v614 = vld [vmem:[#allocation6 + $0xc0] sm:$0xff]
    %v615 = vld [vmem:[#allocation6 + $0xc8] sm:$0xff]
    %v616 = vld [vmem:[#allocation6 + $0xd0] sm:$0xff]
    %v617 = vld [vmem:[#allocation6 + $0xd8] sm:$0xff]
    %v618 = vld [vmem:[#allocation6 + $0xe0] sm:$0xff]
    %v619 = vld [vmem:[#allocation6 + $0xe8] sm:$0xff]
    %v620 = vld [vmem:[#allocation6 + $0xf0] sm:$0xff]
    %v621 = vld [vmem:[#allocation6 + $0xf8] sm:$0xff]
    %v622 = vld [vmem:[#allocation6 + $0x100] sm:$0xff]
    %v623 = vld [vmem:[#allocation6 + $0x108] sm:$0xff]
    %v624 = vld [vmem:[#allocation6 + $0x110] sm:$0xff]
    %v625 = vld [vmem:[#allocation6 + $0x118] sm:$0xff]
    %v626 = vld [vmem:[#allocation6 + $0x120] sm:$0xff]
    %v627 = vld [vmem:[#allocation6 + $0x128] sm:$0xff]
    %v628 = vld [vmem:[#allocation6 + $0x130] sm:$0xff]
    %v629 = vld [vmem:[#allocation6 + $0x138] sm:$0xff]
    %v630 = vld [vmem:[#allocation6 + $0x140] sm:$0xff]
    %v631 = vld [vmem:[#allocation6 + $0x148] sm:$0xff]
    %v632 = vld [vmem:[#allocation6 + $0x150] sm:$0xff]
    %v633 = vld [vmem:[#allocation6 + $0x158] sm:$0xff]
    %v634 = vld [vmem:[#allocation6 + $0x160] sm:$0xff]
    %v635 = vld [vmem:[#allocation6 + $0x168] sm:$0xff]
    %v636 = vld [vmem:[#allocation6 + $0x170] sm:$0xff]
    %v637 = vld [vmem:[#allocation6 + $0x178] sm:$0xff]
    %v638 = vld [vmem:[#allocation6 + $0x180] sm:$0xff]
    %v639 = vld [vmem:[#allocation6 + $0x188] sm:$0xff]
    %v640 = vld [vmem:[#allocation6 + $0x190] sm:$0xff]
    %v641 = vld [vmem:[#allocation6 + $0x198] sm:$0xff]
    %v642 = vld [vmem:[#allocation6 + $0x1a0] sm:$0xff]
    %v643 = vld [vmem:[#allocation6 + $0x1a8] sm:$0xff]
    %v644 = vld [vmem:[#allocation6 + $0x1b0] sm:$0xff]
    %v645 = vld [vmem:[#allocation6 + $0x1b8] sm:$0xff]
    %v646 = vld [vmem:[#allocation6 + $0x1c0] sm:$0xff]
    %v647 = vld [vmem:[#allocation6 + $0x1c8] sm:$0xff]
    %v648 = vld [vmem:[#allocation6 + $0x1d0] sm:$0xff]
    %v649 = vld [vmem:[#allocation6 + $0x1d8] sm:$0xff]
    %v650 = vld [vmem:[#allocation6 + $0x1e0] sm:$0xff]
    %v651 = vld [vmem:[#allocation6 + $0x1e8] sm:$0xff]
    %v652 = vld [vmem:[#allocation6 + $0x1f0] sm:$0xff]
    %v653 = vld [vmem:[#allocation6 + $0x1f8] sm:$0xff]
    %v654 = vld [vmem:[#allocation6 + $0x200] sm:$0xff]
    %v655 = vld [vmem:[#allocation6 + $0x208] sm:$0xff]
    %v656 = vld [vmem:[#allocation6 + $0x210] sm:$0xff]
    %v657 = vld [vmem:[#allocation6 + $0x218] sm:$0xff]
    %v658 = vld [vmem:[#allocation6 + $0x220] sm:$0xff]
    %v659 = vld [vmem:[#allocation6 + $0x228] sm:$0xff]
    %v660 = vld [vmem:[#allocation6 + $0x230] sm:$0xff]
    %v661 = vld [vmem:[#allocation6 + $0x238] sm:$0xff]
    %v662 = vld [vmem:[#allocation6 + $0x240] sm:$0xff]
    %v663 = vld [vmem:[#allocation6 + $0x248] sm:$0xff]
    %v664 = vld [vmem:[#allocation6 + $0x250] sm:$0xff]
    %v665 = vld [vmem:[#allocation6 + $0x258] sm:$0xff]
    %v666 = vld [vmem:[#allocation6 + $0x260] sm:$0xff]
    %v667 = vld [vmem:[#allocation6 + $0x268] sm:$0xff]
    %v668 = vld [vmem:[#allocation6 + $0x270] sm:$0xff]
    %v669 = vld [vmem:[#allocation6 + $0x278] sm:$0xff]
    %v670 = vld [vmem:[#allocation6 + $0x280] sm:$0xff]
    %v671 = vld [vmem:[#allocation6 + $0x288] sm:$0xff]
    %v672 = vld [vmem:[#allocation6 + $0x290] sm:$0xff]
    %v673 = vld [vmem:[#allocation6 + $0x298] sm:$0xff]
    %v674 = vld [vmem:[#allocation6 + $0x2a0] sm:$0xff]
    %v675 = vld [vmem:[#allocation6 + $0x2a8] sm:$0xff]
    %v676 = vld [vmem:[#allocation6 + $0x2b0] sm:$0xff]
    %v677 = vld [vmem:[#allocation6 + $0x2b8] sm:$0xff]
    %v678 = vld [vmem:[#allocation6 + $0x2c0] sm:$0xff]
    %v679 = vld [vmem:[#allocation6 + $0x2c8] sm:$0xff]
    %v680 = vld [vmem:[#allocation6 + $0x2d0] sm:$0xff]
    %v681 = vld [vmem:[#allocation6 + $0x2d8] sm:$0xff]
    %v682 = vld [vmem:[#allocation6 + $0x2e0] sm:$0xff]
    %v683 = vld [vmem:[#allocation6 + $0x2e8] sm:$0xff]
    %v684 = vld [vmem:[#allocation6 + $0x2f0] sm:$0xff]
    %v685 = vld [vmem:[#allocation6 + $0x2f8] sm:$0xff]
    %v686 = vld [vmem:[#allocation6 + $0x300] sm:$0xff]
    %v687 = vld [vmem:[#allocation6 + $0x308] sm:$0xff]
    %v688 = vld [vmem:[#allocation6 + $0x310] sm:$0xff]
    %v689 = vld [vmem:[#allocation6 + $0x318] sm:$0xff]
    %v690 = vld [vmem:[#allocation6 + $0x320] sm:$0xff]
    %v691 = vld [vmem:[#allocation6 + $0x328] sm:$0xff]
    %v692 = vld [vmem:[#allocation6 + $0x330] sm:$0xff]
    %v693 = vld [vmem:[#allocation6 + $0x338] sm:$0xff]
    %v694 = vld [vmem:[#allocation6 + $0x340] sm:$0xff]
    %v695 = vld [vmem:[#allocation6 + $0x348] sm:$0xff]
    %v696 = vld [vmem:[#allocation6 + $0x350] sm:$0xff]
    %v697 = vld [vmem:[#allocation6 + $0x358] sm:$0xff]
    %v698 = vld [vmem:[#allocation6 + $0x360] sm:$0xff]
    %v699 = vld [vmem:[#allocation6 + $0x368] sm:$0xff]
    %v700 = vld [vmem:[#allocation6 + $0x370] sm:$0xff]
    %v701 = vld [vmem:[#allocation6 + $0x378] sm:$0xff]
    %v702 = vld [vmem:[#allocation6 + $0x380] sm:$0xff]
    %v703 = vld [vmem:[#allocation6 + $0x388] sm:$0xff]
    %v704 = vld [vmem:[#allocation6 + $0x390] sm:$0xff]
    %v705 = vld [vmem:[#allocation6 + $0x398] sm:$0xff]
    %v706 = vld [vmem:[#allocation6 + $0x3a0] sm:$0xff]
    %v707 = vld [vmem:[#allocation6 + $0x3a8] sm:$0xff]
    %v708 = vld [vmem:[#allocation6 + $0x3b0] sm:$0xff]
    %v709 = vld [vmem:[#allocation6 + $0x3b8] sm:$0xff]
    %v710 = vld [vmem:[#allocation6 + $0x3c0] sm:$0xff]
    %v711 = vld [vmem:[#allocation6 + $0x3c8] sm:$0xff]
    %v712 = vld [vmem:[#allocation6 + $0x3d0] sm:$0xff]
    %v713 = vld [vmem:[#allocation6 + $0x3d8] sm:$0xff]
    %v714 = vld [vmem:[#allocation6 + $0x3e0] sm:$0xff]
    %v715 = vld [vmem:[#allocation6 + $0x3e8] sm:$0xff]
    %v716 = vld [vmem:[#allocation6 + $0x3f0] sm:$0xff]
    %v717 = vld [vmem:[#allocation6 + $0x3f8] sm:$0xff]
    %v718 = vld [vmem:[#allocation6 + $0x400] sm:$0xff]
    %v719 = vld [vmem:[#allocation6 + $0x408] sm:$0xff]
    %v720 = vld [vmem:[#allocation6 + $0x410] sm:$0xff]
    %v721 = vld [vmem:[#allocation6 + $0x418] sm:$0xff]
    %v722 = vld [vmem:[#allocation6 + $0x420] sm:$0xff]
    %v723 = vld [vmem:[#allocation6 + $0x428] sm:$0xff]
    %v724 = vld [vmem:[#allocation6 + $0x430] sm:$0xff]
    %v725 = vld [vmem:[#allocation6 + $0x438] sm:$0xff]
    %v726 = vld [vmem:[#allocation6 + $0x440] sm:$0xff]
    %v727 = vld [vmem:[#allocation6 + $0x448] sm:$0xff]
    %v728 = vld [vmem:[#allocation6 + $0x450] sm:$0xff]
    %v729 = vld [vmem:[#allocation6 + $0x458] sm:$0xff]
    %v730 = vld [vmem:[#allocation6 + $0x460] sm:$0xff]
    %v731 = vld [vmem:[#allocation6 + $0x468] sm:$0xff]
    %v732 = vld [vmem:[#allocation6 + $0x470] sm:$0xff]
    %v733 = vld [vmem:[#allocation6 + $0x478] sm:$0xff]
    %v734 = vld [vmem:[#allocation6 + $0x480] sm:$0xff]
    %v735 = vld [vmem:[#allocation6 + $0x488] sm:$0xff]
    %v736 = vld [vmem:[#allocation6 + $0x490] sm:$0xff]
    %v737 = vld [vmem:[#allocation6 + $0x498] sm:$0xff]
    %v738 = vld [vmem:[#allocation6 + $0x4a0] sm:$0xff]
    %v739 = vld [vmem:[#allocation6 + $0x4a8] sm:$0xff]
    %v740 = vld [vmem:[#allocation6 + $0x4b0] sm:$0xff]
    %v741 = vld [vmem:[#allocation6 + $0x4b8] sm:$0xff]
    %v742 = vld [vmem:[#allocation6 + $0x4c0] sm:$0xff]
    %v743 = vld [vmem:[#allocation6 + $0x4c8] sm:$0xff]
    %v744 = vld [vmem:[#allocation6 + $0x4d0] sm:$0xff]
    %v745 = vld [vmem:[#allocation6 + $0x4d8] sm:$0xff]
    %v746 = vld [vmem:[#allocation6 + $0x4e0] sm:$0xff]
    %v747 = vld [vmem:[#allocation6 + $0x4e8] sm:$0xff]
    %v748 = vld [vmem:[#allocation6 + $0x4f0] sm:$0xff]
    %v749 = vld [vmem:[#allocation6 + $0x4f8] sm:$0xff]
    %v750 = vld [vmem:[#allocation6 + $0x500] sm:$0xff]
    %v751 = vld [vmem:[#allocation6 + $0x508] sm:$0xff]
    %v752 = vld [vmem:[#allocation6 + $0x510] sm:$0xff]
    %v753 = vld [vmem:[#allocation6 + $0x518] sm:$0xff]
    %v754 = vld [vmem:[#allocation6 + $0x520] sm:$0xff]
    %v755 = vld [vmem:[#allocation6 + $0x528] sm:$0xff]
    %v756 = vld [vmem:[#allocation6 + $0x530] sm:$0xff]
    %v757 = vld [vmem:[#allocation6 + $0x538] sm:$0xff]
    %v758 = vld [vmem:[#allocation6 + $0x540] sm:$0xff]
    %v759 = vld [vmem:[#allocation6 + $0x548] sm:$0xff]
    %v760 = vld [vmem:[#allocation6 + $0x550] sm:$0xff]
    %v761 = vld [vmem:[#allocation6 + $0x558] sm:$0xff]
    %v762 = vld [vmem:[#allocation6 + $0x560] sm:$0xff]
    %v763 = vld [vmem:[#allocation6 + $0x568] sm:$0xff]
    %v764 = vld [vmem:[#allocation6 + $0x570] sm:$0xff]
    %v765 = vld [vmem:[#allocation6 + $0x578] sm:$0xff]
    %v766 = vld [vmem:[#allocation6 + $0x580] sm:$0xff]
    %v767 = vld [vmem:[#allocation6 + $0x588] sm:$0xff]
    %v768 = vld [vmem:[#allocation6 + $0x590] sm:$0xff]
    %v769 = vld [vmem:[#allocation6 + $0x598] sm:$0xff]
    %v770 = vld [vmem:[#allocation6 + $0x5a0] sm:$0xff]
    %v771 = vld [vmem:[#allocation6 + $0x5a8] sm:$0xff]
    %v772 = vld [vmem:[#allocation6 + $0x5b0] sm:$0xff]
    %v773 = vld [vmem:[#allocation6 + $0x5b8] sm:$0xff]
    %v774 = vld [vmem:[#allocation6 + $0x5c0] sm:$0xff]
    %v775 = vld [vmem:[#allocation6 + $0x5c8] sm:$0xff]
    %v776 = vld [vmem:[#allocation6 + $0x5d0] sm:$0xff]
    %v777 = vld [vmem:[#allocation6 + $0x5d8] sm:$0xff]
    %v778 = vld [vmem:[#allocation6 + $0x5e0] sm:$0xff]
    %v779 = vld [vmem:[#allocation6 + $0x5e8] sm:$0xff]
    %v780 = vld [vmem:[#allocation6 + $0x5f0] sm:$0xff]
    %v781 = vld [vmem:[#allocation6 + $0x5f8] sm:$0xff]
    %v782 = vld [vmem:[#allocation6 + $0x600] sm:$0xff]
    %v783 = vld [vmem:[#allocation6 + $0x608] sm:$0xff]
    %v784 = vld [vmem:[#allocation6 + $0x610] sm:$0xff]
    %v785 = vld [vmem:[#allocation6 + $0x618] sm:$0xff]
    %v786 = vld [vmem:[#allocation6 + $0x620] sm:$0xff]
    %v787 = vld [vmem:[#allocation6 + $0x628] sm:$0xff]
    %v788 = vld [vmem:[#allocation6 + $0x630] sm:$0xff]
    %v789 = vld [vmem:[#allocation6 + $0x638] sm:$0xff]
    %v790 = vld [vmem:[#allocation6 + $0x640] sm:$0xff]
    %v791 = vld [vmem:[#allocation6 + $0x648] sm:$0xff]
    %v792 = vld [vmem:[#allocation6 + $0x650] sm:$0xff]
    %v793 = vld [vmem:[#allocation6 + $0x658] sm:$0xff]
    %v794 = vld [vmem:[#allocation6 + $0x660] sm:$0xff]
    %v795 = vld [vmem:[#allocation6 + $0x668] sm:$0xff]
    %v796 = vld [vmem:[#allocation6 + $0x670] sm:$0xff]
    %v797 = vld [vmem:[#allocation6 + $0x678] sm:$0xff]
    %v798 = vld [vmem:[#allocation6 + $0x680] sm:$0xff]
    %v799 = vld [vmem:[#allocation6 + $0x688] sm:$0xff]
    %v800 = vld [vmem:[#allocation6 + $0x690] sm:$0xff]
    %v801 = vld [vmem:[#allocation6 + $0x698] sm:$0xff]
    %v802 = vld [vmem:[#allocation6 + $0x6a0] sm:$0xff]
    %v803 = vld [vmem:[#allocation6 + $0x6a8] sm:$0xff]
    %v804 = vld [vmem:[#allocation6 + $0x6b0] sm:$0xff]
    %v805 = vld [vmem:[#allocation6 + $0x6b8] sm:$0xff]
    %v806 = vld [vmem:[#allocation6 + $0x6c0] sm:$0xff]
    %v807 = vld [vmem:[#allocation6 + $0x6c8] sm:$0xff]
    %v808 = vld [vmem:[#allocation6 + $0x6d0] sm:$0xff]
    %v809 = vld [vmem:[#allocation6 + $0x6d8] sm:$0xff]
    %v810 = vld [vmem:[#allocation6 + $0x6e0] sm:$0xff]
    %v811 = vld [vmem:[#allocation6 + $0x6e8] sm:$0xff]
    %v812 = vld [vmem:[#allocation6 + $0x6f0] sm:$0xff]
    %v813 = vld [vmem:[#allocation6 + $0x6f8] sm:$0xff]
    %v814 = vld [vmem:[#allocation6 + $0x700] sm:$0xff]
    %v815 = vld [vmem:[#allocation6 + $0x708] sm:$0xff]
    %v816 = vld [vmem:[#allocation6 + $0x710] sm:$0xff]
    %v817 = vld [vmem:[#allocation6 + $0x718] sm:$0xff]
    %v818 = vld [vmem:[#allocation6 + $0x720] sm:$0xff]
    %v819 = vld [vmem:[#allocation6 + $0x728] sm:$0xff]
    %v820 = vld [vmem:[#allocation6 + $0x730] sm:$0xff]
    %v821 = vld [vmem:[#allocation6 + $0x738] sm:$0xff]
    %v822 = vld [vmem:[#allocation6 + $0x740] sm:$0xff]
    %v823 = vld [vmem:[#allocation6 + $0x748] sm:$0xff]
    %v824 = vld [vmem:[#allocation6 + $0x750] sm:$0xff]
    %v825 = vld [vmem:[#allocation6 + $0x758] sm:$0xff]
    %v826 = vld [vmem:[#allocation6 + $0x760] sm:$0xff]
    %v827 = vld [vmem:[#allocation6 + $0x768] sm:$0xff]
    %v828 = vld [vmem:[#allocation6 + $0x770] sm:$0xff]
    %v829 = vld [vmem:[#allocation6 + $0x778] sm:$0xff]
    %v830 = vld [vmem:[#allocation6 + $0x780] sm:$0xff]
    %v831 = vld [vmem:[#allocation6 + $0x788] sm:$0xff]
    %v832 = vld [vmem:[#allocation6 + $0x790] sm:$0xff]
    %v833 = vld [vmem:[#allocation6 + $0x798] sm:$0xff]
    %v834 = vld [vmem:[#allocation6 + $0x7a0] sm:$0xff]
    %v835 = vld [vmem:[#allocation6 + $0x7a8] sm:$0xff]
    %v836 = vld [vmem:[#allocation6 + $0x7b0] sm:$0xff]
    %v837 = vld [vmem:[#allocation6 + $0x7b8] sm:$0xff]
    %v838 = vld [vmem:[#allocation6 + $0x7c0] sm:$0xff]
    %v839 = vld [vmem:[#allocation6 + $0x7c8] sm:$0xff]
    %v840 = vld [vmem:[#allocation6 + $0x7d0] sm:$0xff]
    %v841 = vld [vmem:[#allocation6 + $0x7d8] sm:$0xff]
    %v842 = vld [vmem:[#allocation6 + $0x7e0] sm:$0xff]
    %v843 = vld [vmem:[#allocation6 + $0x7e8] sm:$0xff]
    %v844 = vld [vmem:[#allocation6 + $0x7f0] sm:$0xff]
    %v845 = vld [vmem:[#allocation6 + $0x7f8] sm:$0xff]
    %v846 = vld [vmem:[#allocation6 + $0x800] sm:$0xff]
    %v847 = vld [vmem:[#allocation6 + $0x808] sm:$0xff]
    %v848 = vld [vmem:[#allocation6 + $0x810] sm:$0xff]
    %v849 = vld [vmem:[#allocation6 + $0x818] sm:$0xff]
    %v850 = vld [vmem:[#allocation6 + $0x820] sm:$0xff]
    %v851 = vld [vmem:[#allocation6 + $0x828] sm:$0xff]
    %v852 = vld [vmem:[#allocation6 + $0x830] sm:$0xff]
    %v853 = vld [vmem:[#allocation6 + $0x838] sm:$0xff]
    %v854 = vld [vmem:[#allocation6 + $0x840] sm:$0xff]
    %v855 = vld [vmem:[#allocation6 + $0x848] sm:$0xff]
    %v856 = vld [vmem:[#allocation6 + $0x850] sm:$0xff]
    %v857 = vld [vmem:[#allocation6 + $0x858] sm:$0xff]
    %v858 = vld [vmem:[#allocation6 + $0x860] sm:$0xff]
    %v859 = vld [vmem:[#allocation6 + $0x868] sm:$0xff]
    %v860 = vld [vmem:[#allocation6 + $0x870] sm:$0xff]
    %v861 = vld [vmem:[#allocation6 + $0x878] sm:$0xff]
    %v862 = vld [vmem:[#allocation6 + $0x880] sm:$0xff]
    %v863 = vld [vmem:[#allocation6 + $0x888] sm:$0xff]
    %v864 = vld [vmem:[#allocation6 + $0x890] sm:$0xff]
    %v865 = vld [vmem:[#allocation6 + $0x898] sm:$0xff]
    %v866 = vld [vmem:[#allocation6 + $0x8a0] sm:$0xff]
    %v867 = vld [vmem:[#allocation6 + $0x8a8] sm:$0xff]
    %v868 = vld [vmem:[#allocation6 + $0x8b0] sm:$0xff]
    %v869 = vld [vmem:[#allocation6 + $0x8b8] sm:$0xff]
    %v870 = vld [vmem:[#allocation6 + $0x8c0] sm:$0xff]
    %v871 = vld [vmem:[#allocation6 + $0x8c8] sm:$0xff]
    %v872 = vld [vmem:[#allocation6 + $0x8d0] sm:$0xff]
    %v873 = vld [vmem:[#allocation6 + $0x8d8] sm:$0xff]
    %v874 = vld [vmem:[#allocation6 + $0x8e0] sm:$0xff]
    %v875 = vld [vmem:[#allocation6 + $0x8e8] sm:$0xff]
    %v876 = vld [vmem:[#allocation6 + $0x8f0] sm:$0xff]
    %v877 = vld [vmem:[#allocation6 + $0x8f8] sm:$0xff]
    %v878 = vld [vmem:[#allocation6 + $0x900] sm:$0xff]
    %v879 = vld [vmem:[#allocation6 + $0x908] sm:$0xff]
    %v880 = vld [vmem:[#allocation6 + $0x910] sm:$0xff]
    %v881 = vld [vmem:[#allocation6 + $0x918] sm:$0xff]
    %v882 = vld [vmem:[#allocation6 + $0x920] sm:$0xff]
    %v883 = vld [vmem:[#allocation6 + $0x928] sm:$0xff]
    %v884 = vld [vmem:[#allocation6 + $0x930] sm:$0xff]
    %v885 = vld [vmem:[#allocation6 + $0x938] sm:$0xff]
    %v886 = vld [vmem:[#allocation6 + $0x940] sm:$0xff]
    %v887 = vld [vmem:[#allocation6 + $0x948] sm:$0xff]
    %v888 = vld [vmem:[#allocation6 + $0x950] sm:$0xff]
    %v889 = vld [vmem:[#allocation6 + $0x958] sm:$0xff]
    %v890 = vld [vmem:[#allocation6 + $0x960] sm:$0xff]
    %v891 = vld [vmem:[#allocation6 + $0x968] sm:$0xff]
    %v892 = vld [vmem:[#allocation6 + $0x970] sm:$0xff]
    %v893 = vld [vmem:[#allocation6 + $0x978] sm:$0xff]
    %v894 = vld [vmem:[#allocation6 + $0x980] sm:$0xff]
    %v895 = vld [vmem:[#allocation6 + $0x988] sm:$0xff]
    %v896 = vld [vmem:[#allocation6 + $0x990] sm:$0xff]
    %v897 = vld [vmem:[#allocation6 + $0x998] sm:$0xff]
    %v898 = vld [vmem:[#allocation6 + $0x9a0] sm:$0xff]
    %v899 = vld [vmem:[#allocation6 + $0x9a8] sm:$0xff]
    %v900 = vld [vmem:[#allocation6 + $0x9b0] sm:$0xff]
    %v901 = vld [vmem:[#allocation6 + $0x9b8] sm:$0xff]
    %v902 = vld [vmem:[#allocation6 + $0x9c0] sm:$0xff]
    %v903 = vld [vmem:[#allocation6 + $0x9c8] sm:$0xff]
    %v904 = vld [vmem:[#allocation6 + $0x9d0] sm:$0xff]
    %v905 = vld [vmem:[#allocation6 + $0x9d8] sm:$0xff]
    %v906 = vld [vmem:[#allocation6 + $0x9e0] sm:$0xff]
    %v907 = vld [vmem:[#allocation6 + $0x9e8] sm:$0xff]
    %v908 = vld [vmem:[#allocation6 + $0x9f0] sm:$0xff]
    %v909 = vld [vmem:[#allocation6 + $0x9f8] sm:$0xff]
    %v910 = vld [vmem:[#allocation6 + $0xa00] sm:$0xff]
    %v911 = vld [vmem:[#allocation6 + $0xa08] sm:$0xff]
    %v912 = vld [vmem:[#allocation6 + $0xa10] sm:$0xff]
    %v913 = vld [vmem:[#allocation6 + $0xa18] sm:$0xff]
    %v914 = vld [vmem:[#allocation6 + $0xa20] sm:$0xff]
    %v915 = vld [vmem:[#allocation6 + $0xa28] sm:$0xff]
    %v916 = vld [vmem:[#allocation6 + $0xa30] sm:$0xff]
    %v917 = vld [vmem:[#allocation6 + $0xa38] sm:$0xff]
    %v918 = vld [vmem:[#allocation6 + $0xa40] sm:$0xff]
    %v919 = vld [vmem:[#allocation6 + $0xa48] sm:$0xff]
    %v920 = vld [vmem:[#allocation6 + $0xa50] sm:$0xff]
    %v921 = vld [vmem:[#allocation6 + $0xa58] sm:$0xff]
    %v922 = vld [vmem:[#allocation6 + $0xa60] sm:$0xff]
    %v923 = vld [vmem:[#allocation6 + $0xa68] sm:$0xff]
    %v924 = vld [vmem:[#allocation6 + $0xa70] sm:$0xff]
    %v925 = vld [vmem:[#allocation6 + $0xa78] sm:$0xff]
    %v926 = vld [vmem:[#allocation6 + $0xa80] sm:$0xff]
    %v927 = vld [vmem:[#allocation6 + $0xa88] sm:$0xff]
    %v928 = vld [vmem:[#allocation6 + $0xa90] sm:$0xff]
    %v929 = vld [vmem:[#allocation6 + $0xa98] sm:$0xff]
    %v930 = vld [vmem:[#allocation6 + $0xaa0] sm:$0xff]
    %v931 = vld [vmem:[#allocation6 + $0xaa8] sm:$0xff]
    %v932 = vld [vmem:[#allocation6 + $0xab0] sm:$0xff]
    %v933 = vld [vmem:[#allocation6 + $0xab8] sm:$0xff]
    %v934 = vld [vmem:[#allocation6 + $0xac0] sm:$0xff]
    %v935 = vld [vmem:[#allocation6 + $0xac8] sm:$0xff]
    %v936 = vld [vmem:[#allocation6 + $0xad0] sm:$0xff]
    %v937 = vld [vmem:[#allocation6 + $0xad8] sm:$0xff]
    %v938 = vld [vmem:[#allocation6 + $0xae0] sm:$0xff]
    %v939 = vld [vmem:[#allocation6 + $0xae8] sm:$0xff]
    %v940 = vld [vmem:[#allocation6 + $0xaf0] sm:$0xff]
    %v941 = vld [vmem:[#allocation6 + $0xaf8] sm:$0xff]
    %v942 = vld [vmem:[#allocation6 + $0xb00] sm:$0xff]
    %v943 = vld [vmem:[#allocation6 + $0xb08] sm:$0xff]
    %v944 = vld [vmem:[#allocation6 + $0xb10] sm:$0xff]
    %v945 = vld [vmem:[#allocation6 + $0xb18] sm:$0xff]
    %v946 = vld [vmem:[#allocation6 + $0xb20] sm:$0xff]
    %v947 = vld [vmem:[#allocation6 + $0xb28] sm:$0xff]
    %v948 = vld [vmem:[#allocation6 + $0xb30] sm:$0xff]
    %v949 = vld [vmem:[#allocation6 + $0xb38] sm:$0xff]
    %v950 = vld [vmem:[#allocation6 + $0xb40] sm:$0xff]
    %v951 = vld [vmem:[#allocation6 + $0xb48] sm:$0xff]
    %v952 = vld [vmem:[#allocation6 + $0xb50] sm:$0xff]
    %v953 = vld [vmem:[#allocation6 + $0xb58] sm:$0xff]
    %v954 = vld [vmem:[#allocation6 + $0xb60] sm:$0xff]
    %v955 = vld [vmem:[#allocation6 + $0xb68] sm:$0xff]
    %v956 = vld [vmem:[#allocation6 + $0xb70] sm:$0xff]
    %v957 = vld [vmem:[#allocation6 + $0xb78] sm:$0xff]
    %v958 = vld [vmem:[#allocation6 + $0xb80] sm:$0xff]
    %v959 = vld [vmem:[#allocation6 + $0xb88] sm:$0xff]
    %v960 = vld [vmem:[#allocation6 + $0xb90] sm:$0xff]
    %v961 = vld [vmem:[#allocation6 + $0xb98] sm:$0xff]
    %v962 = vld [vmem:[#allocation6 + $0xba0] sm:$0xff]
    %v963 = vld [vmem:[#allocation6 + $0xba8] sm:$0xff]
    %v964 = vld [vmem:[#allocation6 + $0xbb0] sm:$0xff]
    %v965 = vld [vmem:[#allocation6 + $0xbb8] sm:$0xff]
    %v966 = vld [vmem:[#allocation6 + $0xbc0] sm:$0xff]
    %v967 = vld [vmem:[#allocation6 + $0xbc8] sm:$0xff]
    %v968 = vld [vmem:[#allocation6 + $0xbd0] sm:$0xff]
    %v969 = vld [vmem:[#allocation6 + $0xbd8] sm:$0xff]
    %v970 = vld [vmem:[#allocation6 + $0xbe0] sm:$0xff]
    %v971 = vld [vmem:[#allocation6 + $0xbe8] sm:$0xff]
    %v972 = vld [vmem:[#allocation6 + $0xbf0] sm:$0xff]
    %v973 = vld [vmem:[#allocation6 + $0xbf8] sm:$0xff]
    %v974 = vld [vmem:[#allocation6 + $0xc00] sm:$0xff]
    %v975 = vld [vmem:[#allocation6 + $0xc08] sm:$0xff]
    %v976 = vld [vmem:[#allocation6 + $0xc10] sm:$0xff]
    %v977 = vld [vmem:[#allocation6 + $0xc18] sm:$0xff]
    %v978 = vld [vmem:[#allocation6 + $0xc20] sm:$0xff]
    %v979 = vld [vmem:[#allocation6 + $0xc28] sm:$0xff]
    %v980 = vld [vmem:[#allocation6 + $0xc30] sm:$0xff]
    %v981 = vld [vmem:[#allocation6 + $0xc38] sm:$0xff]
    %v982 = vld [vmem:[#allocation6 + $0xc40] sm:$0xff]
    %v983 = vld [vmem:[#allocation6 + $0xc48] sm:$0xff]
    %v984 = vld [vmem:[#allocation6 + $0xc50] sm:$0xff]
    %v985 = vld [vmem:[#allocation6 + $0xc58] sm:$0xff]
    %v986 = vld [vmem:[#allocation6 + $0xc60] sm:$0xff]
    %v987 = vld [vmem:[#allocation6 + $0xc68] sm:$0xff]
    %v988 = vld [vmem:[#allocation6 + $0xc70] sm:$0xff]
    %v989 = vld [vmem:[#allocation6 + $0xc78] sm:$0xff]
    %v990 = vld [vmem:[#allocation6 + $0xc80] sm:$0xff]
    %v991 = vld [vmem:[#allocation6 + $0xc88] sm:$0xff]
    %v992 = vld [vmem:[#allocation6 + $0xc90] sm:$0xff]
    %v993 = vld [vmem:[#allocation6 + $0xc98] sm:$0xff]
    %v994 = vld [vmem:[#allocation6 + $0xca0] sm:$0xff]
    %v995 = vld [vmem:[#allocation6 + $0xca8] sm:$0xff]
    %v996 = vld [vmem:[#allocation6 + $0xcb0] sm:$0xff]
    %v997 = vld [vmem:[#allocation6 + $0xcb8] sm:$0xff]
    %v998 = vld [vmem:[#allocation6 + $0xcc0] sm:$0xff]
    %v999 = vld [vmem:[#allocation6 + $0xcc8] sm:$0xff]
    %v1000 = vld [vmem:[#allocation6 + $0xcd0] sm:$0xff]
    %v1001 = vld [vmem:[#allocation6 + $0xcd8] sm:$0xff]
    %v1002 = vld [vmem:[#allocation6 + $0xce0] sm:$0xff]
    %v1003 = vld [vmem:[#allocation6 + $0xce8] sm:$0xff]
    %v1004 = vld [vmem:[#allocation6 + $0xcf0] sm:$0xff]
    %v1005 = vld [vmem:[#allocation6 + $0xcf8] sm:$0xff]
    %v1006 = vld [vmem:[#allocation6 + $0xd00] sm:$0xff]
    %v1007 = vld [vmem:[#allocation6 + $0xd08] sm:$0xff]
    %v1008 = vld [vmem:[#allocation6 + $0xd10] sm:$0xff]
    %v1009 = vld [vmem:[#allocation6 + $0xd18] sm:$0xff]
    %v1010 = vld [vmem:[#allocation6 + $0xd20] sm:$0xff]
    %v1011 = vld [vmem:[#allocation6 + $0xd28] sm:$0xff]
    %v1012 = vld [vmem:[#allocation6 + $0xd30] sm:$0xff]
    %v1013 = vld [vmem:[#allocation6 + $0xd38] sm:$0xff]
    %v1014 = vld [vmem:[#allocation6 + $0xd40] sm:$0xff]
    %v1015 = vld [vmem:[#allocation6 + $0xd48] sm:$0xff]
    %v1016 = vld [vmem:[#allocation6 + $0xd50] sm:$0xff]
    %v1017 = vld [vmem:[#allocation6 + $0xd58] sm:$0xff]
    %v1018 = vld [vmem:[#allocation6 + $0xd60] sm:$0xff]
    %v1019 = vld [vmem:[#allocation6 + $0xd68] sm:$0xff]
    %v1020 = vld [vmem:[#allocation6 + $0xd70] sm:$0xff]
    %v1021 = vld [vmem:[#allocation6 + $0xd78] sm:$0xff]
    %v1022 = vld [vmem:[#allocation6 + $0xd80] sm:$0xff]
    %v1023 = vld [vmem:[#allocation6 + $0xd88] sm:$0xff]
    %v1024 = vld [vmem:[#allocation6 + $0xd90] sm:$0xff]
    %v1025 = vld [vmem:[#allocation6 + $0xd98] sm:$0xff]
    %v1026 = vld [vmem:[#allocation6 + $0xda0] sm:$0xff]
    %v1027 = vld [vmem:[#allocation6 + $0xda8] sm:$0xff]
    %v1028 = vld [vmem:[#allocation6 + $0xdb0] sm:$0xff]
    %v1029 = vld [vmem:[#allocation6 + $0xdb8] sm:$0xff]
    %v1030 = vld [vmem:[#allocation6 + $0xdc0] sm:$0xff]
    %v1031 = vld [vmem:[#allocation6 + $0xdc8] sm:$0xff]
    %v1032 = vld [vmem:[#allocation6 + $0xdd0] sm:$0xff]
    %v1033 = vld [vmem:[#allocation6 + $0xdd8] sm:$0xff]
    %v1034 = vld [vmem:[#allocation6 + $0xde0] sm:$0xff]
    %v1035 = vld [vmem:[#allocation6 + $0xde8] sm:$0xff]
    %v1036 = vld [vmem:[#allocation6 + $0xdf0] sm:$0xff]
    %v1037 = vld [vmem:[#allocation6 + $0xdf8] sm:$0xff]
    %v1038 = vld [vmem:[#allocation6 + $0xe00] sm:$0xff]
    %v1039 = vld [vmem:[#allocation6 + $0xe08] sm:$0xff]
    %v1040 = vld [vmem:[#allocation6 + $0xe10] sm:$0xff]
    %v1041 = vld [vmem:[#allocation6 + $0xe18] sm:$0xff]
    %v1042 = vld [vmem:[#allocation6 + $0xe20] sm:$0xff]
    %v1043 = vld [vmem:[#allocation6 + $0xe28] sm:$0xff]
    %v1044 = vld [vmem:[#allocation6 + $0xe30] sm:$0xff]
    %v1045 = vld [vmem:[#allocation6 + $0xe38] sm:$0xff]
    %v1046 = vld [vmem:[#allocation6 + $0xe40] sm:$0xff]
    %v1047 = vld [vmem:[#allocation6 + $0xe48] sm:$0xff]
    %v1048 = vld [vmem:[#allocation6 + $0xe50] sm:$0xff]
    %v1049 = vld [vmem:[#allocation6 + $0xe58] sm:$0xff]
    %v1050 = vld [vmem:[#allocation6 + $0xe60] sm:$0xff]
    %v1051 = vld [vmem:[#allocation6 + $0xe68] sm:$0xff]
    %v1052 = vld [vmem:[#allocation6 + $0xe70] sm:$0xff]
    %v1053 = vld [vmem:[#allocation6 + $0xe78] sm:$0xff]
    %v1054 = vld [vmem:[#allocation6 + $0xe80] sm:$0xff]
    %v1055 = vld [vmem:[#allocation6 + $0xe88] sm:$0xff]
    %v1056 = vld [vmem:[#allocation6 + $0xe90] sm:$0xff]
    %v1057 = vld [vmem:[#allocation6 + $0xe98] sm:$0xff]
    %v1058 = vld [vmem:[#allocation6 + $0xea0] sm:$0xff]
    %v1059 = vld [vmem:[#allocation6 + $0xea8] sm:$0xff]
    %v1060 = vld [vmem:[#allocation6 + $0xeb0] sm:$0xff]
    %v1061 = vld [vmem:[#allocation6 + $0xeb8] sm:$0xff]
    %v1062 = vld [vmem:[#allocation6 + $0xec0] sm:$0xff]
    %v1063 = vld [vmem:[#allocation6 + $0xec8] sm:$0xff]
    %v1064 = vld [vmem:[#allocation6 + $0xed0] sm:$0xff]
    %v1065 = vld [vmem:[#allocation6 + $0xed8] sm:$0xff]
    %v1066 = vld [vmem:[#allocation6 + $0xee0] sm:$0xff]
    %v1067 = vld [vmem:[#allocation6 + $0xee8] sm:$0xff]
    %v1068 = vld [vmem:[#allocation6 + $0xef0] sm:$0xff]
    %v1069 = vld [vmem:[#allocation6 + $0xef8] sm:$0xff]
    %v1070 = vld [vmem:[#allocation6 + $0xf00] sm:$0xff]
    %v1071 = vld [vmem:[#allocation6 + $0xf08] sm:$0xff]
    %v1072 = vld [vmem:[#allocation6 + $0xf10] sm:$0xff]
    %v1073 = vld [vmem:[#allocation6 + $0xf18] sm:$0xff]
    %v1074 = vld [vmem:[#allocation6 + $0xf20] sm:$0xff]
    %v1075 = vld [vmem:[#allocation6 + $0xf28] sm:$0xff]
    %v1076 = vld [vmem:[#allocation6 + $0xf30] sm:$0xff]
    %v1077 = vld [vmem:[#allocation6 + $0xf38] sm:$0xff]
    %v1078 = vld [vmem:[#allocation6 + $0xf40] sm:$0xff]
    %v1079 = vld [vmem:[#allocation6 + $0xf48] sm:$0xff]
    %v1080 = vld [vmem:[#allocation6 + $0xf50] sm:$0xff]
    %v1081 = vld [vmem:[#allocation6 + $0xf58] sm:$0xff]
    %v1082 = vld [vmem:[#allocation6 + $0xf60] sm:$0xff]
    %v1083 = vld [vmem:[#allocation6 + $0xf68] sm:$0xff]
    %v1084 = vld [vmem:[#allocation6 + $0xf70] sm:$0xff]
    %v1085 = vld [vmem:[#allocation6 + $0xf78] sm:$0xff]
    %v1086 = vld [vmem:[#allocation6 + $0xf80] sm:$0xff]
    %v1087 = vld [vmem:[#allocation6 + $0xf88] sm:$0xff]
    %v1088 = vld [vmem:[#allocation6 + $0xf90] sm:$0xff]
    %v1089 = vld [vmem:[#allocation6 + $0xf98] sm:$0xff]
    %v1090 = vld [vmem:[#allocation6 + $0xfa0] sm:$0xff]
    %v1091 = vld [vmem:[#allocation6 + $0xfa8] sm:$0xff]
    %v1092 = vld [vmem:[#allocation6 + $0xfb0] sm:$0xff]
    %v1093 = vld [vmem:[#allocation6 + $0xfb8] sm:$0xff]
    %v1094 = vld [vmem:[#allocation6 + $0xfc0] sm:$0xff]
    %v1095 = vld [vmem:[#allocation6 + $0xfc8] sm:$0xff]
    %v1096 = vld [vmem:[#allocation6 + $0xfd0] sm:$0xff]
    %v1097 = vld [vmem:[#allocation6 + $0xfd8] sm:$0xff]
    %v1098 = vld [vmem:[#allocation6 + $0xfe0] sm:$0xff]
    %v1099 = vld [vmem:[#allocation6 + $0xfe8] sm:$0xff]
    %v1100 = vld [vmem:[#allocation6 + $0xff0] sm:$0xff]
    %v1101 = vld [vmem:[#allocation6 + $0xff8] sm:$0xff]
    %v1102 = vsub.f32 %v78, %v590
    %v1103 = vsub.f32 %v79, %v591
    %v1104 = vsub.f32 %v80, %v592
    %v1105 = vsub.f32 %v81, %v593
    %v1106 = vsub.f32 %v82, %v594
    %v1107 = vsub.f32 %v83, %v595
    %v1108 = vsub.f32 %v84, %v596
    %v1109 = vsub.f32 %v85, %v597
    %v1110 = vsub.f32 %v86, %v598
    %v1111 = vsub.f32 %v87, %v599
    %v1112 = vsub.f32 %v88, %v600
    %v1113 = vsub.f32 %v89, %v601
    %v1114 = vsub.f32 %v90, %v602
    %v1115 = vsub.f32 %v91, %v603
    %v1116 = vsub.f32 %v92, %v604
    %v1117 = vsub.f32 %v93, %v605
    %v1118 = vsub.f32 %v94, %v606
    %v1119 = vsub.f32 %v95, %v607
    %v1120 = vsub.f32 %v96, %v608
    %v1121 = vsub.f32 %v97, %v609
    %v1122 = vsub.f32 %v98, %v610
    %v1123 = vsub.f32 %v99, %v611
    %v1124 = vsub.f32 %v100, %v612
    %v1125 = vsub.f32 %v101, %v613
    %v1126 = vsub.f32 %v102, %v614
    %v1127 = vsub.f32 %v103, %v615
    %v1128 = vsub.f32 %v104, %v616
    %v1129 = vsub.f32 %v105, %v617
    %v1130 = vsub.f32 %v106, %v618
    %v1131 = vsub.f32 %v107, %v619
    %v1132 = vsub.f32 %v108, %v620
    %v1133 = vsub.f32 %v109, %v621
    %v1134 = vsub.f32 %v110, %v622
    %v1135 = vsub.f32 %v111, %v623
    %v1136 = vsub.f32 %v112, %v624
    %v1137 = vsub.f32 %v113, %v625
    %v1138 = vsub.f32 %v114, %v626
    %v1139 = vsub.f32 %v115, %v627
    %v1140 = vsub.f32 %v116, %v628
    %v1141 = vsub.f32 %v117, %v629
    %v1142 = vsub.f32 %v118, %v630
    %v1143 = vsub.f32 %v119, %v631
    %v1144 = vsub.f32 %v120, %v632
    %v1145 = vsub.f32 %v121, %v633
    %v1146 = vsub.f32 %v122, %v634
    %v1147 = vsub.f32 %v123, %v635
    %v1148 = vsub.f32 %v124, %v636
    %v1149 = vsub.f32 %v125, %v637
    %v1150 = vsub.f32 %v126, %v638
    %v1151 = vsub.f32 %v127, %v639
    %v1152 = vsub.f32 %v128, %v640
    %v1153 = vsub.f32 %v129, %v641
    %v1154 = vsub.f32 %v130, %v642
    %v1155 = vsub.f32 %v131, %v643
    %v1156 = vsub.f32 %v132, %v644
    %v1157 = vsub.f32 %v133, %v645
    %v1158 = vsub.f32 %v134, %v646
    %v1159 = vsub.f32 %v135, %v647
    %v1160 = vsub.f32 %v136, %v648
    %v1161 = vsub.f32 %v137, %v649
    %v1162 = vsub.f32 %v138, %v650
    %v1163 = vsub.f32 %v139, %v651
    %v1164 = vsub.f32 %v140, %v652
    %v1165 = vsub.f32 %v141, %v653
    %v1166 = vsub.f32 %v142, %v654
    %v1167 = vsub.f32 %v143, %v655
    %v1168 = vsub.f32 %v144, %v656
    %v1169 = vsub.f32 %v145, %v657
    %v1170 = vsub.f32 %v146, %v658
    %v1171 = vsub.f32 %v147, %v659
    %v1172 = vsub.f32 %v148, %v660
    %v1173 = vsub.f32 %v149, %v661
    %v1174 = vsub.f32 %v150, %v662
    %v1175 = vsub.f32 %v151, %v663
    %v1176 = vsub.f32 %v152, %v664
    %v1177 = vsub.f32 %v153, %v665
    %v1178 = vsub.f32 %v154, %v666
    %v1179 = vsub.f32 %v155, %v667
    %v1180 = vsub.f32 %v156, %v668
    %v1181 = vsub.f32 %v157, %v669
    %v1182 = vsub.f32 %v158, %v670
    %v1183 = vsub.f32 %v159, %v671
    %v1184 = vsub.f32 %v160, %v672
    %v1185 = vsub.f32 %v161, %v673
    %v1186 = vsub.f32 %v162, %v674
    %v1187 = vsub.f32 %v163, %v675
    %v1188 = vsub.f32 %v164, %v676
    %v1189 = vsub.f32 %v165, %v677
    %v1190 = vsub.f32 %v166, %v678
    %v1191 = vsub.f32 %v167, %v679
    %v1192 = vsub.f32 %v168, %v680
    %v1193 = vsub.f32 %v169, %v681
    %v1194 = vsub.f32 %v170, %v682
    %v1195 = vsub.f32 %v171, %v683
    %v1196 = vsub.f32 %v172, %v684
    %v1197 = vsub.f32 %v173, %v685
    %v1198 = vsub.f32 %v174, %v686
    %v1199 = vsub.f32 %v175, %v687
    %v1200 = vsub.f32 %v176, %v688
    %v1201 = vsub.f32 %v177, %v689
    %v1202 = vsub.f32 %v178, %v690
    %v1203 = vsub.f32 %v179, %v691
    %v1204 = vsub.f32 %v180, %v692
    %v1205 = vsub.f32 %v181, %v693
    %v1206 = vsub.f32 %v182, %v694
    %v1207 = vsub.f32 %v183, %v695
    %v1208 = vsub.f32 %v184, %v696
    %v1209 = vsub.f32 %v185, %v697
    %v1210 = vsub.f32 %v186, %v698
    %v1211 = vsub.f32 %v187, %v699
    %v1212 = vsub.f32 %v188, %v700
    %v1213 = vsub.f32 %v189, %v701
    %v1214 = vsub.f32 %v190, %v702
    %v1215 = vsub.f32 %v191, %v703
    %v1216 = vsub.f32 %v192, %v704
    %v1217 = vsub.f32 %v193, %v705
    %v1218 = vsub.f32 %v194, %v706
    %v1219 = vsub.f32 %v195, %v707
    %v1220 = vsub.f32 %v196, %v708
    %v1221 = vsub.f32 %v197, %v709
    %v1222 = vsub.f32 %v198, %v710
    %v1223 = vsub.f32 %v199, %v711
    %v1224 = vsub.f32 %v200, %v712
    %v1225 = vsub.f32 %v201, %v713
    %v1226 = vsub.f32 %v202, %v714
    %v1227 = vsub.f32 %v203, %v715
    %v1228 = vsub.f32 %v204, %v716
    %v1229 = vsub.f32 %v205, %v717
    %v1230 = vsub.f32 %v206, %v718
    %v1231 = vsub.f32 %v207, %v719
    %v1232 = vsub.f32 %v208, %v720
    %v1233 = vsub.f32 %v209, %v721
    %v1234 = vsub.f32 %v210, %v722
    %v1235 = vsub.f32 %v211, %v723
    %v1236 = vsub.f32 %v212, %v724
    %v1237 = vsub.f32 %v213, %v725
    %v1238 = vsub.f32 %v214, %v726
    %v1239 = vsub.f32 %v215, %v727
    %v1240 = vsub.f32 %v216, %v728
    %v1241 = vsub.f32 %v217, %v729
    %v1242 = vsub.f32 %v218, %v730
    %v1243 = vsub.f32 %v219, %v731
    %v1244 = vsub.f32 %v220, %v732
    %v1245 = vsub.f32 %v221, %v733
    %v1246 = vsub.f32 %v222, %v734
    %v1247 = vsub.f32 %v223, %v735
    %v1248 = vsub.f32 %v224, %v736
    %v1249 = vsub.f32 %v225, %v737
    %v1250 = vsub.f32 %v226, %v738
    %v1251 = vsub.f32 %v227, %v739
    %v1252 = vsub.f32 %v228, %v740
    %v1253 = vsub.f32 %v229, %v741
    %v1254 = vsub.f32 %v230, %v742
    %v1255 = vsub.f32 %v231, %v743
    %v1256 = vsub.f32 %v232, %v744
    %v1257 = vsub.f32 %v233, %v745
    %v1258 = vsub.f32 %v234, %v746
    %v1259 = vsub.f32 %v235, %v747
    %v1260 = vsub.f32 %v236, %v748
    %v1261 = vsub.f32 %v237, %v749
    %v1262 = vsub.f32 %v238, %v750
    %v1263 = vsub.f32 %v239, %v751
    %v1264 = vsub.f32 %v240, %v752
    %v1265 = vsub.f32 %v241, %v753
    %v1266 = vsub.f32 %v242, %v754
    %v1267 = vsub.f32 %v243, %v755
    %v1268 = vsub.f32 %v244, %v756
    %v1269 = vsub.f32 %v245, %v757
    %v1270 = vsub.f32 %v246, %v758
    %v1271 = vsub.f32 %v247, %v759
    %v1272 = vsub.f32 %v248, %v760
    %v1273 = vsub.f32 %v249, %v761
    %v1274 = vsub.f32 %v250, %v762
    %v1275 = vsub.f32 %v251, %v763
    %v1276 = vsub.f32 %v252, %v764
    %v1277 = vsub.f32 %v253, %v765
    %v1278 = vsub.f32 %v254, %v766
    %v1279 = vsub.f32 %v255, %v767
    %v1280 = vsub.f32 %v256, %v768
    %v1281 = vsub.f32 %v257, %v769
    %v1282 = vsub.f32 %v258, %v770
    %v1283 = vsub.f32 %v259, %v771
    %v1284 = vsub.f32 %v260, %v772
    %v1285 = vsub.f32 %v261, %v773
    %v1286 = vsub.f32 %v262, %v774
    %v1287 = vsub.f32 %v263, %v775
    %v1288 = vsub.f32 %v264, %v776
    %v1289 = vsub.f32 %v265, %v777
    %v1290 = vsub.f32 %v266, %v778
    %v1291 = vsub.f32 %v267, %v779
    %v1292 = vsub.f32 %v268, %v780
    %v1293 = vsub.f32 %v269, %v781
    %v1294 = vsub.f32 %v270, %v782
    %v1295 = vsub.f32 %v271, %v783
    %v1296 = vsub.f32 %v272, %v784
    %v1297 = vsub.f32 %v273, %v785
    %v1298 = vsub.f32 %v274, %v786
    %v1299 = vsub.f32 %v275, %v787
    %v1300 = vsub.f32 %v276, %v788
    %v1301 = vsub.f32 %v277, %v789
    %v1302 = vsub.f32 %v278, %v790
    %v1303 = vsub.f32 %v279, %v791
    %v1304 = vsub.f32 %v280, %v792
    %v1305 = vsub.f32 %v281, %v793
    %v1306 = vsub.f32 %v282, %v794
    %v1307 = vsub.f32 %v283, %v795
    %v1308 = vsub.f32 %v284, %v796
    %v1309 = vsub.f32 %v285, %v797
    %v1310 = vsub.f32 %v286, %v798
    %v1311 = vsub.f32 %v287, %v799
    %v1312 = vsub.f32 %v288, %v800
    %v1313 = vsub.f32 %v289, %v801
    %v1314 = vsub.f32 %v290, %v802
    %v1315 = vsub.f32 %v291, %v803
    %v1316 = vsub.f32 %v292, %v804
    %v1317 = vsub.f32 %v293, %v805
    %v1318 = vsub.f32 %v294, %v806
    %v1319 = vsub.f32 %v295, %v807
    %v1320 = vsub.f32 %v296, %v808
    %v1321 = vsub.f32 %v297, %v809
    %v1322 = vsub.f32 %v298, %v810
    %v1323 = vsub.f32 %v299, %v811
    %v1324 = vsub.f32 %v300, %v812
    %v1325 = vsub.f32 %v301, %v813
    %v1326 = vsub.f32 %v302, %v814
    %v1327 = vsub.f32 %v303, %v815
    %v1328 = vsub.f32 %v304, %v816
    %v1329 = vsub.f32 %v305, %v817
    %v1330 = vsub.f32 %v306, %v818
    %v1331 = vsub.f32 %v307, %v819
    %v1332 = vsub.f32 %v308, %v820
    %v1333 = vsub.f32 %v309, %v821
    %v1334 = vsub.f32 %v310, %v822
    %v1335 = vsub.f32 %v311, %v823
    %v1336 = vsub.f32 %v312, %v824
    %v1337 = vsub.f32 %v313, %v825
    %v1338 = vsub.f32 %v314, %v826
    %v1339 = vsub.f32 %v315, %v827
    %v1340 = vsub.f32 %v316, %v828
    %v1341 = vsub.f32 %v317, %v829
    %v1342 = vsub.f32 %v318, %v830
    %v1343 = vsub.f32 %v319, %v831
    %v1344 = vsub.f32 %v320, %v832
    %v1345 = vsub.f32 %v321, %v833
    %v1346 = vsub.f32 %v322, %v834
    %v1347 = vsub.f32 %v323, %v835
    %v1348 = vsub.f32 %v324, %v836
    %v1349 = vsub.f32 %v325, %v837
    %v1350 = vsub.f32 %v326, %v838
    %v1351 = vsub.f32 %v327, %v839
    %v1352 = vsub.f32 %v328, %v840
    %v1353 = vsub.f32 %v329, %v841
    %v1354 = vsub.f32 %v330, %v842
    %v1355 = vsub.f32 %v331, %v843
    %v1356 = vsub.f32 %v332, %v844
    %v1357 = vsub.f32 %v333, %v845
    %v1358 = vsub.f32 %v334, %v846
    %v1359 = vsub.f32 %v335, %v847
    %v1360 = vsub.f32 %v336, %v848
    %v1361 = vsub.f32 %v337, %v849
    %v1362 = vsub.f32 %v338, %v850
    %v1363 = vsub.f32 %v339, %v851
    %v1364 = vsub.f32 %v340, %v852
    %v1365 = vsub.f32 %v341, %v853
    %v1366 = vsub.f32 %v342, %v854
    %v1367 = vsub.f32 %v343, %v855
    %v1368 = vsub.f32 %v344, %v856
    %v1369 = vsub.f32 %v345, %v857
    %v1370 = vsub.f32 %v346, %v858
    %v1371 = vsub.f32 %v347, %v859
    %v1372 = vsub.f32 %v348, %v860
    %v1373 = vsub.f32 %v349, %v861
    %v1374 = vsub.f32 %v350, %v862
    %v1375 = vsub.f32 %v351, %v863
    %v1376 = vsub.f32 %v352, %v864
    %v1377 = vsub.f32 %v353, %v865
    %v1378 = vsub.f32 %v354, %v866
    %v1379 = vsub.f32 %v355, %v867
    %v1380 = vsub.f32 %v356, %v868
    %v1381 = vsub.f32 %v357, %v869
    %v1382 = vsub.f32 %v358, %v870
    %v1383 = vsub.f32 %v359, %v871
    %v1384 = vsub.f32 %v360, %v872
    %v1385 = vsub.f32 %v361, %v873
    %v1386 = vsub.f32 %v362, %v874
    %v1387 = vsub.f32 %v363, %v875
    %v1388 = vsub.f32 %v364, %v876
    %v1389 = vsub.f32 %v365, %v877
    %v1390 = vsub.f32 %v366, %v878
    %v1391 = vsub.f32 %v367, %v879
    %v1392 = vsub.f32 %v368, %v880
    %v1393 = vsub.f32 %v369, %v881
    %v1394 = vsub.f32 %v370, %v882
    %v1395 = vsub.f32 %v371, %v883
    %v1396 = vsub.f32 %v372, %v884
    %v1397 = vsub.f32 %v373, %v885
    %v1398 = vsub.f32 %v374, %v886
    %v1399 = vsub.f32 %v375, %v887
    %v1400 = vsub.f32 %v376, %v888
    %v1401 = vsub.f32 %v377, %v889
    %v1402 = vsub.f32 %v378, %v890
    %v1403 = vsub.f32 %v379, %v891
    %v1404 = vsub.f32 %v380, %v892
    %v1405 = vsub.f32 %v381, %v893
    %v1406 = vsub.f32 %v382, %v894
    %v1407 = vsub.f32 %v383, %v895
    %v1408 = vsub.f32 %v384, %v896
    %v1409 = vsub.f32 %v385, %v897
    %v1410 = vsub.f32 %v386, %v898
    %v1411 = vsub.f32 %v387, %v899
    %v1412 = vsub.f32 %v388, %v900
    %v1413 = vsub.f32 %v389, %v901
    %v1414 = vsub.f32 %v390, %v902
    %v1415 = vsub.f32 %v391, %v903
    %v1416 = vsub.f32 %v392, %v904
    %v1417 = vsub.f32 %v393, %v905
    %v1418 = vsub.f32 %v394, %v906
    %v1419 = vsub.f32 %v395, %v907
    %v1420 = vsub.f32 %v396, %v908
    %v1421 = vsub.f32 %v397, %v909
    %v1422 = vsub.f32 %v398, %v910
    %v1423 = vsub.f32 %v399, %v911
    %v1424 = vsub.f32 %v400, %v912
    %v1425 = vsub.f32 %v401, %v913
    %v1426 = vsub.f32 %v402, %v914
    %v1427 = vsub.f32 %v403, %v915
    %v1428 = vsub.f32 %v404, %v916
    %v1429 = vsub.f32 %v405, %v917
    %v1430 = vsub.f32 %v406, %v918
    %v1431 = vsub.f32 %v407, %v919
    %v1432 = vsub.f32 %v408, %v920
    %v1433 = vsub.f32 %v409, %v921
    %v1434 = vsub.f32 %v410, %v922
    %v1435 = vsub.f32 %v411, %v923
    %v1436 = vsub.f32 %v412, %v924
    %v1437 = vsub.f32 %v413, %v925
    %v1438 = vsub.f32 %v414, %v926
    %v1439 = vsub.f32 %v415, %v927
    %v1440 = vsub.f32 %v416, %v928
    %v1441 = vsub.f32 %v417, %v929
    %v1442 = vsub.f32 %v418, %v930
    %v1443 = vsub.f32 %v419, %v931
    %v1444 = vsub.f32 %v420, %v932
    %v1445 = vsub.f32 %v421, %v933
    %v1446 = vsub.f32 %v422, %v934
    %v1447 = vsub.f32 %v423, %v935
    %v1448 = vsub.f32 %v424, %v936
    %v1449 = vsub.f32 %v425, %v937
    %v1450 = vsub.f32 %v426, %v938
    %v1451 = vsub.f32 %v427, %v939
    %v1452 = vsub.f32 %v428, %v940
    %v1453 = vsub.f32 %v429, %v941
    %v1454 = vsub.f32 %v430, %v942
    %v1455 = vsub.f32 %v431, %v943
    %v1456 = vsub.f32 %v432, %v944
    %v1457 = vsub.f32 %v433, %v945
    %v1458 = vsub.f32 %v434, %v946
    %v1459 = vsub.f32 %v435, %v947
    %v1460 = vsub.f32 %v436, %v948
    %v1461 = vsub.f32 %v437, %v949
    %v1462 = vsub.f32 %v438, %v950
    %v1463 = vsub.f32 %v439, %v951
    %v1464 = vsub.f32 %v440, %v952
    %v1465 = vsub.f32 %v441, %v953
    %v1466 = vsub.f32 %v442, %v954
    %v1467 = vsub.f32 %v443, %v955
    %v1468 = vsub.f32 %v444, %v956
    %v1469 = vsub.f32 %v445, %v957
    %v1470 = vsub.f32 %v446, %v958
    %v1471 = vsub.f32 %v447, %v959
    %v1472 = vsub.f32 %v448, %v960
    %v1473 = vsub.f32 %v449, %v961
    %v1474 = vsub.f32 %v450, %v962
    %v1475 = vsub.f32 %v451, %v963
    %v1476 = vsub.f32 %v452, %v964
    %v1477 = vsub.f32 %v453, %v965
    %v1478 = vsub.f32 %v454, %v966
    %v1479 = vsub.f32 %v455, %v967
    %v1480 = vsub.f32 %v456, %v968
    %v1481 = vsub.f32 %v457, %v969
    %v1482 = vsub.f32 %v458, %v970
    %v1483 = vsub.f32 %v459, %v971
    %v1484 = vsub.f32 %v460, %v972
    %v1485 = vsub.f32 %v461, %v973
    %v1486 = vsub.f32 %v462, %v974
    %v1487 = vsub.f32 %v463, %v975
    %v1488 = vsub.f32 %v464, %v976
    %v1489 = vsub.f32 %v465, %v977
    %v1490 = vsub.f32 %v466, %v978
    %v1491 = vsub.f32 %v467, %v979
    %v1492 = vsub.f32 %v468, %v980
    %v1493 = vsub.f32 %v469, %v981
    %v1494 = vsub.f32 %v470, %v982
    %v1495 = vsub.f32 %v471, %v983
    %v1496 = vsub.f32 %v472, %v984
    %v1497 = vsub.f32 %v473, %v985
    %v1498 = vsub.f32 %v474, %v986
    %v1499 = vsub.f32 %v475, %v987
    %v1500 = vsub.f32 %v476, %v988
    %v1501 = vsub.f32 %v477, %v989
    %v1502 = vsub.f32 %v478, %v990
    %v1503 = vsub.f32 %v479, %v991
    %v1504 = vsub.f32 %v480, %v992
    %v1505 = vsub.f32 %v481, %v993
    %v1506 = vsub.f32 %v482, %v994
    %v1507 = vsub.f32 %v483, %v995
    %v1508 = vsub.f32 %v484, %v996
    %v1509 = vsub.f32 %v485, %v997
    %v1510 = vsub.f32 %v486, %v998
    %v1511 = vsub.f32 %v487, %v999
    %v1512 = vsub.f32 %v488, %v1000
    %v1513 = vsub.f32 %v489, %v1001
    %v1514 = vsub.f32 %v490, %v1002
    %v1515 = vsub.f32 %v491, %v1003
    %v1516 = vsub.f32 %v492, %v1004
    %v1517 = vsub.f32 %v493, %v1005
    %v1518 = vsub.f32 %v494, %v1006
    %v1519 = vsub.f32 %v495, %v1007
    %v1520 = vsub.f32 %v496, %v1008
    %v1521 = vsub.f32 %v497, %v1009
    %v1522 = vsub.f32 %v498, %v1010
    %v1523 = vsub.f32 %v499, %v1011
    %v1524 = vsub.f32 %v500, %v1012
    %v1525 = vsub.f32 %v501, %v1013
    %v1526 = vsub.f32 %v502, %v1014
    %v1527 = vsub.f32 %v503, %v1015
    %v1528 = vsub.f32 %v504, %v1016
    %v1529 = vsub.f32 %v505, %v1017
    %v1530 = vsub.f32 %v506, %v1018
    %v1531 = vsub.f32 %v507, %v1019
    %v1532 = vsub.f32 %v508, %v1020
    %v1533 = vsub.f32 %v509, %v1021
    %v1534 = vsub.f32 %v510, %v1022
    %v1535 = vsub.f32 %v511, %v1023
    %v1536 = vsub.f32 %v512, %v1024
    %v1537 = vsub.f32 %v513, %v1025
    %v1538 = vsub.f32 %v514, %v1026
    %v1539 = vsub.f32 %v515, %v1027
    %v1540 = vsub.f32 %v516, %v1028
    %v1541 = vsub.f32 %v517, %v1029
    %v1542 = vsub.f32 %v518, %v1030
    %v1543 = vsub.f32 %v519, %v1031
    %v1544 = vsub.f32 %v520, %v1032
    %v1545 = vsub.f32 %v521, %v1033
    %v1546 = vsub.f32 %v522, %v1034
    %v1547 = vsub.f32 %v523, %v1035
    %v1548 = vsub.f32 %v524, %v1036
    %v1549 = vsub.f32 %v525, %v1037
    %v1550 = vsub.f32 %v526, %v1038
    %v1551 = vsub.f32 %v527, %v1039
    %v1552 = vsub.f32 %v528, %v1040
    %v1553 = vsub.f32 %v529, %v1041
    %v1554 = vsub.f32 %v530, %v1042
    %v1555 = vsub.f32 %v531, %v1043
    %v1556 = vsub.f32 %v532, %v1044
    %v1557 = vsub.f32 %v533, %v1045
    %v1558 = vsub.f32 %v534, %v1046
    %v1559 = vsub.f32 %v535, %v1047
    %v1560 = vsub.f32 %v536, %v1048
    %v1561 = vsub.f32 %v537, %v1049
    %v1562 = vsub.f32 %v538, %v1050
    %v1563 = vsub.f32 %v539, %v1051
    %v1564 = vsub.f32 %v540, %v1052
    %v1565 = vsub.f32 %v541, %v1053
    %v1566 = vsub.f32 %v542, %v1054
    %v1567 = vsub.f32 %v543, %v1055
    %v1568 = vsub.f32 %v544, %v1056
    %v1569 = vsub.f32 %v545, %v1057
    %v1570 = vsub.f32 %v546, %v1058
    %v1571 = vsub.f32 %v547, %v1059
    %v1572 = vsub.f32 %v548, %v1060
    %v1573 = vsub.f32 %v549, %v1061
    %v1574 = vsub.f32 %v550, %v1062
    %v1575 = vsub.f32 %v551, %v1063
    %v1576 = vsub.f32 %v552, %v1064
    %v1577 = vsub.f32 %v553, %v1065
    %v1578 = vsub.f32 %v554, %v1066
    %v1579 = vsub.f32 %v555, %v1067
    %v1580 = vsub.f32 %v556, %v1068
    %v1581 = vsub.f32 %v557, %v1069
    %v1582 = vsub.f32 %v558, %v1070
    %v1583 = vsub.f32 %v559, %v1071
    %v1584 = vsub.f32 %v560, %v1072
    %v1585 = vsub.f32 %v561, %v1073
    %v1586 = vsub.f32 %v562, %v1074
    %v1587 = vsub.f32 %v563, %v1075
    %v1588 = vsub.f32 %v564, %v1076
    %v1589 = vsub.f32 %v565, %v1077
    %v1590 = vsub.f32 %v566, %v1078
    %v1591 = vsub.f32 %v567, %v1079
    %v1592 = vsub.f32 %v568, %v1080
    %v1593 = vsub.f32 %v569, %v1081
    %v1594 = vsub.f32 %v570, %v1082
    %v1595 = vsub.f32 %v571, %v1083
    %v1596 = vsub.f32 %v572, %v1084
    %v1597 = vsub.f32 %v573, %v1085
    %v1598 = vsub.f32 %v574, %v1086
    %v1599 = vsub.f32 %v575, %v1087
    %v1600 = vsub.f32 %v576, %v1088
    %v1601 = vsub.f32 %v577, %v1089
    %v1602 = vsub.f32 %v578, %v1090
    %v1603 = vsub.f32 %v579, %v1091
    %v1604 = vsub.f32 %v580, %v1092
    %v1605 = vsub.f32 %v581, %v1093
    %v1606 = vsub.f32 %v582, %v1094
    %v1607 = vsub.f32 %v583, %v1095
    %v1608 = vsub.f32 %v584, %v1096
    %v1609 = vsub.f32 %v585, %v1097
    %v1610 = vsub.f32 %v586, %v1098
    %v1611 = vsub.f32 %v587, %v1099
    %v1612 = vsub.f32 %v588, %v1100
    %v1613 = vsub.f32 %v589, %v1101
    %p1614 = scmp.lt.s32.totalorder %s72, 0
    // Predicated region
    $region22: #{tpu_custom_call.1} parent=1 // pred_check
      %p1615 = pneg %p1614
    $region23: #{tpu_custom_call.1} parent=1 // pred_check_branch
      %1617 = sbr.rel (%p1615) target = $region25
    $region24: #{tpu_custom_call.1} parent=1 // pred_region
      %v1618 = vmul.f32 %v1102, %v1102
      %v1619 = vmul.f32 %v1103, %v1103
      %v1620 = vmul.f32 %v1104, %v1104
      %v1621 = vmul.f32 %v1105, %v1105
      %v1622 = vmul.f32 %v1106, %v1106
      %v1623 = vmul.f32 %v1107, %v1107
      %v1624 = vmul.f32 %v1108, %v1108
      %v1625 = vmul.f32 %v1109, %v1109
      %v1626 = vmul.f32 %v1110, %v1110
      %v1627 = vmul.f32 %v1111, %v1111
      %v1628 = vmul.f32 %v1112, %v1112
      %v1629 = vmul.f32 %v1113, %v1113
      %v1630 = vmul.f32 %v1114, %v1114
      %v1631 = vmul.f32 %v1115, %v1115
      %v1632 = vmul.f32 %v1116, %v1116
      %v1633 = vmul.f32 %v1117, %v1117
      %v1634 = vmul.f32 %v1118, %v1118
      %v1635 = vmul.f32 %v1119, %v1119
      %v1636 = vmul.f32 %v1120, %v1120
      %v1637 = vmul.f32 %v1121, %v1121
      %v1638 = vmul.f32 %v1122, %v1122
      %v1639 = vmul.f32 %v1123, %v1123
      %v1640 = vmul.f32 %v1124, %v1124
      %v1641 = vmul.f32 %v1125, %v1125
      %v1642 = vmul.f32 %v1126, %v1126
      %v1643 = vmul.f32 %v1127, %v1127
      %v1644 = vmul.f32 %v1128, %v1128
      %v1645 = vmul.f32 %v1129, %v1129
      %v1646 = vmul.f32 %v1130, %v1130
      %v1647 = vmul.f32 %v1131, %v1131
      %v1648 = vmul.f32 %v1132, %v1132
      %v1649 = vmul.f32 %v1133, %v1133
      %v1650 = vmul.f32 %v1134, %v1134
      %v1651 = vmul.f32 %v1135, %v1135
      %v1652 = vmul.f32 %v1136, %v1136
      %v1653 = vmul.f32 %v1137, %v1137
      %v1654 = vmul.f32 %v1138, %v1138
      %v1655 = vmul.f32 %v1139, %v1139
      %v1656 = vmul.f32 %v1140, %v1140
      %v1657 = vmul.f32 %v1141, %v1141
      %v1658 = vmul.f32 %v1142, %v1142
      %v1659 = vmul.f32 %v1143, %v1143
      %v1660 = vmul.f32 %v1144, %v1144
      %v1661 = vmul.f32 %v1145, %v1145
      %v1662 = vmul.f32 %v1146, %v1146
      %v1663 = vmul.f32 %v1147, %v1147
      %v1664 = vmul.f32 %v1148, %v1148
      %v1665 = vmul.f32 %v1149, %v1149
      %v1666 = vmul.f32 %v1150, %v1150
      %v1667 = vmul.f32 %v1151, %v1151
      %v1668 = vmul.f32 %v1152, %v1152
      %v1669 = vmul.f32 %v1153, %v1153
      %v1670 = vmul.f32 %v1154, %v1154
      %v1671 = vmul.f32 %v1155, %v1155
      %v1672 = vmul.f32 %v1156, %v1156
      %v1673 = vmul.f32 %v1157, %v1157
      %v1674 = vmul.f32 %v1158, %v1158
      %v1675 = vmul.f32 %v1159, %v1159
      %v1676 = vmul.f32 %v1160, %v1160
      %v1677 = vmul.f32 %v1161, %v1161
      %v1678 = vmul.f32 %v1162, %v1162
      %v1679 = vmul.f32 %v1163, %v1163
      %v1680 = vmul.f32 %v1164, %v1164
      %v1681 = vmul.f32 %v1165, %v1165
      %v1682 = vmul.f32 %v1166, %v1166
      %v1683 = vmul.f32 %v1167, %v1167
      %v1684 = vmul.f32 %v1168, %v1168
      %v1685 = vmul.f32 %v1169, %v1169
      %v1686 = vmul.f32 %v1170, %v1170
      %v1687 = vmul.f32 %v1171, %v1171
      %v1688 = vmul.f32 %v1172, %v1172
      %v1689 = vmul.f32 %v1173, %v1173
      %v1690 = vmul.f32 %v1174, %v1174
      %v1691 = vmul.f32 %v1175, %v1175
      %v1692 = vmul.f32 %v1176, %v1176
      %v1693 = vmul.f32 %v1177, %v1177
      %v1694 = vmul.f32 %v1178, %v1178
      %v1695 = vmul.f32 %v1179, %v1179
      %v1696 = vmul.f32 %v1180, %v1180
      %v1697 = vmul.f32 %v1181, %v1181
      %v1698 = vmul.f32 %v1182, %v1182
      %v1699 = vmul.f32 %v1183, %v1183
      %v1700 = vmul.f32 %v1184, %v1184
      %v1701 = vmul.f32 %v1185, %v1185
      %v1702 = vmul.f32 %v1186, %v1186
      %v1703 = vmul.f32 %v1187, %v1187
      %v1704 = vmul.f32 %v1188, %v1188
      %v1705 = vmul.f32 %v1189, %v1189
      %v1706 = vmul.f32 %v1190, %v1190
      %v1707 = vmul.f32 %v1191, %v1191
      %v1708 = vmul.f32 %v1192, %v1192
      %v1709 = vmul.f32 %v1193, %v1193
      %v1710 = vmul.f32 %v1194, %v1194
      %v1711 = vmul.f32 %v1195, %v1195
      %v1712 = vmul.f32 %v1196, %v1196
      %v1713 = vmul.f32 %v1197, %v1197
      %v1714 = vmul.f32 %v1198, %v1198
      %v1715 = vmul.f32 %v1199, %v1199
      %v1716 = vmul.f32 %v1200, %v1200
      %v1717 = vmul.f32 %v1201, %v1201
      %v1718 = vmul.f32 %v1202, %v1202
      %v1719 = vmul.f32 %v1203, %v1203
      %v1720 = vmul.f32 %v1204, %v1204
      %v1721 = vmul.f32 %v1205, %v1205
      %v1722 = vmul.f32 %v1206, %v1206
      %v1723 = vmul.f32 %v1207, %v1207
      %v1724 = vmul.f32 %v1208, %v1208
      %v1725 = vmul.f32 %v1209, %v1209
      %v1726 = vmul.f32 %v1210, %v1210
      %v1727 = vmul.f32 %v1211, %v1211
      %v1728 = vmul.f32 %v1212, %v1212
      %v1729 = vmul.f32 %v1213, %v1213
      %v1730 = vmul.f32 %v1214, %v1214
      %v1731 = vmul.f32 %v1215, %v1215
      %v1732 = vmul.f32 %v1216, %v1216
      %v1733 = vmul.f32 %v1217, %v1217
      %v1734 = vmul.f32 %v1218, %v1218
      %v1735 = vmul.f32 %v1219, %v1219
      %v1736 = vmul.f32 %v1220, %v1220
      %v1737 = vmul.f32 %v1221, %v1221
      %v1738 = vmul.f32 %v1222, %v1222
      %v1739 = vmul.f32 %v1223, %v1223
      %v1740 = vmul.f32 %v1224, %v1224
      %v1741 = vmul.f32 %v1225, %v1225
      %v1742 = vmul.f32 %v1226, %v1226
      %v1743 = vmul.f32 %v1227, %v1227
      %v1744 = vmul.f32 %v1228, %v1228
      %v1745 = vmul.f32 %v1229, %v1229
      %v1746 = vmul.f32 %v1230, %v1230
      %v1747 = vmul.f32 %v1231, %v1231
      %v1748 = vmul.f32 %v1232, %v1232
      %v1749 = vmul.f32 %v1233, %v1233
      %v1750 = vmul.f32 %v1234, %v1234
      %v1751 = vmul.f32 %v1235, %v1235
      %v1752 = vmul.f32 %v1236, %v1236
      %v1753 = vmul.f32 %v1237, %v1237
      %v1754 = vmul.f32 %v1238, %v1238
      %v1755 = vmul.f32 %v1239, %v1239
      %v1756 = vmul.f32 %v1240, %v1240
      %v1757 = vmul.f32 %v1241, %v1241
      %v1758 = vmul.f32 %v1242, %v1242
      %v1759 = vmul.f32 %v1243, %v1243
      %v1760 = vmul.f32 %v1244, %v1244
      %v1761 = vmul.f32 %v1245, %v1245
      %v1762 = vmul.f32 %v1246, %v1246
      %v1763 = vmul.f32 %v1247, %v1247
      %v1764 = vmul.f32 %v1248, %v1248
      %v1765 = vmul.f32 %v1249, %v1249
      %v1766 = vmul.f32 %v1250, %v1250
      %v1767 = vmul.f32 %v1251, %v1251
      %v1768 = vmul.f32 %v1252, %v1252
      %v1769 = vmul.f32 %v1253, %v1253
      %v1770 = vmul.f32 %v1254, %v1254
      %v1771 = vmul.f32 %v1255, %v1255
      %v1772 = vmul.f32 %v1256, %v1256
      %v1773 = vmul.f32 %v1257, %v1257
      %v1774 = vmul.f32 %v1258, %v1258
      %v1775 = vmul.f32 %v1259, %v1259
      %v1776 = vmul.f32 %v1260, %v1260
      %v1777 = vmul.f32 %v1261, %v1261
      %v1778 = vmul.f32 %v1262, %v1262
      %v1779 = vmul.f32 %v1263, %v1263
      %v1780 = vmul.f32 %v1264, %v1264
      %v1781 = vmul.f32 %v1265, %v1265
      %v1782 = vmul.f32 %v1266, %v1266
      %v1783 = vmul.f32 %v1267, %v1267
      %v1784 = vmul.f32 %v1268, %v1268
      %v1785 = vmul.f32 %v1269, %v1269
      %v1786 = vmul.f32 %v1270, %v1270
      %v1787 = vmul.f32 %v1271, %v1271
      %v1788 = vmul.f32 %v1272, %v1272
      %v1789 = vmul.f32 %v1273, %v1273
      %v1790 = vmul.f32 %v1274, %v1274
      %v1791 = vmul.f32 %v1275, %v1275
      %v1792 = vmul.f32 %v1276, %v1276
      %v1793 = vmul.f32 %v1277, %v1277
      %v1794 = vmul.f32 %v1278, %v1278
      %v1795 = vmul.f32 %v1279, %v1279
      %v1796 = vmul.f32 %v1280, %v1280
      %v1797 = vmul.f32 %v1281, %v1281
      %v1798 = vmul.f32 %v1282, %v1282
      %v1799 = vmul.f32 %v1283, %v1283
      %v1800 = vmul.f32 %v1284, %v1284
      %v1801 = vmul.f32 %v1285, %v1285
      %v1802 = vmul.f32 %v1286, %v1286
      %v1803 = vmul.f32 %v1287, %v1287
      %v1804 = vmul.f32 %v1288, %v1288
      %v1805 = vmul.f32 %v1289, %v1289
      %v1806 = vmul.f32 %v1290, %v1290
      %v1807 = vmul.f32 %v1291, %v1291
      %v1808 = vmul.f32 %v1292, %v1292
      %v1809 = vmul.f32 %v1293, %v1293
      %v1810 = vmul.f32 %v1294, %v1294
      %v1811 = vmul.f32 %v1295, %v1295
      %v1812 = vmul.f32 %v1296, %v1296
      %v1813 = vmul.f32 %v1297, %v1297
      %v1814 = vmul.f32 %v1298, %v1298
      %v1815 = vmul.f32 %v1299, %v1299
      %v1816 = vmul.f32 %v1300, %v1300
      %v1817 = vmul.f32 %v1301, %v1301
      %v1818 = vmul.f32 %v1302, %v1302
      %v1819 = vmul.f32 %v1303, %v1303
      %v1820 = vmul.f32 %v1304, %v1304
      %v1821 = vmul.f32 %v1305, %v1305
      %v1822 = vmul.f32 %v1306, %v1306
      %v1823 = vmul.f32 %v1307, %v1307
      %v1824 = vmul.f32 %v1308, %v1308
      %v1825 = vmul.f32 %v1309, %v1309
      %v1826 = vmul.f32 %v1310, %v1310
      %v1827 = vmul.f32 %v1311, %v1311
      %v1828 = vmul.f32 %v1312, %v1312
      %v1829 = vmul.f32 %v1313, %v1313
      %v1830 = vmul.f32 %v1314, %v1314
      %v1831 = vmul.f32 %v1315, %v1315
      %v1832 = vmul.f32 %v1316, %v1316
      %v1833 = vmul.f32 %v1317, %v1317
      %v1834 = vmul.f32 %v1318, %v1318
      %v1835 = vmul.f32 %v1319, %v1319
      %v1836 = vmul.f32 %v1320, %v1320
      %v1837 = vmul.f32 %v1321, %v1321
      %v1838 = vmul.f32 %v1322, %v1322
      %v1839 = vmul.f32 %v1323, %v1323
      %v1840 = vmul.f32 %v1324, %v1324
      %v1841 = vmul.f32 %v1325, %v1325
      %v1842 = vmul.f32 %v1326, %v1326
      %v1843 = vmul.f32 %v1327, %v1327
      %v1844 = vmul.f32 %v1328, %v1328
      %v1845 = vmul.f32 %v1329, %v1329
      %v1846 = vmul.f32 %v1330, %v1330
      %v1847 = vmul.f32 %v1331, %v1331
      %v1848 = vmul.f32 %v1332, %v1332
      %v1849 = vmul.f32 %v1333, %v1333
      %v1850 = vmul.f32 %v1334, %v1334
      %v1851 = vmul.f32 %v1335, %v1335
      %v1852 = vmul.f32 %v1336, %v1336
      %v1853 = vmul.f32 %v1337, %v1337
      %v1854 = vmul.f32 %v1338, %v1338
      %v1855 = vmul.f32 %v1339, %v1339
      %v1856 = vmul.f32 %v1340, %v1340
      %v1857 = vmul.f32 %v1341, %v1341
      %v1858 = vmul.f32 %v1342, %v1342
      %v1859 = vmul.f32 %v1343, %v1343
      %v1860 = vmul.f32 %v1344, %v1344
      %v1861 = vmul.f32 %v1345, %v1345
      %v1862 = vmul.f32 %v1346, %v1346
      %v1863 = vmul.f32 %v1347, %v1347
      %v1864 = vmul.f32 %v1348, %v1348
      %v1865 = vmul.f32 %v1349, %v1349
      %v1866 = vmul.f32 %v1350, %v1350
      %v1867 = vmul.f32 %v1351, %v1351
      %v1868 = vmul.f32 %v1352, %v1352
      %v1869 = vmul.f32 %v1353, %v1353
      %v1870 = vmul.f32 %v1354, %v1354
      %v1871 = vmul.f32 %v1355, %v1355
      %v1872 = vmul.f32 %v1356, %v1356
      %v1873 = vmul.f32 %v1357, %v1357
      %v1874 = vmul.f32 %v1358, %v1358
      %v1875 = vmul.f32 %v1359, %v1359
      %v1876 = vmul.f32 %v1360, %v1360
      %v1877 = vmul.f32 %v1361, %v1361
      %v1878 = vmul.f32 %v1362, %v1362
      %v1879 = vmul.f32 %v1363, %v1363
      %v1880 = vmul.f32 %v1364, %v1364
      %v1881 = vmul.f32 %v1365, %v1365
      %v1882 = vmul.f32 %v1366, %v1366
      %v1883 = vmul.f32 %v1367, %v1367
      %v1884 = vmul.f32 %v1368, %v1368
      %v1885 = vmul.f32 %v1369, %v1369
      %v1886 = vmul.f32 %v1370, %v1370
      %v1887 = vmul.f32 %v1371, %v1371
      %v1888 = vmul.f32 %v1372, %v1372
      %v1889 = vmul.f32 %v1373, %v1373
      %v1890 = vmul.f32 %v1374, %v1374
      %v1891 = vmul.f32 %v1375, %v1375
      %v1892 = vmul.f32 %v1376, %v1376
      %v1893 = vmul.f32 %v1377, %v1377
      %v1894 = vmul.f32 %v1378, %v1378
      %v1895 = vmul.f32 %v1379, %v1379
      %v1896 = vmul.f32 %v1380, %v1380
      %v1897 = vmul.f32 %v1381, %v1381
      %v1898 = vmul.f32 %v1382, %v1382
      %v1899 = vmul.f32 %v1383, %v1383
      %v1900 = vmul.f32 %v1384, %v1384
      %v1901 = vmul.f32 %v1385, %v1385
      %v1902 = vmul.f32 %v1386, %v1386
      %v1903 = vmul.f32 %v1387, %v1387
      %v1904 = vmul.f32 %v1388, %v1388
      %v1905 = vmul.f32 %v1389, %v1389
      %v1906 = vmul.f32 %v1390, %v1390
      %v1907 = vmul.f32 %v1391, %v1391
      %v1908 = vmul.f32 %v1392, %v1392
      %v1909 = vmul.f32 %v1393, %v1393
      %v1910 = vmul.f32 %v1394, %v1394
      %v1911 = vmul.f32 %v1395, %v1395
      %v1912 = vmul.f32 %v1396, %v1396
      %v1913 = vmul.f32 %v1397, %v1397
      %v1914 = vmul.f32 %v1398, %v1398
      %v1915 = vmul.f32 %v1399, %v1399
      %v1916 = vmul.f32 %v1400, %v1400
      %v1917 = vmul.f32 %v1401, %v1401
      %v1918 = vmul.f32 %v1402, %v1402
      %v1919 = vmul.f32 %v1403, %v1403
      %v1920 = vmul.f32 %v1404, %v1404
      %v1921 = vmul.f32 %v1405, %v1405
      %v1922 = vmul.f32 %v1406, %v1406
      %v1923 = vmul.f32 %v1407, %v1407
      %v1924 = vmul.f32 %v1408, %v1408
      %v1925 = vmul.f32 %v1409, %v1409
      %v1926 = vmul.f32 %v1410, %v1410
      %v1927 = vmul.f32 %v1411, %v1411
      %v1928 = vmul.f32 %v1412, %v1412
      %v1929 = vmul.f32 %v1413, %v1413
      %v1930 = vmul.f32 %v1414, %v1414
      %v1931 = vmul.f32 %v1415, %v1415
      %v1932 = vmul.f32 %v1416, %v1416
      %v1933 = vmul.f32 %v1417, %v1417
      %v1934 = vmul.f32 %v1418, %v1418
      %v1935 = vmul.f32 %v1419, %v1419
      %v1936 = vmul.f32 %v1420, %v1420
      %v1937 = vmul.f32 %v1421, %v1421
      %v1938 = vmul.f32 %v1422, %v1422
      %v1939 = vmul.f32 %v1423, %v1423
      %v1940 = vmul.f32 %v1424, %v1424
      %v1941 = vmul.f32 %v1425, %v1425
      %v1942 = vmul.f32 %v1426, %v1426
      %v1943 = vmul.f32 %v1427, %v1427
      %v1944 = vmul.f32 %v1428, %v1428
      %v1945 = vmul.f32 %v1429, %v1429
      %v1946 = vmul.f32 %v1430, %v1430
      %v1947 = vmul.f32 %v1431, %v1431
      %v1948 = vmul.f32 %v1432, %v1432
      %v1949 = vmul.f32 %v1433, %v1433
      %v1950 = vmul.f32 %v1434, %v1434
      %v1951 = vmul.f32 %v1435, %v1435
      %v1952 = vmul.f32 %v1436, %v1436
      %v1953 = vmul.f32 %v1437, %v1437
      %v1954 = vmul.f32 %v1438, %v1438
      %v1955 = vmul.f32 %v1439, %v1439
      %v1956 = vmul.f32 %v1440, %v1440
      %v1957 = vmul.f32 %v1441, %v1441
      %v1958 = vmul.f32 %v1442, %v1442
      %v1959 = vmul.f32 %v1443, %v1443
      %v1960 = vmul.f32 %v1444, %v1444
      %v1961 = vmul.f32 %v1445, %v1445
      %v1962 = vmul.f32 %v1446, %v1446
      %v1963 = vmul.f32 %v1447, %v1447
      %v1964 = vmul.f32 %v1448, %v1448
      %v1965 = vmul.f32 %v1449, %v1449
      %v1966 = vmul.f32 %v1450, %v1450
      %v1967 = vmul.f32 %v1451, %v1451
      %v1968 = vmul.f32 %v1452, %v1452
      %v1969 = vmul.f32 %v1453, %v1453
      %v1970 = vmul.f32 %v1454, %v1454
      %v1971 = vmul.f32 %v1455, %v1455
      %v1972 = vmul.f32 %v1456, %v1456
      %v1973 = vmul.f32 %v1457, %v1457
      %v1974 = vmul.f32 %v1458, %v1458
      %v1975 = vmul.f32 %v1459, %v1459
      %v1976 = vmul.f32 %v1460, %v1460
      %v1977 = vmul.f32 %v1461, %v1461
      %v1978 = vmul.f32 %v1462, %v1462
      %v1979 = vmul.f32 %v1463, %v1463
      %v1980 = vmul.f32 %v1464, %v1464
      %v1981 = vmul.f32 %v1465, %v1465
      %v1982 = vmul.f32 %v1466, %v1466
      %v1983 = vmul.f32 %v1467, %v1467
      %v1984 = vmul.f32 %v1468, %v1468
      %v1985 = vmul.f32 %v1469, %v1469
      %v1986 = vmul.f32 %v1470, %v1470
      %v1987 = vmul.f32 %v1471, %v1471
      %v1988 = vmul.f32 %v1472, %v1472
      %v1989 = vmul.f32 %v1473, %v1473
      %v1990 = vmul.f32 %v1474, %v1474
      %v1991 = vmul.f32 %v1475, %v1475
      %v1992 = vmul.f32 %v1476, %v1476
      %v1993 = vmul.f32 %v1477, %v1477
      %v1994 = vmul.f32 %v1478, %v1478
      %v1995 = vmul.f32 %v1479, %v1479
      %v1996 = vmul.f32 %v1480, %v1480
      %v1997 = vmul.f32 %v1481, %v1481
      %v1998 = vmul.f32 %v1482, %v1482
      %v1999 = vmul.f32 %v1483, %v1483
      %v2000 = vmul.f32 %v1484, %v1484
      %v2001 = vmul.f32 %v1485, %v1485
      %v2002 = vmul.f32 %v1486, %v1486
      %v2003 = vmul.f32 %v1487, %v1487
      %v2004 = vmul.f32 %v1488, %v1488
      %v2005 = vmul.f32 %v1489, %v1489
      %v2006 = vmul.f32 %v1490, %v1490
      %v2007 = vmul.f32 %v1491, %v1491
      %v2008 = vmul.f32 %v1492, %v1492
      %v2009 = vmul.f32 %v1493, %v1493
      %v2010 = vmul.f32 %v1494, %v1494
      %v2011 = vmul.f32 %v1495, %v1495
      %v2012 = vmul.f32 %v1496, %v1496
      %v2013 = vmul.f32 %v1497, %v1497
      %v2014 = vmul.f32 %v1498, %v1498
      %v2015 = vmul.f32 %v1499, %v1499
      %v2016 = vmul.f32 %v1500, %v1500
      %v2017 = vmul.f32 %v1501, %v1501
      %v2018 = vmul.f32 %v1502, %v1502
      %v2019 = vmul.f32 %v1503, %v1503
      %v2020 = vmul.f32 %v1504, %v1504
      %v2021 = vmul.f32 %v1505, %v1505
      %v2022 = vmul.f32 %v1506, %v1506
      %v2023 = vmul.f32 %v1507, %v1507
      %v2024 = vmul.f32 %v1508, %v1508
      %v2025 = vmul.f32 %v1509, %v1509
      %v2026 = vmul.f32 %v1510, %v1510
      %v2027 = vmul.f32 %v1511, %v1511
      %v2028 = vmul.f32 %v1512, %v1512
      %v2029 = vmul.f32 %v1513, %v1513
      %v2030 = vmul.f32 %v1514, %v1514
      %v2031 = vmul.f32 %v1515, %v1515
      %v2032 = vmul.f32 %v1516, %v1516
      %v2033 = vmul.f32 %v1517, %v1517
      %v2034 = vmul.f32 %v1518, %v1518
      %v2035 = vmul.f32 %v1519, %v1519
      %v2036 = vmul.f32 %v1520, %v1520
      %v2037 = vmul.f32 %v1521, %v1521
      %v2038 = vmul.f32 %v1522, %v1522
      %v2039 = vmul.f32 %v1523, %v1523
      %v2040 = vmul.f32 %v1524, %v1524
      %v2041 = vmul.f32 %v1525, %v1525
      %v2042 = vmul.f32 %v1526, %v1526
      %v2043 = vmul.f32 %v1527, %v1527
      %v2044 = vmul.f32 %v1528, %v1528
      %v2045 = vmul.f32 %v1529, %v1529
      %v2046 = vmul.f32 %v1530, %v1530
      %v2047 = vmul.f32 %v1531, %v1531
      %v2048 = vmul.f32 %v1532, %v1532
      %v2049 = vmul.f32 %v1533, %v1533
      %v2050 = vmul.f32 %v1534, %v1534
      %v2051 = vmul.f32 %v1535, %v1535
      %v2052 = vmul.f32 %v1536, %v1536
      %v2053 = vmul.f32 %v1537, %v1537
      %v2054 = vmul.f32 %v1538, %v1538
      %v2055 = vmul.f32 %v1539, %v1539
      %v2056 = vmul.f32 %v1540, %v1540
      %v2057 = vmul.f32 %v1541, %v1541
      %v2058 = vmul.f32 %v1542, %v1542
      %v2059 = vmul.f32 %v1543, %v1543
      %v2060 = vmul.f32 %v1544, %v1544
      %v2061 = vmul.f32 %v1545, %v1545
      %v2062 = vmul.f32 %v1546, %v1546
      %v2063 = vmul.f32 %v1547, %v1547
      %v2064 = vmul.f32 %v1548, %v1548
      %v2065 = vmul.f32 %v1549, %v1549
      %v2066 = vmul.f32 %v1550, %v1550
      %v2067 = vmul.f32 %v1551, %v1551
      %v2068 = vmul.f32 %v1552, %v1552
      %v2069 = vmul.f32 %v1553, %v1553
      %v2070 = vmul.f32 %v1554, %v1554
      %v2071 = vmul.f32 %v1555, %v1555
      %v2072 = vmul.f32 %v1556, %v1556
      %v2073 = vmul.f32 %v1557, %v1557
      %v2074 = vmul.f32 %v1558, %v1558
      %v2075 = vmul.f32 %v1559, %v1559
      %v2076 = vmul.f32 %v1560, %v1560
      %v2077 = vmul.f32 %v1561, %v1561
      %v2078 = vmul.f32 %v1562, %v1562
      %v2079 = vmul.f32 %v1563, %v1563
      %v2080 = vmul.f32 %v1564, %v1564
      %v2081 = vmul.f32 %v1565, %v1565
      %v2082 = vmul.f32 %v1566, %v1566
      %v2083 = vmul.f32 %v1567, %v1567
      %v2084 = vmul.f32 %v1568, %v1568
      %v2085 = vmul.f32 %v1569, %v1569
      %v2086 = vmul.f32 %v1570, %v1570
      %v2087 = vmul.f32 %v1571, %v1571
      %v2088 = vmul.f32 %v1572, %v1572
      %v2089 = vmul.f32 %v1573, %v1573
      %v2090 = vmul.f32 %v1574, %v1574
      %v2091 = vmul.f32 %v1575, %v1575
      %v2092 = vmul.f32 %v1576, %v1576
      %v2093 = vmul.f32 %v1577, %v1577
      %v2094 = vmul.f32 %v1578, %v1578
      %v2095 = vmul.f32 %v1579, %v1579
      %v2096 = vmul.f32 %v1580, %v1580
      %v2097 = vmul.f32 %v1581, %v1581
      %v2098 = vmul.f32 %v1582, %v1582
      %v2099 = vmul.f32 %v1583, %v1583
      %v2100 = vmul.f32 %v1584, %v1584
      %v2101 = vmul.f32 %v1585, %v1585
      %v2102 = vmul.f32 %v1586, %v1586
      %v2103 = vmul.f32 %v1587, %v1587
      %v2104 = vmul.f32 %v1588, %v1588
      %v2105 = vmul.f32 %v1589, %v1589
      %v2106 = vmul.f32 %v1590, %v1590
      %v2107 = vmul.f32 %v1591, %v1591
      %v2108 = vmul.f32 %v1592, %v1592
      %v2109 = vmul.f32 %v1593, %v1593
      %v2110 = vmul.f32 %v1594, %v1594
      %v2111 = vmul.f32 %v1595, %v1595
      %v2112 = vmul.f32 %v1596, %v1596
      %v2113 = vmul.f32 %v1597, %v1597
      %v2114 = vmul.f32 %v1598, %v1598
      %v2115 = vmul.f32 %v1599, %v1599
      %v2116 = vmul.f32 %v1600, %v1600
      %v2117 = vmul.f32 %v1601, %v1601
      %v2118 = vmul.f32 %v1602, %v1602
      %v2119 = vmul.f32 %v1603, %v1603
      %v2120 = vmul.f32 %v1604, %v1604
      %v2121 = vmul.f32 %v1605, %v1605
      %v2122 = vmul.f32 %v1606, %v1606
      %v2123 = vmul.f32 %v1607, %v1607
      %v2124 = vmul.f32 %v1608, %v1608
      %v2125 = vmul.f32 %v1609, %v1609
      %v2126 = vmul.f32 %v1610, %v1610
      %v2127 = vmul.f32 %v1611, %v1611
      %v2128 = vmul.f32 %v1612, %v1612
      %v2129 = vmul.f32 %v1613, %v1613
      %v2130 = vld [vmem:[#allocation2] sm:$0xff]
      %v2131 = vadd.f32 %v1618, %v1619
      %v2132 = vadd.f32 %v2131, %v1620
      %v2133 = vadd.f32 %v2132, %v1621
      %v2134 = vadd.f32 %v2133, %v1622
      %v2135 = vadd.f32 %v2134, %v1623
      %v2136 = vadd.f32 %v2135, %v1624
      %v2137 = vadd.f32 %v2136, %v1625
      %v2138 = vadd.f32 %v2137, %v1626
      %v2139 = vadd.f32 %v2138, %v1627
      %v2140 = vadd.f32 %v2139, %v1628
      %v2141 = vadd.f32 %v2140, %v1629
      %v2142 = vadd.f32 %v2141, %v1630
      %v2143 = vadd.f32 %v2142, %v1631
      %v2144 = vadd.f32 %v2143, %v1632
      %v2145 = vadd.f32 %v2144, %v1633
      %v2146 = vadd.f32 %v2145, %v1634
      %v2147 = vadd.f32 %v2146, %v1635
      %v2148 = vadd.f32 %v2147, %v1636
      %v2149 = vadd.f32 %v2148, %v1637
      %v2150 = vadd.f32 %v2149, %v1638
      %v2151 = vadd.f32 %v2150, %v1639
      %v2152 = vadd.f32 %v2151, %v1640
      %v2153 = vadd.f32 %v2152, %v1641
      %v2154 = vadd.f32 %v2153, %v1642
      %v2155 = vadd.f32 %v2154, %v1643
      %v2156 = vadd.f32 %v2155, %v1644
      %v2157 = vadd.f32 %v2156, %v1645
      %v2158 = vadd.f32 %v2157, %v1646
      %v2159 = vadd.f32 %v2158, %v1647
      %v2160 = vadd.f32 %v2159, %v1648
      %v2161 = vadd.f32 %v2160, %v1649
      %v2162 = vadd.f32 %v2161, %v1650
      %v2163 = vadd.f32 %v2162, %v1651
      %v2164 = vadd.f32 %v2163, %v1652
      %v2165 = vadd.f32 %v2164, %v1653
      %v2166 = vadd.f32 %v2165, %v1654
      %v2167 = vadd.f32 %v2166, %v1655
      %v2168 = vadd.f32 %v2167, %v1656
      %v2169 = vadd.f32 %v2168, %v1657
      %v2170 = vadd.f32 %v2169, %v1658
      %v2171 = vadd.f32 %v2170, %v1659
      %v2172 = vadd.f32 %v2171, %v1660
      %v2173 = vadd.f32 %v2172, %v1661
      %v2174 = vadd.f32 %v2173, %v1662
      %v2175 = vadd.f32 %v2174, %v1663
      %v2176 = vadd.f32 %v2175, %v1664
      %v2177 = vadd.f32 %v2176, %v1665
      %v2178 = vadd.f32 %v2177, %v1666
      %v2179 = vadd.f32 %v2178, %v1667
      %v2180 = vadd.f32 %v2179, %v1668
      %v2181 = vadd.f32 %v2180, %v1669
      %v2182 = vadd.f32 %v2181, %v1670
      %v2183 = vadd.f32 %v2182, %v1671
      %v2184 = vadd.f32 %v2183, %v1672
      %v2185 = vadd.f32 %v2184, %v1673
      %v2186 = vadd.f32 %v2185, %v1674
      %v2187 = vadd.f32 %v2186, %v1675
      %v2188 = vadd.f32 %v2187, %v1676
      %v2189 = vadd.f32 %v2188, %v1677
      %v2190 = vadd.f32 %v2189, %v1678
      %v2191 = vadd.f32 %v2190, %v1679
      %v2192 = vadd.f32 %v2191, %v1680
      %v2193 = vadd.f32 %v2192, %v1681
      %v2194 = vadd.f32 %v2193, %v1682
      %v2195 = vadd.f32 %v2194, %v1683
      %v2196 = vadd.f32 %v2195, %v1684
      %v2197 = vadd.f32 %v2196, %v1685
      %v2198 = vadd.f32 %v2197, %v1686
      %v2199 = vadd.f32 %v2198, %v1687
      %v2200 = vadd.f32 %v2199, %v1688
      %v2201 = vadd.f32 %v2200, %v1689
      %v2202 = vadd.f32 %v2201, %v1690
      %v2203 = vadd.f32 %v2202, %v1691
      %v2204 = vadd.f32 %v2203, %v1692
      %v2205 = vadd.f32 %v2204, %v1693
      %v2206 = vadd.f32 %v2205, %v1694
      %v2207 = vadd.f32 %v2206, %v1695
      %v2208 = vadd.f32 %v2207, %v1696
      %v2209 = vadd.f32 %v2208, %v1697
      %v2210 = vadd.f32 %v2209, %v1698
      %v2211 = vadd.f32 %v2210, %v1699
      %v2212 = vadd.f32 %v2211, %v1700
      %v2213 = vadd.f32 %v2212, %v1701
      %v2214 = vadd.f32 %v2213, %v1702
      %v2215 = vadd.f32 %v2214, %v1703
      %v2216 = vadd.f32 %v2215, %v1704
      %v2217 = vadd.f32 %v2216, %v1705
      %v2218 = vadd.f32 %v2217, %v1706
      %v2219 = vadd.f32 %v2218, %v1707
      %v2220 = vadd.f32 %v2219, %v1708
      %v2221 = vadd.f32 %v2220, %v1709
      %v2222 = vadd.f32 %v2221, %v1710
      %v2223 = vadd.f32 %v2222, %v1711
      %v2224 = vadd.f32 %v2223, %v1712
      %v2225 = vadd.f32 %v2224, %v1713
      %v2226 = vadd.f32 %v2225, %v1714
      %v2227 = vadd.f32 %v2226, %v1715
      %v2228 = vadd.f32 %v2227, %v1716
      %v2229 = vadd.f32 %v2228, %v1717
      %v2230 = vadd.f32 %v2229, %v1718
      %v2231 = vadd.f32 %v2230, %v1719
      %v2232 = vadd.f32 %v2231, %v1720
      %v2233 = vadd.f32 %v2232, %v1721
      %v2234 = vadd.f32 %v2233, %v1722
      %v2235 = vadd.f32 %v2234, %v1723
      %v2236 = vadd.f32 %v2235, %v1724
      %v2237 = vadd.f32 %v2236, %v1725
      %v2238 = vadd.f32 %v2237, %v1726
      %v2239 = vadd.f32 %v2238, %v1727
      %v2240 = vadd.f32 %v2239, %v1728
      %v2241 = vadd.f32 %v2240, %v1729
      %v2242 = vadd.f32 %v2241, %v1730
      %v2243 = vadd.f32 %v2242, %v1731
      %v2244 = vadd.f32 %v2243, %v1732
      %v2245 = vadd.f32 %v2244, %v1733
      %v2246 = vadd.f32 %v2245, %v1734
      %v2247 = vadd.f32 %v2246, %v1735
      %v2248 = vadd.f32 %v2247, %v1736
      %v2249 = vadd.f32 %v2248, %v1737
      %v2250 = vadd.f32 %v2249, %v1738
      %v2251 = vadd.f32 %v2250, %v1739
      %v2252 = vadd.f32 %v2251, %v1740
      %v2253 = vadd.f32 %v2252, %v1741
      %v2254 = vadd.f32 %v2253, %v1742
      %v2255 = vadd.f32 %v2254, %v1743
      %v2256 = vadd.f32 %v2255, %v1744
      %v2257 = vadd.f32 %v2256, %v1745
      %v2258 = vadd.f32 %v2257, %v1746
      %v2259 = vadd.f32 %v2258, %v1747
      %v2260 = vadd.f32 %v2259, %v1748
      %v2261 = vadd.f32 %v2260, %v1749
      %v2262 = vadd.f32 %v2261, %v1750
      %v2263 = vadd.f32 %v2262, %v1751
      %v2264 = vadd.f32 %v2263, %v1752
      %v2265 = vadd.f32 %v2264, %v1753
      %v2266 = vadd.f32 %v2265, %v1754
      %v2267 = vadd.f32 %v2266, %v1755
      %v2268 = vadd.f32 %v2267, %v1756
      %v2269 = vadd.f32 %v2268, %v1757
      %v2270 = vadd.f32 %v2269, %v1758
      %v2271 = vadd.f32 %v2270, %v1759
      %v2272 = vadd.f32 %v2271, %v1760
      %v2273 = vadd.f32 %v2272, %v1761
      %v2274 = vadd.f32 %v2273, %v1762
      %v2275 = vadd.f32 %v2274, %v1763
      %v2276 = vadd.f32 %v2275, %v1764
      %v2277 = vadd.f32 %v2276, %v1765
      %v2278 = vadd.f32 %v2277, %v1766
      %v2279 = vadd.f32 %v2278, %v1767
      %v2280 = vadd.f32 %v2279, %v1768
      %v2281 = vadd.f32 %v2280, %v1769
      %v2282 = vadd.f32 %v2281, %v1770
      %v2283 = vadd.f32 %v2282, %v1771
      %v2284 = vadd.f32 %v2283, %v1772
      %v2285 = vadd.f32 %v2284, %v1773
      %v2286 = vadd.f32 %v2285, %v1774
      %v2287 = vadd.f32 %v2286, %v1775
      %v2288 = vadd.f32 %v2287, %v1776
      %v2289 = vadd.f32 %v2288, %v1777
      %v2290 = vadd.f32 %v2289, %v1778
      %v2291 = vadd.f32 %v2290, %v1779
      %v2292 = vadd.f32 %v2291, %v1780
      %v2293 = vadd.f32 %v2292, %v1781
      %v2294 = vadd.f32 %v2293, %v1782
      %v2295 = vadd.f32 %v2294, %v1783
      %v2296 = vadd.f32 %v2295, %v1784
      %v2297 = vadd.f32 %v2296, %v1785
      %v2298 = vadd.f32 %v2297, %v1786
      %v2299 = vadd.f32 %v2298, %v1787
      %v2300 = vadd.f32 %v2299, %v1788
      %v2301 = vadd.f32 %v2300, %v1789
      %v2302 = vadd.f32 %v2301, %v1790
      %v2303 = vadd.f32 %v2302, %v1791
      %v2304 = vadd.f32 %v2303, %v1792
      %v2305 = vadd.f32 %v2304, %v1793
      %v2306 = vadd.f32 %v2305, %v1794
      %v2307 = vadd.f32 %v2306, %v1795
      %v2308 = vadd.f32 %v2307, %v1796
      %v2309 = vadd.f32 %v2308, %v1797
      %v2310 = vadd.f32 %v2309, %v1798
      %v2311 = vadd.f32 %v2310, %v1799
      %v2312 = vadd.f32 %v2311, %v1800
      %v2313 = vadd.f32 %v2312, %v1801
      %v2314 = vadd.f32 %v2313, %v1802
      %v2315 = vadd.f32 %v2314, %v1803
      %v2316 = vadd.f32 %v2315, %v1804
      %v2317 = vadd.f32 %v2316, %v1805
      %v2318 = vadd.f32 %v2317, %v1806
      %v2319 = vadd.f32 %v2318, %v1807
      %v2320 = vadd.f32 %v2319, %v1808
      %v2321 = vadd.f32 %v2320, %v1809
      %v2322 = vadd.f32 %v2321, %v1810
      %v2323 = vadd.f32 %v2322, %v1811
      %v2324 = vadd.f32 %v2323, %v1812
      %v2325 = vadd.f32 %v2324, %v1813
      %v2326 = vadd.f32 %v2325, %v1814
      %v2327 = vadd.f32 %v2326, %v1815
      %v2328 = vadd.f32 %v2327, %v1816
      %v2329 = vadd.f32 %v2328, %v1817
      %v2330 = vadd.f32 %v2329, %v1818
      %v2331 = vadd.f32 %v2330, %v1819
      %v2332 = vadd.f32 %v2331, %v1820
      %v2333 = vadd.f32 %v2332, %v1821
      %v2334 = vadd.f32 %v2333, %v1822
      %v2335 = vadd.f32 %v2334, %v1823
      %v2336 = vadd.f32 %v2335, %v1824
      %v2337 = vadd.f32 %v2336, %v1825
      %v2338 = vadd.f32 %v2337, %v1826
      %v2339 = vadd.f32 %v2338, %v1827
      %v2340 = vadd.f32 %v2339, %v1828
      %v2341 = vadd.f32 %v2340, %v1829
      %v2342 = vadd.f32 %v2341, %v1830
      %v2343 = vadd.f32 %v2342, %v1831
      %v2344 = vadd.f32 %v2343, %v1832
      %v2345 = vadd.f32 %v2344, %v1833
      %v2346 = vadd.f32 %v2345, %v1834
      %v2347 = vadd.f32 %v2346, %v1835
      %v2348 = vadd.f32 %v2347, %v1836
      %v2349 = vadd.f32 %v2348, %v1837
      %v2350 = vadd.f32 %v2349, %v1838
      %v2351 = vadd.f32 %v2350, %v1839
      %v2352 = vadd.f32 %v2351, %v1840
      %v2353 = vadd.f32 %v2352, %v1841
      %v2354 = vadd.f32 %v2353, %v1842
      %v2355 = vadd.f32 %v2354, %v1843
      %v2356 = vadd.f32 %v2355, %v1844
      %v2357 = vadd.f32 %v2356, %v1845
      %v2358 = vadd.f32 %v2357, %v1846
      %v2359 = vadd.f32 %v2358, %v1847
      %v2360 = vadd.f32 %v2359, %v1848
      %v2361 = vadd.f32 %v2360, %v1849
      %v2362 = vadd.f32 %v2361, %v1850
      %v2363 = vadd.f32 %v2362, %v1851
      %v2364 = vadd.f32 %v2363, %v1852
      %v2365 = vadd.f32 %v2364, %v1853
      %v2366 = vadd.f32 %v2365, %v1854
      %v2367 = vadd.f32 %v2366, %v1855
      %v2368 = vadd.f32 %v2367, %v1856
      %v2369 = vadd.f32 %v2368, %v1857
      %v2370 = vadd.f32 %v2369, %v1858
      %v2371 = vadd.f32 %v2370, %v1859
      %v2372 = vadd.f32 %v2371, %v1860
      %v2373 = vadd.f32 %v2372, %v1861
      %v2374 = vadd.f32 %v2373, %v1862
      %v2375 = vadd.f32 %v2374, %v1863
      %v2376 = vadd.f32 %v2375, %v1864
      %v2377 = vadd.f32 %v2376, %v1865
      %v2378 = vadd.f32 %v2377, %v1866
      %v2379 = vadd.f32 %v2378, %v1867
      %v2380 = vadd.f32 %v2379, %v1868
      %v2381 = vadd.f32 %v2380, %v1869
      %v2382 = vadd.f32 %v2381, %v1870
      %v2383 = vadd.f32 %v2382, %v1871
      %v2384 = vadd.f32 %v2383, %v1872
      %v2385 = vadd.f32 %v2384, %v1873
      %v2386 = vadd.f32 %v2385, %v1874
      %v2387 = vadd.f32 %v2386, %v1875
      %v2388 = vadd.f32 %v2387, %v1876
      %v2389 = vadd.f32 %v2388, %v1877
      %v2390 = vadd.f32 %v2389, %v1878
      %v2391 = vadd.f32 %v2390, %v1879
      %v2392 = vadd.f32 %v2391, %v1880
      %v2393 = vadd.f32 %v2392, %v1881
      %v2394 = vadd.f32 %v2393, %v1882
      %v2395 = vadd.f32 %v2394, %v1883
      %v2396 = vadd.f32 %v2395, %v1884
      %v2397 = vadd.f32 %v2396, %v1885
      %v2398 = vadd.f32 %v2397, %v1886
      %v2399 = vadd.f32 %v2398, %v1887
      %v2400 = vadd.f32 %v2399, %v1888
      %v2401 = vadd.f32 %v2400, %v1889
      %v2402 = vadd.f32 %v2401, %v1890
      %v2403 = vadd.f32 %v2402, %v1891
      %v2404 = vadd.f32 %v2403, %v1892
      %v2405 = vadd.f32 %v2404, %v1893
      %v2406 = vadd.f32 %v2405, %v1894
      %v2407 = vadd.f32 %v2406, %v1895
      %v2408 = vadd.f32 %v2407, %v1896
      %v2409 = vadd.f32 %v2408, %v1897
      %v2410 = vadd.f32 %v2409, %v1898
      %v2411 = vadd.f32 %v2410, %v1899
      %v2412 = vadd.f32 %v2411, %v1900
      %v2413 = vadd.f32 %v2412, %v1901
      %v2414 = vadd.f32 %v2413, %v1902
      %v2415 = vadd.f32 %v2414, %v1903
      %v2416 = vadd.f32 %v2415, %v1904
      %v2417 = vadd.f32 %v2416, %v1905
      %v2418 = vadd.f32 %v2417, %v1906
      %v2419 = vadd.f32 %v2418, %v1907
      %v2420 = vadd.f32 %v2419, %v1908
      %v2421 = vadd.f32 %v2420, %v1909
      %v2422 = vadd.f32 %v2421, %v1910
      %v2423 = vadd.f32 %v2422, %v1911
      %v2424 = vadd.f32 %v2423, %v1912
      %v2425 = vadd.f32 %v2424, %v1913
      %v2426 = vadd.f32 %v2425, %v1914
      %v2427 = vadd.f32 %v2426, %v1915
      %v2428 = vadd.f32 %v2427, %v1916
      %v2429 = vadd.f32 %v2428, %v1917
      %v2430 = vadd.f32 %v2429, %v1918
      %v2431 = vadd.f32 %v2430, %v1919
      %v2432 = vadd.f32 %v2431, %v1920
      %v2433 = vadd.f32 %v2432, %v1921
      %v2434 = vadd.f32 %v2433, %v1922
      %v2435 = vadd.f32 %v2434, %v1923
      %v2436 = vadd.f32 %v2435, %v1924
      %v2437 = vadd.f32 %v2436, %v1925
      %v2438 = vadd.f32 %v2437, %v1926
      %v2439 = vadd.f32 %v2438, %v1927
      %v2440 = vadd.f32 %v2439, %v1928
      %v2441 = vadd.f32 %v2440, %v1929
      %v2442 = vadd.f32 %v2441, %v1930
      %v2443 = vadd.f32 %v2442, %v1931
      %v2444 = vadd.f32 %v2443, %v1932
      %v2445 = vadd.f32 %v2444, %v1933
      %v2446 = vadd.f32 %v2445, %v1934
      %v2447 = vadd.f32 %v2446, %v1935
      %v2448 = vadd.f32 %v2447, %v1936
      %v2449 = vadd.f32 %v2448, %v1937
      %v2450 = vadd.f32 %v2449, %v1938
      %v2451 = vadd.f32 %v2450, %v1939
      %v2452 = vadd.f32 %v2451, %v1940
      %v2453 = vadd.f32 %v2452, %v1941
      %v2454 = vadd.f32 %v2453, %v1942
      %v2455 = vadd.f32 %v2454, %v1943
      %v2456 = vadd.f32 %v2455, %v1944
      %v2457 = vadd.f32 %v2456, %v1945
      %v2458 = vadd.f32 %v2457, %v1946
      %v2459 = vadd.f32 %v2458, %v1947
      %v2460 = vadd.f32 %v2459, %v1948
      %v2461 = vadd.f32 %v2460, %v1949
      %v2462 = vadd.f32 %v2461, %v1950
      %v2463 = vadd.f32 %v2462, %v1951
      %v2464 = vadd.f32 %v2463, %v1952
      %v2465 = vadd.f32 %v2464, %v1953
      %v2466 = vadd.f32 %v2465, %v1954
      %v2467 = vadd.f32 %v2466, %v1955
      %v2468 = vadd.f32 %v2467, %v1956
      %v2469 = vadd.f32 %v2468, %v1957
      %v2470 = vadd.f32 %v2469, %v1958
      %v2471 = vadd.f32 %v2470, %v1959
      %v2472 = vadd.f32 %v2471, %v1960
      %v2473 = vadd.f32 %v2472, %v1961
      %v2474 = vadd.f32 %v2473, %v1962
      %v2475 = vadd.f32 %v2474, %v1963
      %v2476 = vadd.f32 %v2475, %v1964
      %v2477 = vadd.f32 %v2476, %v1965
      %v2478 = vadd.f32 %v2477, %v1966
      %v2479 = vadd.f32 %v2478, %v1967
      %v2480 = vadd.f32 %v2479, %v1968
      %v2481 = vadd.f32 %v2480, %v1969
      %v2482 = vadd.f32 %v2481, %v1970
      %v2483 = vadd.f32 %v2482, %v1971
      %v2484 = vadd.f32 %v2483, %v1972
      %v2485 = vadd.f32 %v2484, %v1973
      %v2486 = vadd.f32 %v2485, %v1974
      %v2487 = vadd.f32 %v2486, %v1975
      %v2488 = vadd.f32 %v2487, %v1976
      %v2489 = vadd.f32 %v2488, %v1977
      %v2490 = vadd.f32 %v2489, %v1978
      %v2491 = vadd.f32 %v2490, %v1979
      %v2492 = vadd.f32 %v2491, %v1980
      %v2493 = vadd.f32 %v2492, %v1981
      %v2494 = vadd.f32 %v2493, %v1982
      %v2495 = vadd.f32 %v2494, %v1983
      %v2496 = vadd.f32 %v2495, %v1984
      %v2497 = vadd.f32 %v2496, %v1985
      %v2498 = vadd.f32 %v2497, %v1986
      %v2499 = vadd.f32 %v2498, %v1987
      %v2500 = vadd.f32 %v2499, %v1988
      %v2501 = vadd.f32 %v2500, %v1989
      %v2502 = vadd.f32 %v2501, %v1990
      %v2503 = vadd.f32 %v2502, %v1991
      %v2504 = vadd.f32 %v2503, %v1992
      %v2505 = vadd.f32 %v2504, %v1993
      %v2506 = vadd.f32 %v2505, %v1994
      %v2507 = vadd.f32 %v2506, %v1995
      %v2508 = vadd.f32 %v2507, %v1996
      %v2509 = vadd.f32 %v2508, %v1997
      %v2510 = vadd.f32 %v2509, %v1998
      %v2511 = vadd.f32 %v2510, %v1999
      %v2512 = vadd.f32 %v2511, %v2000
      %v2513 = vadd.f32 %v2512, %v2001
      %v2514 = vadd.f32 %v2513, %v2002
      %v2515 = vadd.f32 %v2514, %v2003
      %v2516 = vadd.f32 %v2515, %v2004
      %v2517 = vadd.f32 %v2516, %v2005
      %v2518 = vadd.f32 %v2517, %v2006
      %v2519 = vadd.f32 %v2518, %v2007
      %v2520 = vadd.f32 %v2519, %v2008
      %v2521 = vadd.f32 %v2520, %v2009
      %v2522 = vadd.f32 %v2521, %v2010
      %v2523 = vadd.f32 %v2522, %v2011
      %v2524 = vadd.f32 %v2523, %v2012
      %v2525 = vadd.f32 %v2524, %v2013
      %v2526 = vadd.f32 %v2525, %v2014
      %v2527 = vadd.f32 %v2526, %v2015
      %v2528 = vadd.f32 %v2527, %v2016
      %v2529 = vadd.f32 %v2528, %v2017
      %v2530 = vadd.f32 %v2529, %v2018
      %v2531 = vadd.f32 %v2530, %v2019
      %v2532 = vadd.f32 %v2531, %v2020
      %v2533 = vadd.f32 %v2532, %v2021
      %v2534 = vadd.f32 %v2533, %v2022
      %v2535 = vadd.f32 %v2534, %v2023
      %v2536 = vadd.f32 %v2535, %v2024
      %v2537 = vadd.f32 %v2536, %v2025
      %v2538 = vadd.f32 %v2537, %v2026
      %v2539 = vadd.f32 %v2538, %v2027
      %v2540 = vadd.f32 %v2539, %v2028
      %v2541 = vadd.f32 %v2540, %v2029
      %v2542 = vadd.f32 %v2541, %v2030
      %v2543 = vadd.f32 %v2542, %v2031
      %v2544 = vadd.f32 %v2543, %v2032
      %v2545 = vadd.f32 %v2544, %v2033
      %v2546 = vadd.f32 %v2545, %v2034
      %v2547 = vadd.f32 %v2546, %v2035
      %v2548 = vadd.f32 %v2547, %v2036
      %v2549 = vadd.f32 %v2548, %v2037
      %v2550 = vadd.f32 %v2549, %v2038
      %v2551 = vadd.f32 %v2550, %v2039
      %v2552 = vadd.f32 %v2551, %v2040
      %v2553 = vadd.f32 %v2552, %v2041
      %v2554 = vadd.f32 %v2553, %v2042
      %v2555 = vadd.f32 %v2554, %v2043
      %v2556 = vadd.f32 %v2555, %v2044
      %v2557 = vadd.f32 %v2556, %v2045
      %v2558 = vadd.f32 %v2557, %v2046
      %v2559 = vadd.f32 %v2558, %v2047
      %v2560 = vadd.f32 %v2559, %v2048
      %v2561 = vadd.f32 %v2560, %v2049
      %v2562 = vadd.f32 %v2561, %v2050
      %v2563 = vadd.f32 %v2562, %v2051
      %v2564 = vadd.f32 %v2563, %v2052
      %v2565 = vadd.f32 %v2564, %v2053
      %v2566 = vadd.f32 %v2565, %v2054
      %v2567 = vadd.f32 %v2566, %v2055
      %v2568 = vadd.f32 %v2567, %v2056
      %v2569 = vadd.f32 %v2568, %v2057
      %v2570 = vadd.f32 %v2569, %v2058
      %v2571 = vadd.f32 %v2570, %v2059
      %v2572 = vadd.f32 %v2571, %v2060
      %v2573 = vadd.f32 %v2572, %v2061
      %v2574 = vadd.f32 %v2573, %v2062
      %v2575 = vadd.f32 %v2574, %v2063
      %v2576 = vadd.f32 %v2575, %v2064
      %v2577 = vadd.f32 %v2576, %v2065
      %v2578 = vadd.f32 %v2577, %v2066
      %v2579 = vadd.f32 %v2578, %v2067
      %v2580 = vadd.f32 %v2579, %v2068
      %v2581 = vadd.f32 %v2580, %v2069
      %v2582 = vadd.f32 %v2581, %v2070
      %v2583 = vadd.f32 %v2582, %v2071
      %v2584 = vadd.f32 %v2583, %v2072
      %v2585 = vadd.f32 %v2584, %v2073
      %v2586 = vadd.f32 %v2585, %v2074
      %v2587 = vadd.f32 %v2586, %v2075
      %v2588 = vadd.f32 %v2587, %v2076
      %v2589 = vadd.f32 %v2588, %v2077
      %v2590 = vadd.f32 %v2589, %v2078
      %v2591 = vadd.f32 %v2590, %v2079
      %v2592 = vadd.f32 %v2591, %v2080
      %v2593 = vadd.f32 %v2592, %v2081
      %v2594 = vadd.f32 %v2593, %v2082
      %v2595 = vadd.f32 %v2594, %v2083
      %v2596 = vadd.f32 %v2595, %v2084
      %v2597 = vadd.f32 %v2596, %v2085
      %v2598 = vadd.f32 %v2597, %v2086
      %v2599 = vadd.f32 %v2598, %v2087
      %v2600 = vadd.f32 %v2599, %v2088
      %v2601 = vadd.f32 %v2600, %v2089
      %v2602 = vadd.f32 %v2601, %v2090
      %v2603 = vadd.f32 %v2602, %v2091
      %v2604 = vadd.f32 %v2603, %v2092
      %v2605 = vadd.f32 %v2604, %v2093
      %v2606 = vadd.f32 %v2605, %v2094
      %v2607 = vadd.f32 %v2606, %v2095
      %v2608 = vadd.f32 %v2607, %v2096
      %v2609 = vadd.f32 %v2608, %v2097
      %v2610 = vadd.f32 %v2609, %v2098
      %v2611 = vadd.f32 %v2610, %v2099
      %v2612 = vadd.f32 %v2611, %v2100
      %v2613 = vadd.f32 %v2612, %v2101
      %v2614 = vadd.f32 %v2613, %v2102
      %v2615 = vadd.f32 %v2614, %v2103
      %v2616 = vadd.f32 %v2615, %v2104
      %v2617 = vadd.f32 %v2616, %v2105
      %v2618 = vadd.f32 %v2617, %v2106
      %v2619 = vadd.f32 %v2618, %v2107
      %v2620 = vadd.f32 %v2619, %v2108
      %v2621 = vadd.f32 %v2620, %v2109
      %v2622 = vadd.f32 %v2621, %v2110
      %v2623 = vadd.f32 %v2622, %v2111
      %v2624 = vadd.f32 %v2623, %v2112
      %v2625 = vadd.f32 %v2624, %v2113
      %v2626 = vadd.f32 %v2625, %v2114
      %v2627 = vadd.f32 %v2626, %v2115
      %v2628 = vadd.f32 %v2627, %v2116
      %v2629 = vadd.f32 %v2628, %v2117
      %v2630 = vadd.f32 %v2629, %v2118
      %v2631 = vadd.f32 %v2630, %v2119
      %v2632 = vadd.f32 %v2631, %v2120
      %v2633 = vadd.f32 %v2632, %v2121
      %v2634 = vadd.f32 %v2633, %v2122
      %v2635 = vadd.f32 %v2634, %v2123
      %v2636 = vadd.f32 %v2635, %v2124
      %v2637 = vadd.f32 %v2636, %v2125
      %v2638 = vadd.f32 %v2637, %v2126
      %v2639 = vadd.f32 %v2638, %v2127
      %v2640 = vadd.f32 %v2639, %v2128
      %v2641 = vadd.f32 %v2640, %v2129
      %v2642 = vadd.f32 %v2130, %v2641
      %2643 = vst [vmem:[#allocation2] sm:$0xff] %v2642
    $region25: #{tpu_custom_call.1} parent=1 // pred_fallthru
      _
    %p2644 = scmp.ge.s32.totalorder %s72, 0
    // Predicated region
    $region26: #{tpu_custom_call.1} parent=1 // pred_check
      %p2645 = pneg %p2644
    $region27: #{tpu_custom_call.1} parent=1 // pred_check_branch
      %2647 = sbr.rel (%p2645) target = $region29
    $region28: #{tpu_custom_call.1} parent=1 // pred_region
      %v2648 = vlaneseq
      %v2649 = vshrl.u32 %v2648, 7
      %v2650 = vadd.s32 %v2649, 8
      %v2651 = vadd.s32 %v2649, 16
      %v2652 = vadd.s32 %v2649, 24
      %v2653 = vadd.s32 %v2649, 32
      %v2654 = vadd.s32 %v2649, 40
      %v2655 = vadd.s32 %v2649, 48
      %v2656 = vadd.s32 %v2649, 56
      %v2657 = vadd.s32 %v2649, 64
      %v2658 = vadd.s32 %v2649, 72
      %v2659 = vadd.s32 %v2649, 80
      %v2660 = vadd.s32 %v2649, 88
      %v2661 = vadd.s32 %v2649, 96
      %v2662 = vadd.s32 %v2649, 104
      %v2663 = vadd.s32 %v2649, 112
      %v2664 = vadd.s32 %v2649, 120
      %v2665 = vadd.s32 %v2649, 128
      %v2666 = vadd.s32 %v2649, 136
      %v2667 = vadd.s32 %v2649, 144
      %v2668 = vadd.s32 %v2649, 152
      %v2669 = vadd.s32 %v2649, 160
      %v2670 = vadd.s32 %v2649, 168
      %v2671 = vadd.s32 %v2649, 176
      %v2672 = vadd.s32 %v2649, 184
      %v2673 = vadd.s32 %v2649, 192
      %v2674 = vadd.s32 %v2649, 200
      %v2675 = vadd.s32 %v2649, 208
      %v2676 = vadd.s32 %v2649, 216
      %v2677 = vadd.s32 %v2649, 224
      %v2678 = vadd.s32 %v2649, 232
      %v2679 = vadd.s32 %v2649, 240
      %v2680 = vadd.s32 %v2649, 248
      %v2681 = vadd.s32 %v2649, 256
      %v2682 = vadd.s32 %v2649, 264
      %v2683 = vadd.s32 %v2649, 272
      %v2684 = vadd.s32 %v2649, 280
      %v2685 = vadd.s32 %v2649, 288
      %v2686 = vadd.s32 %v2649, 296
      %v2687 = vadd.s32 %v2649, 304
      %v2688 = vadd.s32 %v2649, 312
      %v2689 = vadd.s32 %v2649, 320
      %v2690 = vadd.s32 %v2649, 328
      %v2691 = vadd.s32 %v2649, 336
      %v2692 = vadd.s32 %v2649, 344
      %v2693 = vadd.s32 %v2649, 352
      %v2694 = vadd.s32 %v2649, 360
      %v2695 = vadd.s32 %v2649, 368
      %v2696 = vadd.s32 %v2649, 376
      %v2697 = vadd.s32 %v2649, 384
      %v2698 = vadd.s32 %v2649, 392
      %v2699 = vadd.s32 %v2649, 400
      %v2700 = vadd.s32 %v2649, 408
      %v2701 = vadd.s32 %v2649, 416
      %v2702 = vadd.s32 %v2649, 424
      %v2703 = vadd.s32 %v2649, 432
      %v2704 = vadd.s32 %v2649, 440
      %v2705 = vadd.s32 %v2649, 448
      %v2706 = vadd.s32 %v2649, 456
      %v2707 = vadd.s32 %v2649, 464
      %v2708 = vadd.s32 %v2649, 472
      %v2709 = vadd.s32 %v2649, 480
      %v2710 = vadd.s32 %v2649, 488
      %v2711 = vadd.s32 %v2649, 496
      %v2712 = vadd.s32 %v2649, 504
      %v2713 = vadd.s32 %v2649, 512
      %v2714 = vadd.s32 %v2649, 520
      %v2715 = vadd.s32 %v2649, 528
      %v2716 = vadd.s32 %v2649, 536
      %v2717 = vadd.s32 %v2649, 544
      %v2718 = vadd.s32 %v2649, 552
      %v2719 = vadd.s32 %v2649, 560
      %v2720 = vadd.s32 %v2649, 568
      %v2721 = vadd.s32 %v2649, 576
      %v2722 = vadd.s32 %v2649, 584
      %v2723 = vadd.s32 %v2649, 592
      %v2724 = vadd.s32 %v2649, 600
      %v2725 = vadd.s32 %v2649, 608
      %v2726 = vadd.s32 %v2649, 616
      %v2727 = vadd.s32 %v2649, 624
      %v2728 = vadd.s32 %v2649, 632
      %v2729 = vadd.s32 %v2649, 640
      %v2730 = vadd.s32 %v2649, 648
      %v2731 = vadd.s32 %v2649, 656
      %v2732 = vadd.s32 %v2649, 664
      %v2733 = vadd.s32 %v2649, 672
      %v2734 = vadd.s32 %v2649, 680
      %v2735 = vadd.s32 %v2649, 688
      %v2736 = vadd.s32 %v2649, 696
      %v2737 = vadd.s32 %v2649, 704
      %v2738 = vadd.s32 %v2649, 712
      %v2739 = vadd.s32 %v2649, 720
      %v2740 = vadd.s32 %v2649, 728
      %v2741 = vadd.s32 %v2649, 736
      %v2742 = vadd.s32 %v2649, 744
      %v2743 = vadd.s32 %v2649, 752
      %v2744 = vadd.s32 %v2649, 760
      %v2745 = vadd.s32 %v2649, 768
      %v2746 = vadd.s32 %v2649, 776
      %v2747 = vadd.s32 %v2649, 784
      %v2748 = vadd.s32 %v2649, 792
      %v2749 = vadd.s32 %v2649, 800
      %v2750 = vadd.s32 %v2649, 808
      %v2751 = vadd.s32 %v2649, 816
      %v2752 = vadd.s32 %v2649, 824
      %v2753 = vadd.s32 %v2649, 832
      %v2754 = vadd.s32 %v2649, 840
      %v2755 = vadd.s32 %v2649, 848
      %v2756 = vadd.s32 %v2649, 856
      %v2757 = vadd.s32 %v2649, 864
      %v2758 = vadd.s32 %v2649, 872
      %v2759 = vadd.s32 %v2649, 880
      %v2760 = vadd.s32 %v2649, 888
      %v2761 = vadd.s32 %v2649, 896
      %v2762 = vadd.s32 %v2649, 904
      %v2763 = vadd.s32 %v2649, 912
      %v2764 = vadd.s32 %v2649, 920
      %v2765 = vadd.s32 %v2649, 928
      %v2766 = vadd.s32 %v2649, 936
      %v2767 = vadd.s32 %v2649, 944
      %v2768 = vadd.s32 %v2649, 952
      %v2769 = vadd.s32 %v2649, 960
      %v2770 = vadd.s32 %v2649, 968
      %v2771 = vadd.s32 %v2649, 976
      %v2772 = vadd.s32 %v2649, 984
      %v2773 = vadd.s32 %v2649, 992
      %v2774 = vadd.s32 %v2649, 1000
      %v2775 = vadd.s32 %v2649, 1008
      %v2776 = vadd.s32 %v2649, 1016
      %v2777 = vadd.s32 %v2649, 1024
      %v2778 = vadd.s32 %v2649, 1032
      %v2779 = vadd.s32 %v2649, 1040
      %v2780 = vadd.s32 %v2649, 1048
      %v2781 = vadd.s32 %v2649, 1056
      %v2782 = vadd.s32 %v2649, 1064
      %v2783 = vadd.s32 %v2649, 1072
      %v2784 = vadd.s32 %v2649, 1080
      %v2785 = vadd.s32 %v2649, 1088
      %v2786 = vadd.s32 %v2649, 1096
      %v2787 = vadd.s32 %v2649, 1104
      %v2788 = vadd.s32 %v2649, 1112
      %v2789 = vadd.s32 %v2649, 1120
      %v2790 = vadd.s32 %v2649, 1128
      %v2791 = vadd.s32 %v2649, 1136
      %v2792 = vadd.s32 %v2649, 1144
      %v2793 = vadd.s32 %v2649, 1152
      %v2794 = vadd.s32 %v2649, 1160
      %v2795 = vadd.s32 %v2649, 1168
      %v2796 = vadd.s32 %v2649, 1176
      %v2797 = vadd.s32 %v2649, 1184
      %v2798 = vadd.s32 %v2649, 1192
      %v2799 = vadd.s32 %v2649, 1200
      %v2800 = vadd.s32 %v2649, 1208
      %v2801 = vadd.s32 %v2649, 1216
      %v2802 = vadd.s32 %v2649, 1224
      %v2803 = vadd.s32 %v2649, 1232
      %v2804 = vadd.s32 %v2649, 1240
      %v2805 = vadd.s32 %v2649, 1248
      %v2806 = vadd.s32 %v2649, 1256
      %v2807 = vadd.s32 %v2649, 1264
      %v2808 = vadd.s32 %v2649, 1272
      %v2809 = vadd.s32 %v2649, 1280
      %v2810 = vadd.s32 %v2649, 1288
      %v2811 = vadd.s32 %v2649, 1296
      %v2812 = vadd.s32 %v2649, 1304
      %v2813 = vadd.s32 %v2649, 1312
      %v2814 = vadd.s32 %v2649, 1320
      %v2815 = vadd.s32 %v2649, 1328
      %v2816 = vadd.s32 %v2649, 1336
      %v2817 = vadd.s32 %v2649, 1344
      %v2818 = vadd.s32 %v2649, 1352
      %v2819 = vadd.s32 %v2649, 1360
      %v2820 = vadd.s32 %v2649, 1368
      %v2821 = vadd.s32 %v2649, 1376
      %v2822 = vadd.s32 %v2649, 1384
      %v2823 = vadd.s32 %v2649, 1392
      %v2824 = vadd.s32 %v2649, 1400
      %v2825 = vadd.s32 %v2649, 1408
      %v2826 = vadd.s32 %v2649, 1416
      %v2827 = vadd.s32 %v2649, 1424
      %v2828 = vadd.s32 %v2649, 1432
      %v2829 = vadd.s32 %v2649, 1440
      %v2830 = vadd.s32 %v2649, 1448
      %v2831 = vadd.s32 %v2649, 1456
      %v2832 = vadd.s32 %v2649, 1464
      %v2833 = vadd.s32 %v2649, 1472
      %v2834 = vadd.s32 %v2649, 1480
      %v2835 = vadd.s32 %v2649, 1488
      %v2836 = vadd.s32 %v2649, 1496
      %v2837 = vadd.s32 %v2649, 1504
      %v2838 = vadd.s32 %v2649, 1512
      %v2839 = vadd.s32 %v2649, 1520
      %v2840 = vadd.s32 %v2649, 1528
      %v2841 = vadd.s32 %v2649, 1536
      %v2842 = vadd.s32 %v2649, 1544
      %v2843 = vadd.s32 %v2649, 1552
      %v2844 = vadd.s32 %v2649, 1560
      %v2845 = vadd.s32 %v2649, 1568
      %v2846 = vadd.s32 %v2649, 1576
      %v2847 = vadd.s32 %v2649, 1584
      %v2848 = vadd.s32 %v2649, 1592
      %v2849 = vadd.s32 %v2649, 1600
      %v2850 = vadd.s32 %v2649, 1608
      %v2851 = vadd.s32 %v2649, 1616
      %v2852 = vadd.s32 %v2649, 1624
      %v2853 = vadd.s32 %v2649, 1632
      %v2854 = vadd.s32 %v2649, 1640
      %v2855 = vadd.s32 %v2649, 1648
      %v2856 = vadd.s32 %v2649, 1656
      %v2857 = vadd.s32 %v2649, 1664
      %v2858 = vadd.s32 %v2649, 1672
      %v2859 = vadd.s32 %v2649, 1680
      %v2860 = vadd.s32 %v2649, 1688
      %v2861 = vadd.s32 %v2649, 1696
      %v2862 = vadd.s32 %v2649, 1704
      %v2863 = vadd.s32 %v2649, 1712
      %v2864 = vadd.s32 %v2649, 1720
      %v2865 = vadd.s32 %v2649, 1728
      %v2866 = vadd.s32 %v2649, 1736
      %v2867 = vadd.s32 %v2649, 1744
      %v2868 = vadd.s32 %v2649, 1752
      %v2869 = vadd.s32 %v2649, 1760
      %v2870 = vadd.s32 %v2649, 1768
      %v2871 = vadd.s32 %v2649, 1776
      %v2872 = vadd.s32 %v2649, 1784
      %v2873 = vadd.s32 %v2649, 1792
      %v2874 = vadd.s32 %v2649, 1800
      %v2875 = vadd.s32 %v2649, 1808
      %v2876 = vadd.s32 %v2649, 1816
      %v2877 = vadd.s32 %v2649, 1824
      %v2878 = vadd.s32 %v2649, 1832
      %v2879 = vadd.s32 %v2649, 1840
      %v2880 = vadd.s32 %v2649, 1848
      %v2881 = vadd.s32 %v2649, 1856
      %v2882 = vadd.s32 %v2649, 1864
      %v2883 = vadd.s32 %v2649, 1872
      %v2884 = vadd.s32 %v2649, 1880
      %v2885 = vadd.s32 %v2649, 1888
      %v2886 = vadd.s32 %v2649, 1896
      %v2887 = vadd.s32 %v2649, 1904
      %v2888 = vadd.s32 %v2649, 1912
      %v2889 = vadd.s32 %v2649, 1920
      %v2890 = vadd.s32 %v2649, 1928
      %v2891 = vadd.s32 %v2649, 1936
      %v2892 = vadd.s32 %v2649, 1944
      %v2893 = vadd.s32 %v2649, 1952
      %v2894 = vadd.s32 %v2649, 1960
      %v2895 = vadd.s32 %v2649, 1968
      %v2896 = vadd.s32 %v2649, 1976
      %v2897 = vadd.s32 %v2649, 1984
      %v2898 = vadd.s32 %v2649, 1992
      %v2899 = vadd.s32 %v2649, 2000
      %v2900 = vadd.s32 %v2649, 2008
      %v2901 = vadd.s32 %v2649, 2016
      %v2902 = vadd.s32 %v2649, 2024
      %v2903 = vadd.s32 %v2649, 2032
      %v2904 = vadd.s32 %v2649, 2040
      %v2905 = vadd.s32 %v2649, 2048
      %v2906 = vadd.s32 %v2649, 2056
      %v2907 = vadd.s32 %v2649, 2064
      %v2908 = vadd.s32 %v2649, 2072
      %v2909 = vadd.s32 %v2649, 2080
      %v2910 = vadd.s32 %v2649, 2088
      %v2911 = vadd.s32 %v2649, 2096
      %v2912 = vadd.s32 %v2649, 2104
      %v2913 = vadd.s32 %v2649, 2112
      %v2914 = vadd.s32 %v2649, 2120
      %v2915 = vadd.s32 %v2649, 2128
      %v2916 = vadd.s32 %v2649, 2136
      %v2917 = vadd.s32 %v2649, 2144
      %v2918 = vadd.s32 %v2649, 2152
      %v2919 = vadd.s32 %v2649, 2160
      %v2920 = vadd.s32 %v2649, 2168
      %v2921 = vadd.s32 %v2649, 2176
      %v2922 = vadd.s32 %v2649, 2184
      %v2923 = vadd.s32 %v2649, 2192
      %v2924 = vadd.s32 %v2649, 2200
      %v2925 = vadd.s32 %v2649, 2208
      %v2926 = vadd.s32 %v2649, 2216
      %v2927 = vadd.s32 %v2649, 2224
      %v2928 = vadd.s32 %v2649, 2232
      %v2929 = vadd.s32 %v2649, 2240
      %v2930 = vadd.s32 %v2649, 2248
      %v2931 = vadd.s32 %v2649, 2256
      %v2932 = vadd.s32 %v2649, 2264
      %v2933 = vadd.s32 %v2649, 2272
      %v2934 = vadd.s32 %v2649, 2280
      %v2935 = vadd.s32 %v2649, 2288
      %v2936 = vadd.s32 %v2649, 2296
      %v2937 = vadd.s32 %v2649, 2304
      %v2938 = vadd.s32 %v2649, 2312
      %v2939 = vadd.s32 %v2649, 2320
      %v2940 = vadd.s32 %v2649, 2328
      %v2941 = vadd.s32 %v2649, 2336
      %v2942 = vadd.s32 %v2649, 2344
      %v2943 = vadd.s32 %v2649, 2352
      %v2944 = vadd.s32 %v2649, 2360
      %v2945 = vadd.s32 %v2649, 2368
      %v2946 = vadd.s32 %v2649, 2376
      %v2947 = vadd.s32 %v2649, 2384
      %v2948 = vadd.s32 %v2649, 2392
      %v2949 = vadd.s32 %v2649, 2400
      %v2950 = vadd.s32 %v2649, 2408
      %v2951 = vadd.s32 %v2649, 2416
      %v2952 = vadd.s32 %v2649, 2424
      %v2953 = vadd.s32 %v2649, 2432
      %v2954 = vadd.s32 %v2649, 2440
      %v2955 = vadd.s32 %v2649, 2448
      %v2956 = vadd.s32 %v2649, 2456
      %v2957 = vadd.s32 %v2649, 2464
      %v2958 = vadd.s32 %v2649, 2472
      %v2959 = vadd.s32 %v2649, 2480
      %v2960 = vadd.s32 %v2649, 2488
      %v2961 = vadd.s32 %v2649, 2496
      %v2962 = vadd.s32 %v2649, 2504
      %v2963 = vadd.s32 %v2649, 2512
      %v2964 = vadd.s32 %v2649, 2520
      %v2965 = vadd.s32 %v2649, 2528
      %v2966 = vadd.s32 %v2649, 2536
      %v2967 = vadd.s32 %v2649, 2544
      %v2968 = vadd.s32 %v2649, 2552
      %v2969 = vadd.s32 %v2649, 2560
      %v2970 = vadd.s32 %v2649, 2568
      %v2971 = vadd.s32 %v2649, 2576
      %v2972 = vadd.s32 %v2649, 2584
      %v2973 = vadd.s32 %v2649, 2592
      %v2974 = vadd.s32 %v2649, 2600
      %v2975 = vadd.s32 %v2649, 2608
      %v2976 = vadd.s32 %v2649, 2616
      %v2977 = vadd.s32 %v2649, 2624
      %v2978 = vadd.s32 %v2649, 2632
      %v2979 = vadd.s32 %v2649, 2640
      %v2980 = vadd.s32 %v2649, 2648
      %v2981 = vadd.s32 %v2649, 2656
      %v2982 = vadd.s32 %v2649, 2664
      %v2983 = vadd.s32 %v2649, 2672
      %v2984 = vadd.s32 %v2649, 2680
      %v2985 = vadd.s32 %v2649, 2688
      %v2986 = vadd.s32 %v2649, 2696
      %v2987 = vadd.s32 %v2649, 2704
      %v2988 = vadd.s32 %v2649, 2712
      %v2989 = vadd.s32 %v2649, 2720
      %v2990 = vadd.s32 %v2649, 2728
      %v2991 = vadd.s32 %v2649, 2736
      %v2992 = vadd.s32 %v2649, 2744
      %v2993 = vadd.s32 %v2649, 2752
      %v2994 = vadd.s32 %v2649, 2760
      %v2995 = vadd.s32 %v2649, 2768
      %v2996 = vadd.s32 %v2649, 2776
      %v2997 = vadd.s32 %v2649, 2784
      %v2998 = vadd.s32 %v2649, 2792
      %v2999 = vadd.s32 %v2649, 2800
      %v3000 = vadd.s32 %v2649, 2808
      %v3001 = vadd.s32 %v2649, 2816
      %v3002 = vadd.s32 %v2649, 2824
      %v3003 = vadd.s32 %v2649, 2832
      %v3004 = vadd.s32 %v2649, 2840
      %v3005 = vadd.s32 %v2649, 2848
      %v3006 = vadd.s32 %v2649, 2856
      %v3007 = vadd.s32 %v2649, 2864
      %v3008 = vadd.s32 %v2649, 2872
      %v3009 = vadd.s32 %v2649, 2880
      %v3010 = vadd.s32 %v2649, 2888
      %v3011 = vadd.s32 %v2649, 2896
      %v3012 = vadd.s32 %v2649, 2904
      %v3013 = vadd.s32 %v2649, 2912
      %v3014 = vadd.s32 %v2649, 2920
      %v3015 = vadd.s32 %v2649, 2928
      %v3016 = vadd.s32 %v2649, 2936
      %v3017 = vadd.s32 %v2649, 2944
      %v3018 = vadd.s32 %v2649, 2952
      %v3019 = vadd.s32 %v2649, 2960
      %v3020 = vadd.s32 %v2649, 2968
      %v3021 = vadd.s32 %v2649, 2976
      %v3022 = vadd.s32 %v2649, 2984
      %v3023 = vadd.s32 %v2649, 2992
      %v3024 = vadd.s32 %v2649, 3000
      %v3025 = vadd.s32 %v2649, 3008
      %v3026 = vadd.s32 %v2649, 3016
      %v3027 = vadd.s32 %v2649, 3024
      %v3028 = vadd.s32 %v2649, 3032
      %v3029 = vadd.s32 %v2649, 3040
      %v3030 = vadd.s32 %v2649, 3048
      %v3031 = vadd.s32 %v2649, 3056
      %v3032 = vadd.s32 %v2649, 3064
      %v3033 = vadd.s32 %v2649, 3072
      %v3034 = vadd.s32 %v2649, 3080
      %v3035 = vadd.s32 %v2649, 3088
      %v3036 = vadd.s32 %v2649, 3096
      %v3037 = vadd.s32 %v2649, 3104
      %v3038 = vadd.s32 %v2649, 3112
      %v3039 = vadd.s32 %v2649, 3120
      %v3040 = vadd.s32 %v2649, 3128
      %v3041 = vadd.s32 %v2649, 3136
      %v3042 = vadd.s32 %v2649, 3144
      %v3043 = vadd.s32 %v2649, 3152
      %v3044 = vadd.s32 %v2649, 3160
      %v3045 = vadd.s32 %v2649, 3168
      %v3046 = vadd.s32 %v2649, 3176
      %v3047 = vadd.s32 %v2649, 3184
      %v3048 = vadd.s32 %v2649, 3192
      %v3049 = vadd.s32 %v2649, 3200
      %v3050 = vadd.s32 %v2649, 3208
      %v3051 = vadd.s32 %v2649, 3216
      %v3052 = vadd.s32 %v2649, 3224
      %v3053 = vadd.s32 %v2649, 3232
      %v3054 = vadd.s32 %v2649, 3240
      %v3055 = vadd.s32 %v2649, 3248
      %v3056 = vadd.s32 %v2649, 3256
      %v3057 = vadd.s32 %v2649, 3264
      %v3058 = vadd.s32 %v2649, 3272
      %v3059 = vadd.s32 %v2649, 3280
      %v3060 = vadd.s32 %v2649, 3288
      %v3061 = vadd.s32 %v2649, 3296
      %v3062 = vadd.s32 %v2649, 3304
      %v3063 = vadd.s32 %v2649, 3312
      %v3064 = vadd.s32 %v2649, 3320
      %v3065 = vadd.s32 %v2649, 3328
      %v3066 = vadd.s32 %v2649, 3336
      %v3067 = vadd.s32 %v2649, 3344
      %v3068 = vadd.s32 %v2649, 3352
      %v3069 = vadd.s32 %v2649, 3360
      %v3070 = vadd.s32 %v2649, 3368
      %v3071 = vadd.s32 %v2649, 3376
      %v3072 = vadd.s32 %v2649, 3384
      %v3073 = vadd.s32 %v2649, 3392
      %v3074 = vadd.s32 %v2649, 3400
      %v3075 = vadd.s32 %v2649, 3408
      %v3076 = vadd.s32 %v2649, 3416
      %v3077 = vadd.s32 %v2649, 3424
      %v3078 = vadd.s32 %v2649, 3432
      %v3079 = vadd.s32 %v2649, 3440
      %v3080 = vadd.s32 %v2649, 3448
      %v3081 = vadd.s32 %v2649, 3456
      %v3082 = vadd.s32 %v2649, 3464
      %v3083 = vadd.s32 %v2649, 3472
      %v3084 = vadd.s32 %v2649, 3480
      %v3085 = vadd.s32 %v2649, 3488
      %v3086 = vadd.s32 %v2649, 3496
      %v3087 = vadd.s32 %v2649, 3504
      %v3088 = vadd.s32 %v2649, 3512
      %v3089 = vadd.s32 %v2649, 3520
      %v3090 = vadd.s32 %v2649, 3528
      %v3091 = vadd.s32 %v2649, 3536
      %v3092 = vadd.s32 %v2649, 3544
      %v3093 = vadd.s32 %v2649, 3552
      %v3094 = vadd.s32 %v2649, 3560
      %v3095 = vadd.s32 %v2649, 3568
      %v3096 = vadd.s32 %v2649, 3576
      %v3097 = vadd.s32 %v2649, 3584
      %v3098 = vadd.s32 %v2649, 3592
      %v3099 = vadd.s32 %v2649, 3600
      %v3100 = vadd.s32 %v2649, 3608
      %v3101 = vadd.s32 %v2649, 3616
      %v3102 = vadd.s32 %v2649, 3624
      %v3103 = vadd.s32 %v2649, 3632
      %v3104 = vadd.s32 %v2649, 3640
      %v3105 = vadd.s32 %v2649, 3648
      %v3106 = vadd.s32 %v2649, 3656
      %v3107 = vadd.s32 %v2649, 3664
      %v3108 = vadd.s32 %v2649, 3672
      %v3109 = vadd.s32 %v2649, 3680
      %v3110 = vadd.s32 %v2649, 3688
      %v3111 = vadd.s32 %v2649, 3696
      %v3112 = vadd.s32 %v2649, 3704
      %v3113 = vadd.s32 %v2649, 3712
      %v3114 = vadd.s32 %v2649, 3720
      %v3115 = vadd.s32 %v2649, 3728
      %v3116 = vadd.s32 %v2649, 3736
      %v3117 = vadd.s32 %v2649, 3744
      %v3118 = vadd.s32 %v2649, 3752
      %v3119 = vadd.s32 %v2649, 3760
      %v3120 = vadd.s32 %v2649, 3768
      %v3121 = vadd.s32 %v2649, 3776
      %v3122 = vadd.s32 %v2649, 3784
      %v3123 = vadd.s32 %v2649, 3792
      %v3124 = vadd.s32 %v2649, 3800
      %v3125 = vadd.s32 %v2649, 3808
      %v3126 = vadd.s32 %v2649, 3816
      %v3127 = vadd.s32 %v2649, 3824
      %v3128 = vadd.s32 %v2649, 3832
      %v3129 = vadd.s32 %v2649, 3840
      %v3130 = vadd.s32 %v2649, 3848
      %v3131 = vadd.s32 %v2649, 3856
      %v3132 = vadd.s32 %v2649, 3864
      %v3133 = vadd.s32 %v2649, 3872
      %v3134 = vadd.s32 %v2649, 3880
      %v3135 = vadd.s32 %v2649, 3888
      %v3136 = vadd.s32 %v2649, 3896
      %v3137 = vadd.s32 %v2649, 3904
      %v3138 = vadd.s32 %v2649, 3912
      %v3139 = vadd.s32 %v2649, 3920
      %v3140 = vadd.s32 %v2649, 3928
      %v3141 = vadd.s32 %v2649, 3936
      %v3142 = vadd.s32 %v2649, 3944
      %v3143 = vadd.s32 %v2649, 3952
      %v3144 = vadd.s32 %v2649, 3960
      %v3145 = vadd.s32 %v2649, 3968
      %v3146 = vadd.s32 %v2649, 3976
      %v3147 = vadd.s32 %v2649, 3984
      %v3148 = vadd.s32 %v2649, 3992
      %v3149 = vadd.s32 %v2649, 4000
      %v3150 = vadd.s32 %v2649, 4008
      %v3151 = vadd.s32 %v2649, 4016
      %v3152 = vadd.s32 %v2649, 4024
      %v3153 = vadd.s32 %v2649, 4032
      %v3154 = vadd.s32 %v2649, 4040
      %v3155 = vadd.s32 %v2649, 4048
      %v3156 = vadd.s32 %v2649, 4056
      %v3157 = vadd.s32 %v2649, 4064
      %v3158 = vadd.s32 %v2649, 4072
      %v3159 = vadd.s32 %v2649, 4080
      %v3160 = vadd.s32 %v2649, 4088
      %s3161 = smul.u32 %s72, 4096
      %v3162 = vstv %s3161
      %v3163 = vadd.s32 %v2649, %v3162
      %v3164 = vadd.s32 %v2650, %v3162
      %v3165 = vadd.s32 %v2651, %v3162
      %v3166 = vadd.s32 %v2652, %v3162
      %v3167 = vadd.s32 %v2653, %v3162
      %v3168 = vadd.s32 %v2654, %v3162
      %v3169 = vadd.s32 %v2655, %v3162
      %v3170 = vadd.s32 %v2656, %v3162
      %v3171 = vadd.s32 %v2657, %v3162
      %v3172 = vadd.s32 %v2658, %v3162
      %v3173 = vadd.s32 %v2659, %v3162
      %v3174 = vadd.s32 %v2660, %v3162
      %v3175 = vadd.s32 %v2661, %v3162
      %v3176 = vadd.s32 %v2662, %v3162
      %v3177 = vadd.s32 %v2663, %v3162
      %v3178 = vadd.s32 %v2664, %v3162
      %v3179 = vadd.s32 %v2665, %v3162
      %v3180 = vadd.s32 %v2666, %v3162
      %v3181 = vadd.s32 %v2667, %v3162
      %v3182 = vadd.s32 %v2668, %v3162
      %v3183 = vadd.s32 %v2669, %v3162
      %v3184 = vadd.s32 %v2670, %v3162
      %v3185 = vadd.s32 %v2671, %v3162
      %v3186 = vadd.s32 %v2672, %v3162
      %v3187 = vadd.s32 %v2673, %v3162
      %v3188 = vadd.s32 %v2674, %v3162
      %v3189 = vadd.s32 %v2675, %v3162
      %v3190 = vadd.s32 %v2676, %v3162
      %v3191 = vadd.s32 %v2677, %v3162
      %v3192 = vadd.s32 %v2678, %v3162
      %v3193 = vadd.s32 %v2679, %v3162
      %v3194 = vadd.s32 %v2680, %v3162
      %v3195 = vadd.s32 %v2681, %v3162
      %v3196 = vadd.s32 %v2682, %v3162
      %v3197 = vadd.s32 %v2683, %v3162
      %v3198 = vadd.s32 %v2684, %v3162
      %v3199 = vadd.s32 %v2685, %v3162
      %v3200 = vadd.s32 %v2686, %v3162
      %v3201 = vadd.s32 %v2687, %v3162
      %v3202 = vadd.s32 %v2688, %v3162
      %v3203 = vadd.s32 %v2689, %v3162
      %v3204 = vadd.s32 %v2690, %v3162
      %v3205 = vadd.s32 %v2691, %v3162
      %v3206 = vadd.s32 %v2692, %v3162
      %v3207 = vadd.s32 %v2693, %v3162
      %v3208 = vadd.s32 %v2694, %v3162
      %v3209 = vadd.s32 %v2695, %v3162
      %v3210 = vadd.s32 %v2696, %v3162
      %v3211 = vadd.s32 %v2697, %v3162
      %v3212 = vadd.s32 %v2698, %v3162
      %v3213 = vadd.s32 %v2699, %v3162
      %v3214 = vadd.s32 %v2700, %v3162
      %v3215 = vadd.s32 %v2701, %v3162
      %v3216 = vadd.s32 %v2702, %v3162
      %v3217 = vadd.s32 %v2703, %v3162
      %v3218 = vadd.s32 %v2704, %v3162
      %v3219 = vadd.s32 %v2705, %v3162
      %v3220 = vadd.s32 %v2706, %v3162
      %v3221 = vadd.s32 %v2707, %v3162
      %v3222 = vadd.s32 %v2708, %v3162
      %v3223 = vadd.s32 %v2709, %v3162
      %v3224 = vadd.s32 %v2710, %v3162
      %v3225 = vadd.s32 %v2711, %v3162
      %v3226 = vadd.s32 %v2712, %v3162
      %v3227 = vadd.s32 %v2713, %v3162
      %v3228 = vadd.s32 %v2714, %v3162
      %v3229 = vadd.s32 %v2715, %v3162
      %v3230 = vadd.s32 %v2716, %v3162
      %v3231 = vadd.s32 %v2717, %v3162
      %v3232 = vadd.s32 %v2718, %v3162
      %v3233 = vadd.s32 %v2719, %v3162
      %v3234 = vadd.s32 %v2720, %v3162
      %v3235 = vadd.s32 %v2721, %v3162
      %v3236 = vadd.s32 %v2722, %v3162
      %v3237 = vadd.s32 %v2723, %v3162
      %v3238 = vadd.s32 %v2724, %v3162
      %v3239 = vadd.s32 %v2725, %v3162
      %v3240 = vadd.s32 %v2726, %v3162
      %v3241 = vadd.s32 %v2727, %v3162
      %v3242 = vadd.s32 %v2728, %v3162
      %v3243 = vadd.s32 %v2729, %v3162
      %v3244 = vadd.s32 %v2730, %v3162
      %v3245 = vadd.s32 %v2731, %v3162
      %v3246 = vadd.s32 %v2732, %v3162
      %v3247 = vadd.s32 %v2733, %v3162
      %v3248 = vadd.s32 %v2734, %v3162
      %v3249 = vadd.s32 %v2735, %v3162
      %v3250 = vadd.s32 %v2736, %v3162
      %v3251 = vadd.s32 %v2737, %v3162
      %v3252 = vadd.s32 %v2738, %v3162
      %v3253 = vadd.s32 %v2739, %v3162
      %v3254 = vadd.s32 %v2740, %v3162
      %v3255 = vadd.s32 %v2741, %v3162
      %v3256 = vadd.s32 %v2742, %v3162
      %v3257 = vadd.s32 %v2743, %v3162
      %v3258 = vadd.s32 %v2744, %v3162
      %v3259 = vadd.s32 %v2745, %v3162
      %v3260 = vadd.s32 %v2746, %v3162
      %v3261 = vadd.s32 %v2747, %v3162
      %v3262 = vadd.s32 %v2748, %v3162
      %v3263 = vadd.s32 %v2749, %v3162
      %v3264 = vadd.s32 %v2750, %v3162
      %v3265 = vadd.s32 %v2751, %v3162
      %v3266 = vadd.s32 %v2752, %v3162
      %v3267 = vadd.s32 %v2753, %v3162
      %v3268 = vadd.s32 %v2754, %v3162
      %v3269 = vadd.s32 %v2755, %v3162
      %v3270 = vadd.s32 %v2756, %v3162
      %v3271 = vadd.s32 %v2757, %v3162
      %v3272 = vadd.s32 %v2758, %v3162
      %v3273 = vadd.s32 %v2759, %v3162
      %v3274 = vadd.s32 %v2760, %v3162
      %v3275 = vadd.s32 %v2761, %v3162
      %v3276 = vadd.s32 %v2762, %v3162
      %v3277 = vadd.s32 %v2763, %v3162
      %v3278 = vadd.s32 %v2764, %v3162
      %v3279 = vadd.s32 %v2765, %v3162
      %v3280 = vadd.s32 %v2766, %v3162
      %v3281 = vadd.s32 %v2767, %v3162
      %v3282 = vadd.s32 %v2768, %v3162
      %v3283 = vadd.s32 %v2769, %v3162
      %v3284 = vadd.s32 %v2770, %v3162
      %v3285 = vadd.s32 %v2771, %v3162
      %v3286 = vadd.s32 %v2772, %v3162
      %v3287 = vadd.s32 %v2773, %v3162
      %v3288 = vadd.s32 %v2774, %v3162
      %v3289 = vadd.s32 %v2775, %v3162
      %v3290 = vadd.s32 %v2776, %v3162
      %v3291 = vadd.s32 %v2777, %v3162
      %v3292 = vadd.s32 %v2778, %v3162
      %v3293 = vadd.s32 %v2779, %v3162
      %v3294 = vadd.s32 %v2780, %v3162
      %v3295 = vadd.s32 %v2781, %v3162
      %v3296 = vadd.s32 %v2782, %v3162
      %v3297 = vadd.s32 %v2783, %v3162
      %v3298 = vadd.s32 %v2784, %v3162
      %v3299 = vadd.s32 %v2785, %v3162
      %v3300 = vadd.s32 %v2786, %v3162
      %v3301 = vadd.s32 %v2787, %v3162
      %v3302 = vadd.s32 %v2788, %v3162
      %v3303 = vadd.s32 %v2789, %v3162
      %v3304 = vadd.s32 %v2790, %v3162
      %v3305 = vadd.s32 %v2791, %v3162
      %v3306 = vadd.s32 %v2792, %v3162
      %v3307 = vadd.s32 %v2793, %v3162
      %v3308 = vadd.s32 %v2794, %v3162
      %v3309 = vadd.s32 %v2795, %v3162
      %v3310 = vadd.s32 %v2796, %v3162
      %v3311 = vadd.s32 %v2797, %v3162
      %v3312 = vadd.s32 %v2798, %v3162
      %v3313 = vadd.s32 %v2799, %v3162
      %v3314 = vadd.s32 %v2800, %v3162
      %v3315 = vadd.s32 %v2801, %v3162
      %v3316 = vadd.s32 %v2802, %v3162
      %v3317 = vadd.s32 %v2803, %v3162
      %v3318 = vadd.s32 %v2804, %v3162
      %v3319 = vadd.s32 %v2805, %v3162
      %v3320 = vadd.s32 %v2806, %v3162
      %v3321 = vadd.s32 %v2807, %v3162
      %v3322 = vadd.s32 %v2808, %v3162
      %v3323 = vadd.s32 %v2809, %v3162
      %v3324 = vadd.s32 %v2810, %v3162
      %v3325 = vadd.s32 %v2811, %v3162
      %v3326 = vadd.s32 %v2812, %v3162
      %v3327 = vadd.s32 %v2813, %v3162
      %v3328 = vadd.s32 %v2814, %v3162
      %v3329 = vadd.s32 %v2815, %v3162
      %v3330 = vadd.s32 %v2816, %v3162
      %v3331 = vadd.s32 %v2817, %v3162
      %v3332 = vadd.s32 %v2818, %v3162
      %v3333 = vadd.s32 %v2819, %v3162
      %v3334 = vadd.s32 %v2820, %v3162
      %v3335 = vadd.s32 %v2821, %v3162
      %v3336 = vadd.s32 %v2822, %v3162
      %v3337 = vadd.s32 %v2823, %v3162
      %v3338 = vadd.s32 %v2824, %v3162
      %v3339 = vadd.s32 %v2825, %v3162
      %v3340 = vadd.s32 %v2826, %v3162
      %v3341 = vadd.s32 %v2827, %v3162
      %v3342 = vadd.s32 %v2828, %v3162
      %v3343 = vadd.s32 %v2829, %v3162
      %v3344 = vadd.s32 %v2830, %v3162
      %v3345 = vadd.s32 %v2831, %v3162
      %v3346 = vadd.s32 %v2832, %v3162
      %v3347 = vadd.s32 %v2833, %v3162
      %v3348 = vadd.s32 %v2834, %v3162
      %v3349 = vadd.s32 %v2835, %v3162
      %v3350 = vadd.s32 %v2836, %v3162
      %v3351 = vadd.s32 %v2837, %v3162
      %v3352 = vadd.s32 %v2838, %v3162
      %v3353 = vadd.s32 %v2839, %v3162
      %v3354 = vadd.s32 %v2840, %v3162
      %v3355 = vadd.s32 %v2841, %v3162
      %v3356 = vadd.s32 %v2842, %v3162
      %v3357 = vadd.s32 %v2843, %v3162
      %v3358 = vadd.s32 %v2844, %v3162
      %v3359 = vadd.s32 %v2845, %v3162
      %v3360 = vadd.s32 %v2846, %v3162
      %v3361 = vadd.s32 %v2847, %v3162
      %v3362 = vadd.s32 %v2848, %v3162
      %v3363 = vadd.s32 %v2849, %v3162
      %v3364 = vadd.s32 %v2850, %v3162
      %v3365 = vadd.s32 %v2851, %v3162
      %v3366 = vadd.s32 %v2852, %v3162
      %v3367 = vadd.s32 %v2853, %v3162
      %v3368 = vadd.s32 %v2854, %v3162
      %v3369 = vadd.s32 %v2855, %v3162
      %v3370 = vadd.s32 %v2856, %v3162
      %v3371 = vadd.s32 %v2857, %v3162
      %v3372 = vadd.s32 %v2858, %v3162
      %v3373 = vadd.s32 %v2859, %v3162
      %v3374 = vadd.s32 %v2860, %v3162
      %v3375 = vadd.s32 %v2861, %v3162
      %v3376 = vadd.s32 %v2862, %v3162
      %v3377 = vadd.s32 %v2863, %v3162
      %v3378 = vadd.s32 %v2864, %v3162
      %v3379 = vadd.s32 %v2865, %v3162
      %v3380 = vadd.s32 %v2866, %v3162
      %v3381 = vadd.s32 %v2867, %v3162
      %v3382 = vadd.s32 %v2868, %v3162
      %v3383 = vadd.s32 %v2869, %v3162
      %v3384 = vadd.s32 %v2870, %v3162
      %v3385 = vadd.s32 %v2871, %v3162
      %v3386 = vadd.s32 %v2872, %v3162
      %v3387 = vadd.s32 %v2873, %v3162
      %v3388 = vadd.s32 %v2874, %v3162
      %v3389 = vadd.s32 %v2875, %v3162
      %v3390 = vadd.s32 %v2876, %v3162
      %v3391 = vadd.s32 %v2877, %v3162
      %v3392 = vadd.s32 %v2878, %v3162
      %v3393 = vadd.s32 %v2879, %v3162
      %v3394 = vadd.s32 %v2880, %v3162
      %v3395 = vadd.s32 %v2881, %v3162
      %v3396 = vadd.s32 %v2882, %v3162
      %v3397 = vadd.s32 %v2883, %v3162
      %v3398 = vadd.s32 %v2884, %v3162
      %v3399 = vadd.s32 %v2885, %v3162
      %v3400 = vadd.s32 %v2886, %v3162
      %v3401 = vadd.s32 %v2887, %v3162
      %v3402 = vadd.s32 %v2888, %v3162
      %v3403 = vadd.s32 %v2889, %v3162
      %v3404 = vadd.s32 %v2890, %v3162
      %v3405 = vadd.s32 %v2891, %v3162
      %v3406 = vadd.s32 %v2892, %v3162
      %v3407 = vadd.s32 %v2893, %v3162
      %v3408 = vadd.s32 %v2894, %v3162
      %v3409 = vadd.s32 %v2895, %v3162
      %v3410 = vadd.s32 %v2896, %v3162
      %v3411 = vadd.s32 %v2897, %v3162
      %v3412 = vadd.s32 %v2898, %v3162
      %v3413 = vadd.s32 %v2899, %v3162
      %v3414 = vadd.s32 %v2900, %v3162
      %v3415 = vadd.s32 %v2901, %v3162
      %v3416 = vadd.s32 %v2902, %v3162
      %v3417 = vadd.s32 %v2903, %v3162
      %v3418 = vadd.s32 %v2904, %v3162
      %v3419 = vadd.s32 %v2905, %v3162
      %v3420 = vadd.s32 %v2906, %v3162
      %v3421 = vadd.s32 %v2907, %v3162
      %v3422 = vadd.s32 %v2908, %v3162
      %v3423 = vadd.s32 %v2909, %v3162
      %v3424 = vadd.s32 %v2910, %v3162
      %v3425 = vadd.s32 %v2911, %v3162
      %v3426 = vadd.s32 %v2912, %v3162
      %v3427 = vadd.s32 %v2913, %v3162
      %v3428 = vadd.s32 %v2914, %v3162
      %v3429 = vadd.s32 %v2915, %v3162
      %v3430 = vadd.s32 %v2916, %v3162
      %v3431 = vadd.s32 %v2917, %v3162
      %v3432 = vadd.s32 %v2918, %v3162
      %v3433 = vadd.s32 %v2919, %v3162
      %v3434 = vadd.s32 %v2920, %v3162
      %v3435 = vadd.s32 %v2921, %v3162
      %v3436 = vadd.s32 %v2922, %v3162
      %v3437 = vadd.s32 %v2923, %v3162
      %v3438 = vadd.s32 %v2924, %v3162
      %v3439 = vadd.s32 %v2925, %v3162
      %v3440 = vadd.s32 %v2926, %v3162
      %v3441 = vadd.s32 %v2927, %v3162
      %v3442 = vadd.s32 %v2928, %v3162
      %v3443 = vadd.s32 %v2929, %v3162
      %v3444 = vadd.s32 %v2930, %v3162
      %v3445 = vadd.s32 %v2931, %v3162
      %v3446 = vadd.s32 %v2932, %v3162
      %v3447 = vadd.s32 %v2933, %v3162
      %v3448 = vadd.s32 %v2934, %v3162
      %v3449 = vadd.s32 %v2935, %v3162
      %v3450 = vadd.s32 %v2936, %v3162
      %v3451 = vadd.s32 %v2937, %v3162
      %v3452 = vadd.s32 %v2938, %v3162
      %v3453 = vadd.s32 %v2939, %v3162
      %v3454 = vadd.s32 %v2940, %v3162
      %v3455 = vadd.s32 %v2941, %v3162
      %v3456 = vadd.s32 %v2942, %v3162
      %v3457 = vadd.s32 %v2943, %v3162
      %v3458 = vadd.s32 %v2944, %v3162
      %v3459 = vadd.s32 %v2945, %v3162
      %v3460 = vadd.s32 %v2946, %v3162
      %v3461 = vadd.s32 %v2947, %v3162
      %v3462 = vadd.s32 %v2948, %v3162
      %v3463 = vadd.s32 %v2949, %v3162
      %v3464 = vadd.s32 %v2950, %v3162
      %v3465 = vadd.s32 %v2951, %v3162
      %v3466 = vadd.s32 %v2952, %v3162
      %v3467 = vadd.s32 %v2953, %v3162
      %v3468 = vadd.s32 %v2954, %v3162
      %v3469 = vadd.s32 %v2955, %v3162
      %v3470 = vadd.s32 %v2956, %v3162
      %v3471 = vadd.s32 %v2957, %v3162
      %v3472 = vadd.s32 %v2958, %v3162
      %v3473 = vadd.s32 %v2959, %v3162
      %v3474 = vadd.s32 %v2960, %v3162
      %v3475 = vadd.s32 %v2961, %v3162
      %v3476 = vadd.s32 %v2962, %v3162
      %v3477 = vadd.s32 %v2963, %v3162
      %v3478 = vadd.s32 %v2964, %v3162
      %v3479 = vadd.s32 %v2965, %v3162
      %v3480 = vadd.s32 %v2966, %v3162
      %v3481 = vadd.s32 %v2967, %v3162
      %v3482 = vadd.s32 %v2968, %v3162
      %v3483 = vadd.s32 %v2969, %v3162
      %v3484 = vadd.s32 %v2970, %v3162
      %v3485 = vadd.s32 %v2971, %v3162
      %v3486 = vadd.s32 %v2972, %v3162
      %v3487 = vadd.s32 %v2973, %v3162
      %v3488 = vadd.s32 %v2974, %v3162
      %v3489 = vadd.s32 %v2975, %v3162
      %v3490 = vadd.s32 %v2976, %v3162
      %v3491 = vadd.s32 %v2977, %v3162
      %v3492 = vadd.s32 %v2978, %v3162
      %v3493 = vadd.s32 %v2979, %v3162
      %v3494 = vadd.s32 %v2980, %v3162
      %v3495 = vadd.s32 %v2981, %v3162
      %v3496 = vadd.s32 %v2982, %v3162
      %v3497 = vadd.s32 %v2983, %v3162
      %v3498 = vadd.s32 %v2984, %v3162
      %v3499 = vadd.s32 %v2985, %v3162
      %v3500 = vadd.s32 %v2986, %v3162
      %v3501 = vadd.s32 %v2987, %v3162
      %v3502 = vadd.s32 %v2988, %v3162
      %v3503 = vadd.s32 %v2989, %v3162
      %v3504 = vadd.s32 %v2990, %v3162
      %v3505 = vadd.s32 %v2991, %v3162
      %v3506 = vadd.s32 %v2992, %v3162
      %v3507 = vadd.s32 %v2993, %v3162
      %v3508 = vadd.s32 %v2994, %v3162
      %v3509 = vadd.s32 %v2995, %v3162
      %v3510 = vadd.s32 %v2996, %v3162
      %v3511 = vadd.s32 %v2997, %v3162
      %v3512 = vadd.s32 %v2998, %v3162
      %v3513 = vadd.s32 %v2999, %v3162
      %v3514 = vadd.s32 %v3000, %v3162
      %v3515 = vadd.s32 %v3001, %v3162
      %v3516 = vadd.s32 %v3002, %v3162
      %v3517 = vadd.s32 %v3003, %v3162
      %v3518 = vadd.s32 %v3004, %v3162
      %v3519 = vadd.s32 %v3005, %v3162
      %v3520 = vadd.s32 %v3006, %v3162
      %v3521 = vadd.s32 %v3007, %v3162
      %v3522 = vadd.s32 %v3008, %v3162
      %v3523 = vadd.s32 %v3009, %v3162
      %v3524 = vadd.s32 %v3010, %v3162
      %v3525 = vadd.s32 %v3011, %v3162
      %v3526 = vadd.s32 %v3012, %v3162
      %v3527 = vadd.s32 %v3013, %v3162
      %v3528 = vadd.s32 %v3014, %v3162
      %v3529 = vadd.s32 %v3015, %v3162
      %v3530 = vadd.s32 %v3016, %v3162
      %v3531 = vadd.s32 %v3017, %v3162
      %v3532 = vadd.s32 %v3018, %v3162
      %v3533 = vadd.s32 %v3019, %v3162
      %v3534 = vadd.s32 %v3020, %v3162
      %v3535 = vadd.s32 %v3021, %v3162
      %v3536 = vadd.s32 %v3022, %v3162
      %v3537 = vadd.s32 %v3023, %v3162
      %v3538 = vadd.s32 %v3024, %v3162
      %v3539 = vadd.s32 %v3025, %v3162
      %v3540 = vadd.s32 %v3026, %v3162
      %v3541 = vadd.s32 %v3027, %v3162
      %v3542 = vadd.s32 %v3028, %v3162
      %v3543 = vadd.s32 %v3029, %v3162
      %v3544 = vadd.s32 %v3030, %v3162
      %v3545 = vadd.s32 %v3031, %v3162
      %v3546 = vadd.s32 %v3032, %v3162
      %v3547 = vadd.s32 %v3033, %v3162
      %v3548 = vadd.s32 %v3034, %v3162
      %v3549 = vadd.s32 %v3035, %v3162
      %v3550 = vadd.s32 %v3036, %v3162
      %v3551 = vadd.s32 %v3037, %v3162
      %v3552 = vadd.s32 %v3038, %v3162
      %v3553 = vadd.s32 %v3039, %v3162
      %v3554 = vadd.s32 %v3040, %v3162
      %v3555 = vadd.s32 %v3041, %v3162
      %v3556 = vadd.s32 %v3042, %v3162
      %v3557 = vadd.s32 %v3043, %v3162
      %v3558 = vadd.s32 %v3044, %v3162
      %v3559 = vadd.s32 %v3045, %v3162
      %v3560 = vadd.s32 %v3046, %v3162
      %v3561 = vadd.s32 %v3047, %v3162
      %v3562 = vadd.s32 %v3048, %v3162
      %v3563 = vadd.s32 %v3049, %v3162
      %v3564 = vadd.s32 %v3050, %v3162
      %v3565 = vadd.s32 %v3051, %v3162
      %v3566 = vadd.s32 %v3052, %v3162
      %v3567 = vadd.s32 %v3053, %v3162
      %v3568 = vadd.s32 %v3054, %v3162
      %v3569 = vadd.s32 %v3055, %v3162
      %v3570 = vadd.s32 %v3056, %v3162
      %v3571 = vadd.s32 %v3057, %v3162
      %v3572 = vadd.s32 %v3058, %v3162
      %v3573 = vadd.s32 %v3059, %v3162
      %v3574 = vadd.s32 %v3060, %v3162
      %v3575 = vadd.s32 %v3061, %v3162
      %v3576 = vadd.s32 %v3062, %v3162
      %v3577 = vadd.s32 %v3063, %v3162
      %v3578 = vadd.s32 %v3064, %v3162
      %v3579 = vadd.s32 %v3065, %v3162
      %v3580 = vadd.s32 %v3066, %v3162
      %v3581 = vadd.s32 %v3067, %v3162
      %v3582 = vadd.s32 %v3068, %v3162
      %v3583 = vadd.s32 %v3069, %v3162
      %v3584 = vadd.s32 %v3070, %v3162
      %v3585 = vadd.s32 %v3071, %v3162
      %v3586 = vadd.s32 %v3072, %v3162
      %v3587 = vadd.s32 %v3073, %v3162
      %v3588 = vadd.s32 %v3074, %v3162
      %v3589 = vadd.s32 %v3075, %v3162
      %v3590 = vadd.s32 %v3076, %v3162
      %v3591 = vadd.s32 %v3077, %v3162
      %v3592 = vadd.s32 %v3078, %v3162
      %v3593 = vadd.s32 %v3079, %v3162
      %v3594 = vadd.s32 %v3080, %v3162
      %v3595 = vadd.s32 %v3081, %v3162
      %v3596 = vadd.s32 %v3082, %v3162
      %v3597 = vadd.s32 %v3083, %v3162
      %v3598 = vadd.s32 %v3084, %v3162
      %v3599 = vadd.s32 %v3085, %v3162
      %v3600 = vadd.s32 %v3086, %v3162
      %v3601 = vadd.s32 %v3087, %v3162
      %v3602 = vadd.s32 %v3088, %v3162
      %v3603 = vadd.s32 %v3089, %v3162
      %v3604 = vadd.s32 %v3090, %v3162
      %v3605 = vadd.s32 %v3091, %v3162
      %v3606 = vadd.s32 %v3092, %v3162
      %v3607 = vadd.s32 %v3093, %v3162
      %v3608 = vadd.s32 %v3094, %v3162
      %v3609 = vadd.s32 %v3095, %v3162
      %v3610 = vadd.s32 %v3096, %v3162
      %v3611 = vadd.s32 %v3097, %v3162
      %v3612 = vadd.s32 %v3098, %v3162
      %v3613 = vadd.s32 %v3099, %v3162
      %v3614 = vadd.s32 %v3100, %v3162
      %v3615 = vadd.s32 %v3101, %v3162
      %v3616 = vadd.s32 %v3102, %v3162
      %v3617 = vadd.s32 %v3103, %v3162
      %v3618 = vadd.s32 %v3104, %v3162
      %v3619 = vadd.s32 %v3105, %v3162
      %v3620 = vadd.s32 %v3106, %v3162
      %v3621 = vadd.s32 %v3107, %v3162
      %v3622 = vadd.s32 %v3108, %v3162
      %v3623 = vadd.s32 %v3109, %v3162
      %v3624 = vadd.s32 %v3110, %v3162
      %v3625 = vadd.s32 %v3111, %v3162
      %v3626 = vadd.s32 %v3112, %v3162
      %v3627 = vadd.s32 %v3113, %v3162
      %v3628 = vadd.s32 %v3114, %v3162
      %v3629 = vadd.s32 %v3115, %v3162
      %v3630 = vadd.s32 %v3116, %v3162
      %v3631 = vadd.s32 %v3117, %v3162
      %v3632 = vadd.s32 %v3118, %v3162
      %v3633 = vadd.s32 %v3119, %v3162
      %v3634 = vadd.s32 %v3120, %v3162
      %v3635 = vadd.s32 %v3121, %v3162
      %v3636 = vadd.s32 %v3122, %v3162
      %v3637 = vadd.s32 %v3123, %v3162
      %v3638 = vadd.s32 %v3124, %v3162
      %v3639 = vadd.s32 %v3125, %v3162
      %v3640 = vadd.s32 %v3126, %v3162
      %v3641 = vadd.s32 %v3127, %v3162
      %v3642 = vadd.s32 %v3128, %v3162
      %v3643 = vadd.s32 %v3129, %v3162
      %v3644 = vadd.s32 %v3130, %v3162
      %v3645 = vadd.s32 %v3131, %v3162
      %v3646 = vadd.s32 %v3132, %v3162
      %v3647 = vadd.s32 %v3133, %v3162
      %v3648 = vadd.s32 %v3134, %v3162
      %v3649 = vadd.s32 %v3135, %v3162
      %v3650 = vadd.s32 %v3136, %v3162
      %v3651 = vadd.s32 %v3137, %v3162
      %v3652 = vadd.s32 %v3138, %v3162
      %v3653 = vadd.s32 %v3139, %v3162
      %v3654 = vadd.s32 %v3140, %v3162
      %v3655 = vadd.s32 %v3141, %v3162
      %v3656 = vadd.s32 %v3142, %v3162
      %v3657 = vadd.s32 %v3143, %v3162
      %v3658 = vadd.s32 %v3144, %v3162
      %v3659 = vadd.s32 %v3145, %v3162
      %v3660 = vadd.s32 %v3146, %v3162
      %v3661 = vadd.s32 %v3147, %v3162
      %v3662 = vadd.s32 %v3148, %v3162
      %v3663 = vadd.s32 %v3149, %v3162
      %v3664 = vadd.s32 %v3150, %v3162
      %v3665 = vadd.s32 %v3151, %v3162
      %v3666 = vadd.s32 %v3152, %v3162
      %v3667 = vadd.s32 %v3153, %v3162
      %v3668 = vadd.s32 %v3154, %v3162
      %v3669 = vadd.s32 %v3155, %v3162
      %v3670 = vadd.s32 %v3156, %v3162
      %v3671 = vadd.s32 %v3157, %v3162
      %v3672 = vadd.s32 %v3158, %v3162
      %v3673 = vadd.s32 %v3159, %v3162
      %v3674 = vadd.s32 %v3160, %v3162
      %vm3675 = vcmp.lt.s32.totalorder %v3163, 2
      %vm3676 = vcmp.lt.s32.totalorder %v3164, 2
      %vm3677 = vcmp.lt.s32.totalorder %v3165, 2
      %vm3678 = vcmp.lt.s32.totalorder %v3166, 2
      %vm3679 = vcmp.lt.s32.totalorder %v3167, 2
      %vm3680 = vcmp.lt.s32.totalorder %v3168, 2
      %vm3681 = vcmp.lt.s32.totalorder %v3169, 2
      %vm3682 = vcmp.lt.s32.totalorder %v3170, 2
      %vm3683 = vcmp.lt.s32.totalorder %v3171, 2
      %vm3684 = vcmp.lt.s32.totalorder %v3172, 2
      %vm3685 = vcmp.lt.s32.totalorder %v3173, 2
      %vm3686 = vcmp.lt.s32.totalorder %v3174, 2
      %vm3687 = vcmp.lt.s32.totalorder %v3175, 2
      %vm3688 = vcmp.lt.s32.totalorder %v3176, 2
      %vm3689 = vcmp.lt.s32.totalorder %v3177, 2
      %vm3690 = vcmp.lt.s32.totalorder %v3178, 2
      %vm3691 = vcmp.lt.s32.totalorder %v3179, 2
      %vm3692 = vcmp.lt.s32.totalorder %v3180, 2
      %vm3693 = vcmp.lt.s32.totalorder %v3181, 2
      %vm3694 = vcmp.lt.s32.totalorder %v3182, 2
      %vm3695 = vcmp.lt.s32.totalorder %v3183, 2
      %vm3696 = vcmp.lt.s32.totalorder %v3184, 2
      %vm3697 = vcmp.lt.s32.totalorder %v3185, 2
      %vm3698 = vcmp.lt.s32.totalorder %v3186, 2
      %vm3699 = vcmp.lt.s32.totalorder %v3187, 2
      %vm3700 = vcmp.lt.s32.totalorder %v3188, 2
      %vm3701 = vcmp.lt.s32.totalorder %v3189, 2
      %vm3702 = vcmp.lt.s32.totalorder %v3190, 2
      %vm3703 = vcmp.lt.s32.totalorder %v3191, 2
      %vm3704 = vcmp.lt.s32.totalorder %v3192, 2
      %vm3705 = vcmp.lt.s32.totalorder %v3193, 2
      %vm3706 = vcmp.lt.s32.totalorder %v3194, 2
      %vm3707 = vcmp.lt.s32.totalorder %v3195, 2
      %vm3708 = vcmp.lt.s32.totalorder %v3196, 2
      %vm3709 = vcmp.lt.s32.totalorder %v3197, 2
      %vm3710 = vcmp.lt.s32.totalorder %v3198, 2
      %vm3711 = vcmp.lt.s32.totalorder %v3199, 2
      %vm3712 = vcmp.lt.s32.totalorder %v3200, 2
      %vm3713 = vcmp.lt.s32.totalorder %v3201, 2
      %vm3714 = vcmp.lt.s32.totalorder %v3202, 2
      %vm3715 = vcmp.lt.s32.totalorder %v3203, 2
      %vm3716 = vcmp.lt.s32.totalorder %v3204, 2
      %vm3717 = vcmp.lt.s32.totalorder %v3205, 2
      %vm3718 = vcmp.lt.s32.totalorder %v3206, 2
      %vm3719 = vcmp.lt.s32.totalorder %v3207, 2
      %vm3720 = vcmp.lt.s32.totalorder %v3208, 2
      %vm3721 = vcmp.lt.s32.totalorder %v3209, 2
      %vm3722 = vcmp.lt.s32.totalorder %v3210, 2
      %vm3723 = vcmp.lt.s32.totalorder %v3211, 2
      %vm3724 = vcmp.lt.s32.totalorder %v3212, 2
      %vm3725 = vcmp.lt.s32.totalorder %v3213, 2
      %vm3726 = vcmp.lt.s32.totalorder %v3214, 2
      %vm3727 = vcmp.lt.s32.totalorder %v3215, 2
      %vm3728 = vcmp.lt.s32.totalorder %v3216, 2
      %vm3729 = vcmp.lt.s32.totalorder %v3217, 2
      %vm3730 = vcmp.lt.s32.totalorder %v3218, 2
      %vm3731 = vcmp.lt.s32.totalorder %v3219, 2
      %vm3732 = vcmp.lt.s32.totalorder %v3220, 2
      %vm3733 = vcmp.lt.s32.totalorder %v3221, 2
      %vm3734 = vcmp.lt.s32.totalorder %v3222, 2
      %vm3735 = vcmp.lt.s32.totalorder %v3223, 2
      %vm3736 = vcmp.lt.s32.totalorder %v3224, 2
      %vm3737 = vcmp.lt.s32.totalorder %v3225, 2
      %vm3738 = vcmp.lt.s32.totalorder %v3226, 2
      %vm3739 = vcmp.lt.s32.totalorder %v3227, 2
      %vm3740 = vcmp.lt.s32.totalorder %v3228, 2
      %vm3741 = vcmp.lt.s32.totalorder %v3229, 2
      %vm3742 = vcmp.lt.s32.totalorder %v3230, 2
      %vm3743 = vcmp.lt.s32.totalorder %v3231, 2
      %vm3744 = vcmp.lt.s32.totalorder %v3232, 2
      %vm3745 = vcmp.lt.s32.totalorder %v3233, 2
      %vm3746 = vcmp.lt.s32.totalorder %v3234, 2
      %vm3747 = vcmp.lt.s32.totalorder %v3235, 2
      %vm3748 = vcmp.lt.s32.totalorder %v3236, 2
      %vm3749 = vcmp.lt.s32.totalorder %v3237, 2
      %vm3750 = vcmp.lt.s32.totalorder %v3238, 2
      %vm3751 = vcmp.lt.s32.totalorder %v3239, 2
      %vm3752 = vcmp.lt.s32.totalorder %v3240, 2
      %vm3753 = vcmp.lt.s32.totalorder %v3241, 2
      %vm3754 = vcmp.lt.s32.totalorder %v3242, 2
      %vm3755 = vcmp.lt.s32.totalorder %v3243, 2
      %vm3756 = vcmp.lt.s32.totalorder %v3244, 2
      %vm3757 = vcmp.lt.s32.totalorder %v3245, 2
      %vm3758 = vcmp.lt.s32.totalorder %v3246, 2
      %vm3759 = vcmp.lt.s32.totalorder %v3247, 2
      %vm3760 = vcmp.lt.s32.totalorder %v3248, 2
      %vm3761 = vcmp.lt.s32.totalorder %v3249, 2
      %vm3762 = vcmp.lt.s32.totalorder %v3250, 2
      %vm3763 = vcmp.lt.s32.totalorder %v3251, 2
      %vm3764 = vcmp.lt.s32.totalorder %v3252, 2
      %vm3765 = vcmp.lt.s32.totalorder %v3253, 2
      %vm3766 = vcmp.lt.s32.totalorder %v3254, 2
      %vm3767 = vcmp.lt.s32.totalorder %v3255, 2
      %vm3768 = vcmp.lt.s32.totalorder %v3256, 2
      %vm3769 = vcmp.lt.s32.totalorder %v3257, 2
      %vm3770 = vcmp.lt.s32.totalorder %v3258, 2
      %vm3771 = vcmp.lt.s32.totalorder %v3259, 2
      %vm3772 = vcmp.lt.s32.totalorder %v3260, 2
      %vm3773 = vcmp.lt.s32.totalorder %v3261, 2
      %vm3774 = vcmp.lt.s32.totalorder %v3262, 2
      %vm3775 = vcmp.lt.s32.totalorder %v3263, 2
      %vm3776 = vcmp.lt.s32.totalorder %v3264, 2
      %vm3777 = vcmp.lt.s32.totalorder %v3265, 2
      %vm3778 = vcmp.lt.s32.totalorder %v3266, 2
      %vm3779 = vcmp.lt.s32.totalorder %v3267, 2
      %vm3780 = vcmp.lt.s32.totalorder %v3268, 2
      %vm3781 = vcmp.lt.s32.totalorder %v3269, 2
      %vm3782 = vcmp.lt.s32.totalorder %v3270, 2
      %vm3783 = vcmp.lt.s32.totalorder %v3271, 2
      %vm3784 = vcmp.lt.s32.totalorder %v3272, 2
      %vm3785 = vcmp.lt.s32.totalorder %v3273, 2
      %vm3786 = vcmp.lt.s32.totalorder %v3274, 2
      %vm3787 = vcmp.lt.s32.totalorder %v3275, 2
      %vm3788 = vcmp.lt.s32.totalorder %v3276, 2
      %vm3789 = vcmp.lt.s32.totalorder %v3277, 2
      %vm3790 = vcmp.lt.s32.totalorder %v3278, 2
      %vm3791 = vcmp.lt.s32.totalorder %v3279, 2
      %vm3792 = vcmp.lt.s32.totalorder %v3280, 2
      %vm3793 = vcmp.lt.s32.totalorder %v3281, 2
      %vm3794 = vcmp.lt.s32.totalorder %v3282, 2
      %vm3795 = vcmp.lt.s32.totalorder %v3283, 2
      %vm3796 = vcmp.lt.s32.totalorder %v3284, 2
      %vm3797 = vcmp.lt.s32.totalorder %v3285, 2
      %vm3798 = vcmp.lt.s32.totalorder %v3286, 2
      %vm3799 = vcmp.lt.s32.totalorder %v3287, 2
      %vm3800 = vcmp.lt.s32.totalorder %v3288, 2
      %vm3801 = vcmp.lt.s32.totalorder %v3289, 2
      %vm3802 = vcmp.lt.s32.totalorder %v3290, 2
      %vm3803 = vcmp.lt.s32.totalorder %v3291, 2
      %vm3804 = vcmp.lt.s32.totalorder %v3292, 2
      %vm3805 = vcmp.lt.s32.totalorder %v3293, 2
      %vm3806 = vcmp.lt.s32.totalorder %v3294, 2
      %vm3807 = vcmp.lt.s32.totalorder %v3295, 2
      %vm3808 = vcmp.lt.s32.totalorder %v3296, 2
      %vm3809 = vcmp.lt.s32.totalorder %v3297, 2
      %vm3810 = vcmp.lt.s32.totalorder %v3298, 2
      %vm3811 = vcmp.lt.s32.totalorder %v3299, 2
      %vm3812 = vcmp.lt.s32.totalorder %v3300, 2
      %vm3813 = vcmp.lt.s32.totalorder %v3301, 2
      %vm3814 = vcmp.lt.s32.totalorder %v3302, 2
      %vm3815 = vcmp.lt.s32.totalorder %v3303, 2
      %vm3816 = vcmp.lt.s32.totalorder %v3304, 2
      %vm3817 = vcmp.lt.s32.totalorder %v3305, 2
      %vm3818 = vcmp.lt.s32.totalorder %v3306, 2
      %vm3819 = vcmp.lt.s32.totalorder %v3307, 2
      %vm3820 = vcmp.lt.s32.totalorder %v3308, 2
      %vm3821 = vcmp.lt.s32.totalorder %v3309, 2
      %vm3822 = vcmp.lt.s32.totalorder %v3310, 2
      %vm3823 = vcmp.lt.s32.totalorder %v3311, 2
      %vm3824 = vcmp.lt.s32.totalorder %v3312, 2
      %vm3825 = vcmp.lt.s32.totalorder %v3313, 2
      %vm3826 = vcmp.lt.s32.totalorder %v3314, 2
      %vm3827 = vcmp.lt.s32.totalorder %v3315, 2
      %vm3828 = vcmp.lt.s32.totalorder %v3316, 2
      %vm3829 = vcmp.lt.s32.totalorder %v3317, 2
      %vm3830 = vcmp.lt.s32.totalorder %v3318, 2
      %vm3831 = vcmp.lt.s32.totalorder %v3319, 2
      %vm3832 = vcmp.lt.s32.totalorder %v3320, 2
      %vm3833 = vcmp.lt.s32.totalorder %v3321, 2
      %vm3834 = vcmp.lt.s32.totalorder %v3322, 2
      %vm3835 = vcmp.lt.s32.totalorder %v3323, 2
      %vm3836 = vcmp.lt.s32.totalorder %v3324, 2
      %vm3837 = vcmp.lt.s32.totalorder %v3325, 2
      %vm3838 = vcmp.lt.s32.totalorder %v3326, 2
      %vm3839 = vcmp.lt.s32.totalorder %v3327, 2
      %vm3840 = vcmp.lt.s32.totalorder %v3328, 2
      %vm3841 = vcmp.lt.s32.totalorder %v3329, 2
      %vm3842 = vcmp.lt.s32.totalorder %v3330, 2
      %vm3843 = vcmp.lt.s32.totalorder %v3331, 2
      %vm3844 = vcmp.lt.s32.totalorder %v3332, 2
      %vm3845 = vcmp.lt.s32.totalorder %v3333, 2
      %vm3846 = vcmp.lt.s32.totalorder %v3334, 2
      %vm3847 = vcmp.lt.s32.totalorder %v3335, 2
      %vm3848 = vcmp.lt.s32.totalorder %v3336, 2
      %vm3849 = vcmp.lt.s32.totalorder %v3337, 2
      %vm3850 = vcmp.lt.s32.totalorder %v3338, 2
      %vm3851 = vcmp.lt.s32.totalorder %v3339, 2
      %vm3852 = vcmp.lt.s32.totalorder %v3340, 2
      %vm3853 = vcmp.lt.s32.totalorder %v3341, 2
      %vm3854 = vcmp.lt.s32.totalorder %v3342, 2
      %vm3855 = vcmp.lt.s32.totalorder %v3343, 2
      %vm3856 = vcmp.lt.s32.totalorder %v3344, 2
      %vm3857 = vcmp.lt.s32.totalorder %v3345, 2
      %vm3858 = vcmp.lt.s32.totalorder %v3346, 2
      %vm3859 = vcmp.lt.s32.totalorder %v3347, 2
      %vm3860 = vcmp.lt.s32.totalorder %v3348, 2
      %vm3861 = vcmp.lt.s32.totalorder %v3349, 2
      %vm3862 = vcmp.lt.s32.totalorder %v3350, 2
      %vm3863 = vcmp.lt.s32.totalorder %v3351, 2
      %vm3864 = vcmp.lt.s32.totalorder %v3352, 2
      %vm3865 = vcmp.lt.s32.totalorder %v3353, 2
      %vm3866 = vcmp.lt.s32.totalorder %v3354, 2
      %vm3867 = vcmp.lt.s32.totalorder %v3355, 2
      %vm3868 = vcmp.lt.s32.totalorder %v3356, 2
      %vm3869 = vcmp.lt.s32.totalorder %v3357, 2
      %vm3870 = vcmp.lt.s32.totalorder %v3358, 2
      %vm3871 = vcmp.lt.s32.totalorder %v3359, 2
      %vm3872 = vcmp.lt.s32.totalorder %v3360, 2
      %vm3873 = vcmp.lt.s32.totalorder %v3361, 2
      %vm3874 = vcmp.lt.s32.totalorder %v3362, 2
      %vm3875 = vcmp.lt.s32.totalorder %v3363, 2
      %vm3876 = vcmp.lt.s32.totalorder %v3364, 2
      %vm3877 = vcmp.lt.s32.totalorder %v3365, 2
      %vm3878 = vcmp.lt.s32.totalorder %v3366, 2
      %vm3879 = vcmp.lt.s32.totalorder %v3367, 2
      %vm3880 = vcmp.lt.s32.totalorder %v3368, 2
      %vm3881 = vcmp.lt.s32.totalorder %v3369, 2
      %vm3882 = vcmp.lt.s32.totalorder %v3370, 2
      %vm3883 = vcmp.lt.s32.totalorder %v3371, 2
      %vm3884 = vcmp.lt.s32.totalorder %v3372, 2
      %vm3885 = vcmp.lt.s32.totalorder %v3373, 2
      %vm3886 = vcmp.lt.s32.totalorder %v3374, 2
      %vm3887 = vcmp.lt.s32.totalorder %v3375, 2
      %vm3888 = vcmp.lt.s32.totalorder %v3376, 2
      %vm3889 = vcmp.lt.s32.totalorder %v3377, 2
      %vm3890 = vcmp.lt.s32.totalorder %v3378, 2
      %vm3891 = vcmp.lt.s32.totalorder %v3379, 2
      %vm3892 = vcmp.lt.s32.totalorder %v3380, 2
      %vm3893 = vcmp.lt.s32.totalorder %v3381, 2
      %vm3894 = vcmp.lt.s32.totalorder %v3382, 2
      %vm3895 = vcmp.lt.s32.totalorder %v3383, 2
      %vm3896 = vcmp.lt.s32.totalorder %v3384, 2
      %vm3897 = vcmp.lt.s32.totalorder %v3385, 2
      %vm3898 = vcmp.lt.s32.totalorder %v3386, 2
      %vm3899 = vcmp.lt.s32.totalorder %v3387, 2
      %vm3900 = vcmp.lt.s32.totalorder %v3388, 2
      %vm3901 = vcmp.lt.s32.totalorder %v3389, 2
      %vm3902 = vcmp.lt.s32.totalorder %v3390, 2
      %vm3903 = vcmp.lt.s32.totalorder %v3391, 2
      %vm3904 = vcmp.lt.s32.totalorder %v3392, 2
      %vm3905 = vcmp.lt.s32.totalorder %v3393, 2
      %vm3906 = vcmp.lt.s32.totalorder %v3394, 2
      %vm3907 = vcmp.lt.s32.totalorder %v3395, 2
      %vm3908 = vcmp.lt.s32.totalorder %v3396, 2
      %vm3909 = vcmp.lt.s32.totalorder %v3397, 2
      %vm3910 = vcmp.lt.s32.totalorder %v3398, 2
      %vm3911 = vcmp.lt.s32.totalorder %v3399, 2
      %vm3912 = vcmp.lt.s32.totalorder %v3400, 2
      %vm3913 = vcmp.lt.s32.totalorder %v3401, 2
      %vm3914 = vcmp.lt.s32.totalorder %v3402, 2
      %vm3915 = vcmp.lt.s32.totalorder %v3403, 2
      %vm3916 = vcmp.lt.s32.totalorder %v3404, 2
      %vm3917 = vcmp.lt.s32.totalorder %v3405, 2
      %vm3918 = vcmp.lt.s32.totalorder %v3406, 2
      %vm3919 = vcmp.lt.s32.totalorder %v3407, 2
      %vm3920 = vcmp.lt.s32.totalorder %v3408, 2
      %vm3921 = vcmp.lt.s32.totalorder %v3409, 2
      %vm3922 = vcmp.lt.s32.totalorder %v3410, 2
      %vm3923 = vcmp.lt.s32.totalorder %v3411, 2
      %vm3924 = vcmp.lt.s32.totalorder %v3412, 2
      %vm3925 = vcmp.lt.s32.totalorder %v3413, 2
      %vm3926 = vcmp.lt.s32.totalorder %v3414, 2
      %vm3927 = vcmp.lt.s32.totalorder %v3415, 2
      %vm3928 = vcmp.lt.s32.totalorder %v3416, 2
      %vm3929 = vcmp.lt.s32.totalorder %v3417, 2
      %vm3930 = vcmp.lt.s32.totalorder %v3418, 2
      %vm3931 = vcmp.lt.s32.totalorder %v3419, 2
      %vm3932 = vcmp.lt.s32.totalorder %v3420, 2
      %vm3933 = vcmp.lt.s32.totalorder %v3421, 2
      %vm3934 = vcmp.lt.s32.totalorder %v3422, 2
      %vm3935 = vcmp.lt.s32.totalorder %v3423, 2
      %vm3936 = vcmp.lt.s32.totalorder %v3424, 2
      %vm3937 = vcmp.lt.s32.totalorder %v3425, 2
      %vm3938 = vcmp.lt.s32.totalorder %v3426, 2
      %vm3939 = vcmp.lt.s32.totalorder %v3427, 2
      %vm3940 = vcmp.lt.s32.totalorder %v3428, 2
      %vm3941 = vcmp.lt.s32.totalorder %v3429, 2
      %vm3942 = vcmp.lt.s32.totalorder %v3430, 2
      %vm3943 = vcmp.lt.s32.totalorder %v3431, 2
      %vm3944 = vcmp.lt.s32.totalorder %v3432, 2
      %vm3945 = vcmp.lt.s32.totalorder %v3433, 2
      %vm3946 = vcmp.lt.s32.totalorder %v3434, 2
      %vm3947 = vcmp.lt.s32.totalorder %v3435, 2
      %vm3948 = vcmp.lt.s32.totalorder %v3436, 2
      %vm3949 = vcmp.lt.s32.totalorder %v3437, 2
      %vm3950 = vcmp.lt.s32.totalorder %v3438, 2
      %vm3951 = vcmp.lt.s32.totalorder %v3439, 2
      %vm3952 = vcmp.lt.s32.totalorder %v3440, 2
      %vm3953 = vcmp.lt.s32.totalorder %v3441, 2
      %vm3954 = vcmp.lt.s32.totalorder %v3442, 2
      %vm3955 = vcmp.lt.s32.totalorder %v3443, 2
      %vm3956 = vcmp.lt.s32.totalorder %v3444, 2
      %vm3957 = vcmp.lt.s32.totalorder %v3445, 2
      %vm3958 = vcmp.lt.s32.totalorder %v3446, 2
      %vm3959 = vcmp.lt.s32.totalorder %v3447, 2
      %vm3960 = vcmp.lt.s32.totalorder %v3448, 2
      %vm3961 = vcmp.lt.s32.totalorder %v3449, 2
      %vm3962 = vcmp.lt.s32.totalorder %v3450, 2
      %vm3963 = vcmp.lt.s32.totalorder %v3451, 2
      %vm3964 = vcmp.lt.s32.totalorder %v3452, 2
      %vm3965 = vcmp.lt.s32.totalorder %v3453, 2
      %vm3966 = vcmp.lt.s32.totalorder %v3454, 2
      %vm3967 = vcmp.lt.s32.totalorder %v3455, 2
      %vm3968 = vcmp.lt.s32.totalorder %v3456, 2
      %vm3969 = vcmp.lt.s32.totalorder %v3457, 2
      %vm3970 = vcmp.lt.s32.totalorder %v3458, 2
      %vm3971 = vcmp.lt.s32.totalorder %v3459, 2
      %vm3972 = vcmp.lt.s32.totalorder %v3460, 2
      %vm3973 = vcmp.lt.s32.totalorder %v3461, 2
      %vm3974 = vcmp.lt.s32.totalorder %v3462, 2
      %vm3975 = vcmp.lt.s32.totalorder %v3463, 2
      %vm3976 = vcmp.lt.s32.totalorder %v3464, 2
      %vm3977 = vcmp.lt.s32.totalorder %v3465, 2
      %vm3978 = vcmp.lt.s32.totalorder %v3466, 2
      %vm3979 = vcmp.lt.s32.totalorder %v3467, 2
      %vm3980 = vcmp.lt.s32.totalorder %v3468, 2
      %vm3981 = vcmp.lt.s32.totalorder %v3469, 2
      %vm3982 = vcmp.lt.s32.totalorder %v3470, 2
      %vm3983 = vcmp.lt.s32.totalorder %v3471, 2
      %vm3984 = vcmp.lt.s32.totalorder %v3472, 2
      %vm3985 = vcmp.lt.s32.totalorder %v3473, 2
      %vm3986 = vcmp.lt.s32.totalorder %v3474, 2
      %vm3987 = vcmp.lt.s32.totalorder %v3475, 2
      %vm3988 = vcmp.lt.s32.totalorder %v3476, 2
      %vm3989 = vcmp.lt.s32.totalorder %v3477, 2
      %vm3990 = vcmp.lt.s32.totalorder %v3478, 2
      %vm3991 = vcmp.lt.s32.totalorder %v3479, 2
      %vm3992 = vcmp.lt.s32.totalorder %v3480, 2
      %vm3993 = vcmp.lt.s32.totalorder %v3481, 2
      %vm3994 = vcmp.lt.s32.totalorder %v3482, 2
      %vm3995 = vcmp.lt.s32.totalorder %v3483, 2
      %vm3996 = vcmp.lt.s32.totalorder %v3484, 2
      %vm3997 = vcmp.lt.s32.totalorder %v3485, 2
      %vm3998 = vcmp.lt.s32.totalorder %v3486, 2
      %vm3999 = vcmp.lt.s32.totalorder %v3487, 2
      %vm4000 = vcmp.lt.s32.totalorder %v3488, 2
      %vm4001 = vcmp.lt.s32.totalorder %v3489, 2
      %vm4002 = vcmp.lt.s32.totalorder %v3490, 2
      %vm4003 = vcmp.lt.s32.totalorder %v3491, 2
      %vm4004 = vcmp.lt.s32.totalorder %v3492, 2
      %vm4005 = vcmp.lt.s32.totalorder %v3493, 2
      %vm4006 = vcmp.lt.s32.totalorder %v3494, 2
      %vm4007 = vcmp.lt.s32.totalorder %v3495, 2
      %vm4008 = vcmp.lt.s32.totalorder %v3496, 2
      %vm4009 = vcmp.lt.s32.totalorder %v3497, 2
      %vm4010 = vcmp.lt.s32.totalorder %v3498, 2
      %vm4011 = vcmp.lt.s32.totalorder %v3499, 2
      %vm4012 = vcmp.lt.s32.totalorder %v3500, 2
      %vm4013 = vcmp.lt.s32.totalorder %v3501, 2
      %vm4014 = vcmp.lt.s32.totalorder %v3502, 2
      %vm4015 = vcmp.lt.s32.totalorder %v3503, 2
      %vm4016 = vcmp.lt.s32.totalorder %v3504, 2
      %vm4017 = vcmp.lt.s32.totalorder %v3505, 2
      %vm4018 = vcmp.lt.s32.totalorder %v3506, 2
      %vm4019 = vcmp.lt.s32.totalorder %v3507, 2
      %vm4020 = vcmp.lt.s32.totalorder %v3508, 2
      %vm4021 = vcmp.lt.s32.totalorder %v3509, 2
      %vm4022 = vcmp.lt.s32.totalorder %v3510, 2
      %vm4023 = vcmp.lt.s32.totalorder %v3511, 2
      %vm4024 = vcmp.lt.s32.totalorder %v3512, 2
      %vm4025 = vcmp.lt.s32.totalorder %v3513, 2
      %vm4026 = vcmp.lt.s32.totalorder %v3514, 2
      %vm4027 = vcmp.lt.s32.totalorder %v3515, 2
      %vm4028 = vcmp.lt.s32.totalorder %v3516, 2
      %vm4029 = vcmp.lt.s32.totalorder %v3517, 2
      %vm4030 = vcmp.lt.s32.totalorder %v3518, 2
      %vm4031 = vcmp.lt.s32.totalorder %v3519, 2
      %vm4032 = vcmp.lt.s32.totalorder %v3520, 2
      %vm4033 = vcmp.lt.s32.totalorder %v3521, 2
      %vm4034 = vcmp.lt.s32.totalorder %v3522, 2
      %vm4035 = vcmp.lt.s32.totalorder %v3523, 2
      %vm4036 = vcmp.lt.s32.totalorder %v3524, 2
      %vm4037 = vcmp.lt.s32.totalorder %v3525, 2
      %vm4038 = vcmp.lt.s32.totalorder %v3526, 2
      %vm4039 = vcmp.lt.s32.totalorder %v3527, 2
      %vm4040 = vcmp.lt.s32.totalorder %v3528, 2
      %vm4041 = vcmp.lt.s32.totalorder %v3529, 2
      %vm4042 = vcmp.lt.s32.totalorder %v3530, 2
      %vm4043 = vcmp.lt.s32.totalorder %v3531, 2
      %vm4044 = vcmp.lt.s32.totalorder %v3532, 2
      %vm4045 = vcmp.lt.s32.totalorder %v3533, 2
      %vm4046 = vcmp.lt.s32.totalorder %v3534, 2
      %vm4047 = vcmp.lt.s32.totalorder %v3535, 2
      %vm4048 = vcmp.lt.s32.totalorder %v3536, 2
      %vm4049 = vcmp.lt.s32.totalorder %v3537, 2
      %vm4050 = vcmp.lt.s32.totalorder %v3538, 2
      %vm4051 = vcmp.lt.s32.totalorder %v3539, 2
      %vm4052 = vcmp.lt.s32.totalorder %v3540, 2
      %vm4053 = vcmp.lt.s32.totalorder %v3541, 2
      %vm4054 = vcmp.lt.s32.totalorder %v3542, 2
      %vm4055 = vcmp.lt.s32.totalorder %v3543, 2
      %vm4056 = vcmp.lt.s32.totalorder %v3544, 2
      %vm4057 = vcmp.lt.s32.totalorder %v3545, 2
      %vm4058 = vcmp.lt.s32.totalorder %v3546, 2
      %vm4059 = vcmp.lt.s32.totalorder %v3547, 2
      %vm4060 = vcmp.lt.s32.totalorder %v3548, 2
      %vm4061 = vcmp.lt.s32.totalorder %v3549, 2
      %vm4062 = vcmp.lt.s32.totalorder %v3550, 2
      %vm4063 = vcmp.lt.s32.totalorder %v3551, 2
      %vm4064 = vcmp.lt.s32.totalorder %v3552, 2
      %vm4065 = vcmp.lt.s32.totalorder %v3553, 2
      %vm4066 = vcmp.lt.s32.totalorder %v3554, 2
      %vm4067 = vcmp.lt.s32.totalorder %v3555, 2
      %vm4068 = vcmp.lt.s32.totalorder %v3556, 2
      %vm4069 = vcmp.lt.s32.totalorder %v3557, 2
      %vm4070 = vcmp.lt.s32.totalorder %v3558, 2
      %vm4071 = vcmp.lt.s32.totalorder %v3559, 2
      %vm4072 = vcmp.lt.s32.totalorder %v3560, 2
      %vm4073 = vcmp.lt.s32.totalorder %v3561, 2
      %vm4074 = vcmp.lt.s32.totalorder %v3562, 2
      %vm4075 = vcmp.lt.s32.totalorder %v3563, 2
      %vm4076 = vcmp.lt.s32.totalorder %v3564, 2
      %vm4077 = vcmp.lt.s32.totalorder %v3565, 2
      %vm4078 = vcmp.lt.s32.totalorder %v3566, 2
      %vm4079 = vcmp.lt.s32.totalorder %v3567, 2
      %vm4080 = vcmp.lt.s32.totalorder %v3568, 2
      %vm4081 = vcmp.lt.s32.totalorder %v3569, 2
      %vm4082 = vcmp.lt.s32.totalorder %v3570, 2
      %vm4083 = vcmp.lt.s32.totalorder %v3571, 2
      %vm4084 = vcmp.lt.s32.totalorder %v3572, 2
      %vm4085 = vcmp.lt.s32.totalorder %v3573, 2
      %vm4086 = vcmp.lt.s32.totalorder %v3574, 2
      %vm4087 = vcmp.lt.s32.totalorder %v3575, 2
      %vm4088 = vcmp.lt.s32.totalorder %v3576, 2
      %vm4089 = vcmp.lt.s32.totalorder %v3577, 2
      %vm4090 = vcmp.lt.s32.totalorder %v3578, 2
      %vm4091 = vcmp.lt.s32.totalorder %v3579, 2
      %vm4092 = vcmp.lt.s32.totalorder %v3580, 2
      %vm4093 = vcmp.lt.s32.totalorder %v3581, 2
      %vm4094 = vcmp.lt.s32.totalorder %v3582, 2
      %vm4095 = vcmp.lt.s32.totalorder %v3583, 2
      %vm4096 = vcmp.lt.s32.totalorder %v3584, 2
      %vm4097 = vcmp.lt.s32.totalorder %v3585, 2
      %vm4098 = vcmp.lt.s32.totalorder %v3586, 2
      %vm4099 = vcmp.lt.s32.totalorder %v3587, 2
      %vm4100 = vcmp.lt.s32.totalorder %v3588, 2
      %vm4101 = vcmp.lt.s32.totalorder %v3589, 2
      %vm4102 = vcmp.lt.s32.totalorder %v3590, 2
      %vm4103 = vcmp.lt.s32.totalorder %v3591, 2
      %vm4104 = vcmp.lt.s32.totalorder %v3592, 2
      %vm4105 = vcmp.lt.s32.totalorder %v3593, 2
      %vm4106 = vcmp.lt.s32.totalorder %v3594, 2
      %vm4107 = vcmp.lt.s32.totalorder %v3595, 2
      %vm4108 = vcmp.lt.s32.totalorder %v3596, 2
      %vm4109 = vcmp.lt.s32.totalorder %v3597, 2
      %vm4110 = vcmp.lt.s32.totalorder %v3598, 2
      %vm4111 = vcmp.lt.s32.totalorder %v3599, 2
      %vm4112 = vcmp.lt.s32.totalorder %v3600, 2
      %vm4113 = vcmp.lt.s32.totalorder %v3601, 2
      %vm4114 = vcmp.lt.s32.totalorder %v3602, 2
      %vm4115 = vcmp.lt.s32.totalorder %v3603, 2
      %vm4116 = vcmp.lt.s32.totalorder %v3604, 2
      %vm4117 = vcmp.lt.s32.totalorder %v3605, 2
      %vm4118 = vcmp.lt.s32.totalorder %v3606, 2
      %vm4119 = vcmp.lt.s32.totalorder %v3607, 2
      %vm4120 = vcmp.lt.s32.totalorder %v3608, 2
      %vm4121 = vcmp.lt.s32.totalorder %v3609, 2
      %vm4122 = vcmp.lt.s32.totalorder %v3610, 2
      %vm4123 = vcmp.lt.s32.totalorder %v3611, 2
      %vm4124 = vcmp.lt.s32.totalorder %v3612, 2
      %vm4125 = vcmp.lt.s32.totalorder %v3613, 2
      %vm4126 = vcmp.lt.s32.totalorder %v3614, 2
      %vm4127 = vcmp.lt.s32.totalorder %v3615, 2
      %vm4128 = vcmp.lt.s32.totalorder %v3616, 2
      %vm4129 = vcmp.lt.s32.totalorder %v3617, 2
      %vm4130 = vcmp.lt.s32.totalorder %v3618, 2
      %vm4131 = vcmp.lt.s32.totalorder %v3619, 2
      %vm4132 = vcmp.lt.s32.totalorder %v3620, 2
      %vm4133 = vcmp.lt.s32.totalorder %v3621, 2
      %vm4134 = vcmp.lt.s32.totalorder %v3622, 2
      %vm4135 = vcmp.lt.s32.totalorder %v3623, 2
      %vm4136 = vcmp.lt.s32.totalorder %v3624, 2
      %vm4137 = vcmp.lt.s32.totalorder %v3625, 2
      %vm4138 = vcmp.lt.s32.totalorder %v3626, 2
      %vm4139 = vcmp.lt.s32.totalorder %v3627, 2
      %vm4140 = vcmp.lt.s32.totalorder %v3628, 2
      %vm4141 = vcmp.lt.s32.totalorder %v3629, 2
      %vm4142 = vcmp.lt.s32.totalorder %v3630, 2
      %vm4143 = vcmp.lt.s32.totalorder %v3631, 2
      %vm4144 = vcmp.lt.s32.totalorder %v3632, 2
      %vm4145 = vcmp.lt.s32.totalorder %v3633, 2
      %vm4146 = vcmp.lt.s32.totalorder %v3634, 2
      %vm4147 = vcmp.lt.s32.totalorder %v3635, 2
      %vm4148 = vcmp.lt.s32.totalorder %v3636, 2
      %vm4149 = vcmp.lt.s32.totalorder %v3637, 2
      %vm4150 = vcmp.lt.s32.totalorder %v3638, 2
      %vm4151 = vcmp.lt.s32.totalorder %v3639, 2
      %vm4152 = vcmp.lt.s32.totalorder %v3640, 2
      %vm4153 = vcmp.lt.s32.totalorder %v3641, 2
      %vm4154 = vcmp.lt.s32.totalorder %v3642, 2
      %vm4155 = vcmp.lt.s32.totalorder %v3643, 2
      %vm4156 = vcmp.lt.s32.totalorder %v3644, 2
      %vm4157 = vcmp.lt.s32.totalorder %v3645, 2
      %vm4158 = vcmp.lt.s32.totalorder %v3646, 2
      %vm4159 = vcmp.lt.s32.totalorder %v3647, 2
      %vm4160 = vcmp.lt.s32.totalorder %v3648, 2
      %vm4161 = vcmp.lt.s32.totalorder %v3649, 2
      %vm4162 = vcmp.lt.s32.totalorder %v3650, 2
      %vm4163 = vcmp.lt.s32.totalorder %v3651, 2
      %vm4164 = vcmp.lt.s32.totalorder %v3652, 2
      %vm4165 = vcmp.lt.s32.totalorder %v3653, 2
      %vm4166 = vcmp.lt.s32.totalorder %v3654, 2
      %vm4167 = vcmp.lt.s32.totalorder %v3655, 2
      %vm4168 = vcmp.lt.s32.totalorder %v3656, 2
      %vm4169 = vcmp.lt.s32.totalorder %v3657, 2
      %vm4170 = vcmp.lt.s32.totalorder %v3658, 2
      %vm4171 = vcmp.lt.s32.totalorder %v3659, 2
      %vm4172 = vcmp.lt.s32.totalorder %v3660, 2
      %vm4173 = vcmp.lt.s32.totalorder %v3661, 2
      %vm4174 = vcmp.lt.s32.totalorder %v3662, 2
      %vm4175 = vcmp.lt.s32.totalorder %v3663, 2
      %vm4176 = vcmp.lt.s32.totalorder %v3664, 2
      %vm4177 = vcmp.lt.s32.totalorder %v3665, 2
      %vm4178 = vcmp.lt.s32.totalorder %v3666, 2
      %vm4179 = vcmp.lt.s32.totalorder %v3667, 2
      %vm4180 = vcmp.lt.s32.totalorder %v3668, 2
      %vm4181 = vcmp.lt.s32.totalorder %v3669, 2
      %vm4182 = vcmp.lt.s32.totalorder %v3670, 2
      %vm4183 = vcmp.lt.s32.totalorder %v3671, 2
      %vm4184 = vcmp.lt.s32.totalorder %v3672, 2
      %vm4185 = vcmp.lt.s32.totalorder %v3673, 2
      %vm4186 = vcmp.lt.s32.totalorder %v3674, 2
      %v4187 = vsel %vm3675, %v1102, 0.0
      %v4188 = vsel %vm3676, %v1103, 0.0
      %v4189 = vsel %vm3677, %v1104, 0.0
      %v4190 = vsel %vm3678, %v1105, 0.0
      %v4191 = vsel %vm3679, %v1106, 0.0
      %v4192 = vsel %vm3680, %v1107, 0.0
      %v4193 = vsel %vm3681, %v1108, 0.0
      %v4194 = vsel %vm3682, %v1109, 0.0
      %v4195 = vsel %vm3683, %v1110, 0.0
      %v4196 = vsel %vm3684, %v1111, 0.0
      %v4197 = vsel %vm3685, %v1112, 0.0
      %v4198 = vsel %vm3686, %v1113, 0.0
      %v4199 = vsel %vm3687, %v1114, 0.0
      %v4200 = vsel %vm3688, %v1115, 0.0
      %v4201 = vsel %vm3689, %v1116, 0.0
      %v4202 = vsel %vm3690, %v1117, 0.0
      %v4203 = vsel %vm3691, %v1118, 0.0
      %v4204 = vsel %vm3692, %v1119, 0.0
      %v4205 = vsel %vm3693, %v1120, 0.0
      %v4206 = vsel %vm3694, %v1121, 0.0
      %v4207 = vsel %vm3695, %v1122, 0.0
      %v4208 = vsel %vm3696, %v1123, 0.0
      %v4209 = vsel %vm3697, %v1124, 0.0
      %v4210 = vsel %vm3698, %v1125, 0.0
      %v4211 = vsel %vm3699, %v1126, 0.0
      %v4212 = vsel %vm3700, %v1127, 0.0
      %v4213 = vsel %vm3701, %v1128, 0.0
      %v4214 = vsel %vm3702, %v1129, 0.0
      %v4215 = vsel %vm3703, %v1130, 0.0
      %v4216 = vsel %vm3704, %v1131, 0.0
      %v4217 = vsel %vm3705, %v1132, 0.0
      %v4218 = vsel %vm3706, %v1133, 0.0
      %v4219 = vsel %vm3707, %v1134, 0.0
      %v4220 = vsel %vm3708, %v1135, 0.0
      %v4221 = vsel %vm3709, %v1136, 0.0
      %v4222 = vsel %vm3710, %v1137, 0.0
      %v4223 = vsel %vm3711, %v1138, 0.0
      %v4224 = vsel %vm3712, %v1139, 0.0
      %v4225 = vsel %vm3713, %v1140, 0.0
      %v4226 = vsel %vm3714, %v1141, 0.0
      %v4227 = vsel %vm3715, %v1142, 0.0
      %v4228 = vsel %vm3716, %v1143, 0.0
      %v4229 = vsel %vm3717, %v1144, 0.0
      %v4230 = vsel %vm3718, %v1145, 0.0
      %v4231 = vsel %vm3719, %v1146, 0.0
      %v4232 = vsel %vm3720, %v1147, 0.0
      %v4233 = vsel %vm3721, %v1148, 0.0
      %v4234 = vsel %vm3722, %v1149, 0.0
      %v4235 = vsel %vm3723, %v1150, 0.0
      %v4236 = vsel %vm3724, %v1151, 0.0
      %v4237 = vsel %vm3725, %v1152, 0.0
      %v4238 = vsel %vm3726, %v1153, 0.0
      %v4239 = vsel %vm3727, %v1154, 0.0
      %v4240 = vsel %vm3728, %v1155, 0.0
      %v4241 = vsel %vm3729, %v1156, 0.0
      %v4242 = vsel %vm3730, %v1157, 0.0
      %v4243 = vsel %vm3731, %v1158, 0.0
      %v4244 = vsel %vm3732, %v1159, 0.0
      %v4245 = vsel %vm3733, %v1160, 0.0
      %v4246 = vsel %vm3734, %v1161, 0.0
      %v4247 = vsel %vm3735, %v1162, 0.0
      %v4248 = vsel %vm3736, %v1163, 0.0
      %v4249 = vsel %vm3737, %v1164, 0.0
      %v4250 = vsel %vm3738, %v1165, 0.0
      %v4251 = vsel %vm3739, %v1166, 0.0
      %v4252 = vsel %vm3740, %v1167, 0.0
      %v4253 = vsel %vm3741, %v1168, 0.0
      %v4254 = vsel %vm3742, %v1169, 0.0
      %v4255 = vsel %vm3743, %v1170, 0.0
      %v4256 = vsel %vm3744, %v1171, 0.0
      %v4257 = vsel %vm3745, %v1172, 0.0
      %v4258 = vsel %vm3746, %v1173, 0.0
      %v4259 = vsel %vm3747, %v1174, 0.0
      %v4260 = vsel %vm3748, %v1175, 0.0
      %v4261 = vsel %vm3749, %v1176, 0.0
      %v4262 = vsel %vm3750, %v1177, 0.0
      %v4263 = vsel %vm3751, %v1178, 0.0
      %v4264 = vsel %vm3752, %v1179, 0.0
      %v4265 = vsel %vm3753, %v1180, 0.0
      %v4266 = vsel %vm3754, %v1181, 0.0
      %v4267 = vsel %vm3755, %v1182, 0.0
      %v4268 = vsel %vm3756, %v1183, 0.0
      %v4269 = vsel %vm3757, %v1184, 0.0
      %v4270 = vsel %vm3758, %v1185, 0.0
      %v4271 = vsel %vm3759, %v1186, 0.0
      %v4272 = vsel %vm3760, %v1187, 0.0
      %v4273 = vsel %vm3761, %v1188, 0.0
      %v4274 = vsel %vm3762, %v1189, 0.0
      %v4275 = vsel %vm3763, %v1190, 0.0
      %v4276 = vsel %vm3764, %v1191, 0.0
      %v4277 = vsel %vm3765, %v1192, 0.0
      %v4278 = vsel %vm3766, %v1193, 0.0
      %v4279 = vsel %vm3767, %v1194, 0.0
      %v4280 = vsel %vm3768, %v1195, 0.0
      %v4281 = vsel %vm3769, %v1196, 0.0
      %v4282 = vsel %vm3770, %v1197, 0.0
      %v4283 = vsel %vm3771, %v1198, 0.0
      %v4284 = vsel %vm3772, %v1199, 0.0
      %v4285 = vsel %vm3773, %v1200, 0.0
      %v4286 = vsel %vm3774, %v1201, 0.0
      %v4287 = vsel %vm3775, %v1202, 0.0
      %v4288 = vsel %vm3776, %v1203, 0.0
      %v4289 = vsel %vm3777, %v1204, 0.0
      %v4290 = vsel %vm3778, %v1205, 0.0
      %v4291 = vsel %vm3779, %v1206, 0.0
      %v4292 = vsel %vm3780, %v1207, 0.0
      %v4293 = vsel %vm3781, %v1208, 0.0
      %v4294 = vsel %vm3782, %v1209, 0.0
      %v4295 = vsel %vm3783, %v1210, 0.0
      %v4296 = vsel %vm3784, %v1211, 0.0
      %v4297 = vsel %vm3785, %v1212, 0.0
      %v4298 = vsel %vm3786, %v1213, 0.0
      %v4299 = vsel %vm3787, %v1214, 0.0
      %v4300 = vsel %vm3788, %v1215, 0.0
      %v4301 = vsel %vm3789, %v1216, 0.0
      %v4302 = vsel %vm3790, %v1217, 0.0
      %v4303 = vsel %vm3791, %v1218, 0.0
      %v4304 = vsel %vm3792, %v1219, 0.0
      %v4305 = vsel %vm3793, %v1220, 0.0
      %v4306 = vsel %vm3794, %v1221, 0.0
      %v4307 = vsel %vm3795, %v1222, 0.0
      %v4308 = vsel %vm3796, %v1223, 0.0
      %v4309 = vsel %vm3797, %v1224, 0.0
      %v4310 = vsel %vm3798, %v1225, 0.0
      %v4311 = vsel %vm3799, %v1226, 0.0
      %v4312 = vsel %vm3800, %v1227, 0.0
      %v4313 = vsel %vm3801, %v1228, 0.0
      %v4314 = vsel %vm3802, %v1229, 0.0
      %v4315 = vsel %vm3803, %v1230, 0.0
      %v4316 = vsel %vm3804, %v1231, 0.0
      %v4317 = vsel %vm3805, %v1232, 0.0
      %v4318 = vsel %vm3806, %v1233, 0.0
      %v4319 = vsel %vm3807, %v1234, 0.0
      %v4320 = vsel %vm3808, %v1235, 0.0
      %v4321 = vsel %vm3809, %v1236, 0.0
      %v4322 = vsel %vm3810, %v1237, 0.0
      %v4323 = vsel %vm3811, %v1238, 0.0
      %v4324 = vsel %vm3812, %v1239, 0.0
      %v4325 = vsel %vm3813, %v1240, 0.0
      %v4326 = vsel %vm3814, %v1241, 0.0
      %v4327 = vsel %vm3815, %v1242, 0.0
      %v4328 = vsel %vm3816, %v1243, 0.0
      %v4329 = vsel %vm3817, %v1244, 0.0
      %v4330 = vsel %vm3818, %v1245, 0.0
      %v4331 = vsel %vm3819, %v1246, 0.0
      %v4332 = vsel %vm3820, %v1247, 0.0
      %v4333 = vsel %vm3821, %v1248, 0.0
      %v4334 = vsel %vm3822, %v1249, 0.0
      %v4335 = vsel %vm3823, %v1250, 0.0
      %v4336 = vsel %vm3824, %v1251, 0.0
      %v4337 = vsel %vm3825, %v1252, 0.0
      %v4338 = vsel %vm3826, %v1253, 0.0
      %v4339 = vsel %vm3827, %v1254, 0.0
      %v4340 = vsel %vm3828, %v1255, 0.0
      %v4341 = vsel %vm3829, %v1256, 0.0
      %v4342 = vsel %vm3830, %v1257, 0.0
      %v4343 = vsel %vm3831, %v1258, 0.0
      %v4344 = vsel %vm3832, %v1259, 0.0
      %v4345 = vsel %vm3833, %v1260, 0.0
      %v4346 = vsel %vm3834, %v1261, 0.0
      %v4347 = vsel %vm3835, %v1262, 0.0
      %v4348 = vsel %vm3836, %v1263, 0.0
      %v4349 = vsel %vm3837, %v1264, 0.0
      %v4350 = vsel %vm3838, %v1265, 0.0
      %v4351 = vsel %vm3839, %v1266, 0.0
      %v4352 = vsel %vm3840, %v1267, 0.0
      %v4353 = vsel %vm3841, %v1268, 0.0
      %v4354 = vsel %vm3842, %v1269, 0.0
      %v4355 = vsel %vm3843, %v1270, 0.0
      %v4356 = vsel %vm3844, %v1271, 0.0
      %v4357 = vsel %vm3845, %v1272, 0.0
      %v4358 = vsel %vm3846, %v1273, 0.0
      %v4359 = vsel %vm3847, %v1274, 0.0
      %v4360 = vsel %vm3848, %v1275, 0.0
      %v4361 = vsel %vm3849, %v1276, 0.0
      %v4362 = vsel %vm3850, %v1277, 0.0
      %v4363 = vsel %vm3851, %v1278, 0.0
      %v4364 = vsel %vm3852, %v1279, 0.0
      %v4365 = vsel %vm3853, %v1280, 0.0
      %v4366 = vsel %vm3854, %v1281, 0.0
      %v4367 = vsel %vm3855, %v1282, 0.0
      %v4368 = vsel %vm3856, %v1283, 0.0
      %v4369 = vsel %vm3857, %v1284, 0.0
      %v4370 = vsel %vm3858, %v1285, 0.0
      %v4371 = vsel %vm3859, %v1286, 0.0
      %v4372 = vsel %vm3860, %v1287, 0.0
      %v4373 = vsel %vm3861, %v1288, 0.0
      %v4374 = vsel %vm3862, %v1289, 0.0
      %v4375 = vsel %vm3863, %v1290, 0.0
      %v4376 = vsel %vm3864, %v1291, 0.0
      %v4377 = vsel %vm3865, %v1292, 0.0
      %v4378 = vsel %vm3866, %v1293, 0.0
      %v4379 = vsel %vm3867, %v1294, 0.0
      %v4380 = vsel %vm3868, %v1295, 0.0
      %v4381 = vsel %vm3869, %v1296, 0.0
      %v4382 = vsel %vm3870, %v1297, 0.0
      %v4383 = vsel %vm3871, %v1298, 0.0
      %v4384 = vsel %vm3872, %v1299, 0.0
      %v4385 = vsel %vm3873, %v1300, 0.0
      %v4386 = vsel %vm3874, %v1301, 0.0
      %v4387 = vsel %vm3875, %v1302, 0.0
      %v4388 = vsel %vm3876, %v1303, 0.0
      %v4389 = vsel %vm3877, %v1304, 0.0
      %v4390 = vsel %vm3878, %v1305, 0.0
      %v4391 = vsel %vm3879, %v1306, 0.0
      %v4392 = vsel %vm3880, %v1307, 0.0
      %v4393 = vsel %vm3881, %v1308, 0.0
      %v4394 = vsel %vm3882, %v1309, 0.0
      %v4395 = vsel %vm3883, %v1310, 0.0
      %v4396 = vsel %vm3884, %v1311, 0.0
      %v4397 = vsel %vm3885, %v1312, 0.0
      %v4398 = vsel %vm3886, %v1313, 0.0
      %v4399 = vsel %vm3887, %v1314, 0.0
      %v4400 = vsel %vm3888, %v1315, 0.0
      %v4401 = vsel %vm3889, %v1316, 0.0
      %v4402 = vsel %vm3890, %v1317, 0.0
      %v4403 = vsel %vm3891, %v1318, 0.0
      %v4404 = vsel %vm3892, %v1319, 0.0
      %v4405 = vsel %vm3893, %v1320, 0.0
      %v4406 = vsel %vm3894, %v1321, 0.0
      %v4407 = vsel %vm3895, %v1322, 0.0
      %v4408 = vsel %vm3896, %v1323, 0.0
      %v4409 = vsel %vm3897, %v1324, 0.0
      %v4410 = vsel %vm3898, %v1325, 0.0
      %v4411 = vsel %vm3899, %v1326, 0.0
      %v4412 = vsel %vm3900, %v1327, 0.0
      %v4413 = vsel %vm3901, %v1328, 0.0
      %v4414 = vsel %vm3902, %v1329, 0.0
      %v4415 = vsel %vm3903, %v1330, 0.0
      %v4416 = vsel %vm3904, %v1331, 0.0
      %v4417 = vsel %vm3905, %v1332, 0.0
      %v4418 = vsel %vm3906, %v1333, 0.0
      %v4419 = vsel %vm3907, %v1334, 0.0
      %v4420 = vsel %vm3908, %v1335, 0.0
      %v4421 = vsel %vm3909, %v1336, 0.0
      %v4422 = vsel %vm3910, %v1337, 0.0
      %v4423 = vsel %vm3911, %v1338, 0.0
      %v4424 = vsel %vm3912, %v1339, 0.0
      %v4425 = vsel %vm3913, %v1340, 0.0
      %v4426 = vsel %vm3914, %v1341, 0.0
      %v4427 = vsel %vm3915, %v1342, 0.0
      %v4428 = vsel %vm3916, %v1343, 0.0
      %v4429 = vsel %vm3917, %v1344, 0.0
      %v4430 = vsel %vm3918, %v1345, 0.0
      %v4431 = vsel %vm3919, %v1346, 0.0
      %v4432 = vsel %vm3920, %v1347, 0.0
      %v4433 = vsel %vm3921, %v1348, 0.0
      %v4434 = vsel %vm3922, %v1349, 0.0
      %v4435 = vsel %vm3923, %v1350, 0.0
      %v4436 = vsel %vm3924, %v1351, 0.0
      %v4437 = vsel %vm3925, %v1352, 0.0
      %v4438 = vsel %vm3926, %v1353, 0.0
      %v4439 = vsel %vm3927, %v1354, 0.0
      %v4440 = vsel %vm3928, %v1355, 0.0
      %v4441 = vsel %vm3929, %v1356, 0.0
      %v4442 = vsel %vm3930, %v1357, 0.0
      %v4443 = vsel %vm3931, %v1358, 0.0
      %v4444 = vsel %vm3932, %v1359, 0.0
      %v4445 = vsel %vm3933, %v1360, 0.0
      %v4446 = vsel %vm3934, %v1361, 0.0
      %v4447 = vsel %vm3935, %v1362, 0.0
      %v4448 = vsel %vm3936, %v1363, 0.0
      %v4449 = vsel %vm3937, %v1364, 0.0
      %v4450 = vsel %vm3938, %v1365, 0.0
      %v4451 = vsel %vm3939, %v1366, 0.0
      %v4452 = vsel %vm3940, %v1367, 0.0
      %v4453 = vsel %vm3941, %v1368, 0.0
      %v4454 = vsel %vm3942, %v1369, 0.0
      %v4455 = vsel %vm3943, %v1370, 0.0
      %v4456 = vsel %vm3944, %v1371, 0.0
      %v4457 = vsel %vm3945, %v1372, 0.0
      %v4458 = vsel %vm3946, %v1373, 0.0
      %v4459 = vsel %vm3947, %v1374, 0.0
      %v4460 = vsel %vm3948, %v1375, 0.0
      %v4461 = vsel %vm3949, %v1376, 0.0
      %v4462 = vsel %vm3950, %v1377, 0.0
      %v4463 = vsel %vm3951, %v1378, 0.0
      %v4464 = vsel %vm3952, %v1379, 0.0
      %v4465 = vsel %vm3953, %v1380, 0.0
      %v4466 = vsel %vm3954, %v1381, 0.0
      %v4467 = vsel %vm3955, %v1382, 0.0
      %v4468 = vsel %vm3956, %v1383, 0.0
      %v4469 = vsel %vm3957, %v1384, 0.0
      %v4470 = vsel %vm3958, %v1385, 0.0
      %v4471 = vsel %vm3959, %v1386, 0.0
      %v4472 = vsel %vm3960, %v1387, 0.0
      %v4473 = vsel %vm3961, %v1388, 0.0
      %v4474 = vsel %vm3962, %v1389, 0.0
      %v4475 = vsel %vm3963, %v1390, 0.0
      %v4476 = vsel %vm3964, %v1391, 0.0
      %v4477 = vsel %vm3965, %v1392, 0.0
      %v4478 = vsel %vm3966, %v1393, 0.0
      %v4479 = vsel %vm3967, %v1394, 0.0
      %v4480 = vsel %vm3968, %v1395, 0.0
      %v4481 = vsel %vm3969, %v1396, 0.0
      %v4482 = vsel %vm3970, %v1397, 0.0
      %v4483 = vsel %vm3971, %v1398, 0.0
      %v4484 = vsel %vm3972, %v1399, 0.0
      %v4485 = vsel %vm3973, %v1400, 0.0
      %v4486 = vsel %vm3974, %v1401, 0.0
      %v4487 = vsel %vm3975, %v1402, 0.0
      %v4488 = vsel %vm3976, %v1403, 0.0
      %v4489 = vsel %vm3977, %v1404, 0.0
      %v4490 = vsel %vm3978, %v1405, 0.0
      %v4491 = vsel %vm3979, %v1406, 0.0
      %v4492 = vsel %vm3980, %v1407, 0.0
      %v4493 = vsel %vm3981, %v1408, 0.0
      %v4494 = vsel %vm3982, %v1409, 0.0
      %v4495 = vsel %vm3983, %v1410, 0.0
      %v4496 = vsel %vm3984, %v1411, 0.0
      %v4497 = vsel %vm3985, %v1412, 0.0
      %v4498 = vsel %vm3986, %v1413, 0.0
      %v4499 = vsel %vm3987, %v1414, 0.0
      %v4500 = vsel %vm3988, %v1415, 0.0
      %v4501 = vsel %vm3989, %v1416, 0.0
      %v4502 = vsel %vm3990, %v1417, 0.0
      %v4503 = vsel %vm3991, %v1418, 0.0
      %v4504 = vsel %vm3992, %v1419, 0.0
      %v4505 = vsel %vm3993, %v1420, 0.0
      %v4506 = vsel %vm3994, %v1421, 0.0
      %v4507 = vsel %vm3995, %v1422, 0.0
      %v4508 = vsel %vm3996, %v1423, 0.0
      %v4509 = vsel %vm3997, %v1424, 0.0
      %v4510 = vsel %vm3998, %v1425, 0.0
      %v4511 = vsel %vm3999, %v1426, 0.0
      %v4512 = vsel %vm4000, %v1427, 0.0
      %v4513 = vsel %vm4001, %v1428, 0.0
      %v4514 = vsel %vm4002, %v1429, 0.0
      %v4515 = vsel %vm4003, %v1430, 0.0
      %v4516 = vsel %vm4004, %v1431, 0.0
      %v4517 = vsel %vm4005, %v1432, 0.0
      %v4518 = vsel %vm4006, %v1433, 0.0
      %v4519 = vsel %vm4007, %v1434, 0.0
      %v4520 = vsel %vm4008, %v1435, 0.0
      %v4521 = vsel %vm4009, %v1436, 0.0
      %v4522 = vsel %vm4010, %v1437, 0.0
      %v4523 = vsel %vm4011, %v1438, 0.0
      %v4524 = vsel %vm4012, %v1439, 0.0
      %v4525 = vsel %vm4013, %v1440, 0.0
      %v4526 = vsel %vm4014, %v1441, 0.0
      %v4527 = vsel %vm4015, %v1442, 0.0
      %v4528 = vsel %vm4016, %v1443, 0.0
      %v4529 = vsel %vm4017, %v1444, 0.0
      %v4530 = vsel %vm4018, %v1445, 0.0
      %v4531 = vsel %vm4019, %v1446, 0.0
      %v4532 = vsel %vm4020, %v1447, 0.0
      %v4533 = vsel %vm4021, %v1448, 0.0
      %v4534 = vsel %vm4022, %v1449, 0.0
      %v4535 = vsel %vm4023, %v1450, 0.0
      %v4536 = vsel %vm4024, %v1451, 0.0
      %v4537 = vsel %vm4025, %v1452, 0.0
      %v4538 = vsel %vm4026, %v1453, 0.0
      %v4539 = vsel %vm4027, %v1454, 0.0
      %v4540 = vsel %vm4028, %v1455, 0.0
      %v4541 = vsel %vm4029, %v1456, 0.0
      %v4542 = vsel %vm4030, %v1457, 0.0
      %v4543 = vsel %vm4031, %v1458, 0.0
      %v4544 = vsel %vm4032, %v1459, 0.0
      %v4545 = vsel %vm4033, %v1460, 0.0
      %v4546 = vsel %vm4034, %v1461, 0.0
      %v4547 = vsel %vm4035, %v1462, 0.0
      %v4548 = vsel %vm4036, %v1463, 0.0
      %v4549 = vsel %vm4037, %v1464, 0.0
      %v4550 = vsel %vm4038, %v1465, 0.0
      %v4551 = vsel %vm4039, %v1466, 0.0
      %v4552 = vsel %vm4040, %v1467, 0.0
      %v4553 = vsel %vm4041, %v1468, 0.0
      %v4554 = vsel %vm4042, %v1469, 0.0
      %v4555 = vsel %vm4043, %v1470, 0.0
      %v4556 = vsel %vm4044, %v1471, 0.0
      %v4557 = vsel %vm4045, %v1472, 0.0
      %v4558 = vsel %vm4046, %v1473, 0.0
      %v4559 = vsel %vm4047, %v1474, 0.0
      %v4560 = vsel %vm4048, %v1475, 0.0
      %v4561 = vsel %vm4049, %v1476, 0.0
      %v4562 = vsel %vm4050, %v1477, 0.0
      %v4563 = vsel %vm4051, %v1478, 0.0
      %v4564 = vsel %vm4052, %v1479, 0.0
      %v4565 = vsel %vm4053, %v1480, 0.0
      %v4566 = vsel %vm4054, %v1481, 0.0
      %v4567 = vsel %vm4055, %v1482, 0.0
      %v4568 = vsel %vm4056, %v1483, 0.0
      %v4569 = vsel %vm4057, %v1484, 0.0
      %v4570 = vsel %vm4058, %v1485, 0.0
      %v4571 = vsel %vm4059, %v1486, 0.0
      %v4572 = vsel %vm4060, %v1487, 0.0
      %v4573 = vsel %vm4061, %v1488, 0.0
      %v4574 = vsel %vm4062, %v1489, 0.0
      %v4575 = vsel %vm4063, %v1490, 0.0
      %v4576 = vsel %vm4064, %v1491, 0.0
      %v4577 = vsel %vm4065, %v1492, 0.0
      %v4578 = vsel %vm4066, %v1493, 0.0
      %v4579 = vsel %vm4067, %v1494, 0.0
      %v4580 = vsel %vm4068, %v1495, 0.0
      %v4581 = vsel %vm4069, %v1496, 0.0
      %v4582 = vsel %vm4070, %v1497, 0.0
      %v4583 = vsel %vm4071, %v1498, 0.0
      %v4584 = vsel %vm4072, %v1499, 0.0
      %v4585 = vsel %vm4073, %v1500, 0.0
      %v4586 = vsel %vm4074, %v1501, 0.0
      %v4587 = vsel %vm4075, %v1502, 0.0
      %v4588 = vsel %vm4076, %v1503, 0.0
      %v4589 = vsel %vm4077, %v1504, 0.0
      %v4590 = vsel %vm4078, %v1505, 0.0
      %v4591 = vsel %vm4079, %v1506, 0.0
      %v4592 = vsel %vm4080, %v1507, 0.0
      %v4593 = vsel %vm4081, %v1508, 0.0
      %v4594 = vsel %vm4082, %v1509, 0.0
      %v4595 = vsel %vm4083, %v1510, 0.0
      %v4596 = vsel %vm4084, %v1511, 0.0
      %v4597 = vsel %vm4085, %v1512, 0.0
      %v4598 = vsel %vm4086, %v1513, 0.0
      %v4599 = vsel %vm4087, %v1514, 0.0
      %v4600 = vsel %vm4088, %v1515, 0.0
      %v4601 = vsel %vm4089, %v1516, 0.0
      %v4602 = vsel %vm4090, %v1517, 0.0
      %v4603 = vsel %vm4091, %v1518, 0.0
      %v4604 = vsel %vm4092, %v1519, 0.0
      %v4605 = vsel %vm4093, %v1520, 0.0
      %v4606 = vsel %vm4094, %v1521, 0.0
      %v4607 = vsel %vm4095, %v1522, 0.0
      %v4608 = vsel %vm4096, %v1523, 0.0
      %v4609 = vsel %vm4097, %v1524, 0.0
      %v4610 = vsel %vm4098, %v1525, 0.0
      %v4611 = vsel %vm4099, %v1526, 0.0
      %v4612 = vsel %vm4100, %v1527, 0.0
      %v4613 = vsel %vm4101, %v1528, 0.0
      %v4614 = vsel %vm4102, %v1529, 0.0
      %v4615 = vsel %vm4103, %v1530, 0.0
      %v4616 = vsel %vm4104, %v1531, 0.0
      %v4617 = vsel %vm4105, %v1532, 0.0
      %v4618 = vsel %vm4106, %v1533, 0.0
      %v4619 = vsel %vm4107, %v1534, 0.0
      %v4620 = vsel %vm4108, %v1535, 0.0
      %v4621 = vsel %vm4109, %v1536, 0.0
      %v4622 = vsel %vm4110, %v1537, 0.0
      %v4623 = vsel %vm4111, %v1538, 0.0
      %v4624 = vsel %vm4112, %v1539, 0.0
      %v4625 = vsel %vm4113, %v1540, 0.0
      %v4626 = vsel %vm4114, %v1541, 0.0
      %v4627 = vsel %vm4115, %v1542, 0.0
      %v4628 = vsel %vm4116, %v1543, 0.0
      %v4629 = vsel %vm4117, %v1544, 0.0
      %v4630 = vsel %vm4118, %v1545, 0.0
      %v4631 = vsel %vm4119, %v1546, 0.0
      %v4632 = vsel %vm4120, %v1547, 0.0
      %v4633 = vsel %vm4121, %v1548, 0.0
      %v4634 = vsel %vm4122, %v1549, 0.0
      %v4635 = vsel %vm4123, %v1550, 0.0
      %v4636 = vsel %vm4124, %v1551, 0.0
      %v4637 = vsel %vm4125, %v1552, 0.0
      %v4638 = vsel %vm4126, %v1553, 0.0
      %v4639 = vsel %vm4127, %v1554, 0.0
      %v4640 = vsel %vm4128, %v1555, 0.0
      %v4641 = vsel %vm4129, %v1556, 0.0
      %v4642 = vsel %vm4130, %v1557, 0.0
      %v4643 = vsel %vm4131, %v1558, 0.0
      %v4644 = vsel %vm4132, %v1559, 0.0
      %v4645 = vsel %vm4133, %v1560, 0.0
      %v4646 = vsel %vm4134, %v1561, 0.0
      %v4647 = vsel %vm4135, %v1562, 0.0
      %v4648 = vsel %vm4136, %v1563, 0.0
      %v4649 = vsel %vm4137, %v1564, 0.0
      %v4650 = vsel %vm4138, %v1565, 0.0
      %v4651 = vsel %vm4139, %v1566, 0.0
      %v4652 = vsel %vm4140, %v1567, 0.0
      %v4653 = vsel %vm4141, %v1568, 0.0
      %v4654 = vsel %vm4142, %v1569, 0.0
      %v4655 = vsel %vm4143, %v1570, 0.0
      %v4656 = vsel %vm4144, %v1571, 0.0
      %v4657 = vsel %vm4145, %v1572, 0.0
      %v4658 = vsel %vm4146, %v1573, 0.0
      %v4659 = vsel %vm4147, %v1574, 0.0
      %v4660 = vsel %vm4148, %v1575, 0.0
      %v4661 = vsel %vm4149, %v1576, 0.0
      %v4662 = vsel %vm4150, %v1577, 0.0
      %v4663 = vsel %vm4151, %v1578, 0.0
      %v4664 = vsel %vm4152, %v1579, 0.0
      %v4665 = vsel %vm4153, %v1580, 0.0
      %v4666 = vsel %vm4154, %v1581, 0.0
      %v4667 = vsel %vm4155, %v1582, 0.0
      %v4668 = vsel %vm4156, %v1583, 0.0
      %v4669 = vsel %vm4157, %v1584, 0.0
      %v4670 = vsel %vm4158, %v1585, 0.0
      %v4671 = vsel %vm4159, %v1586, 0.0
      %v4672 = vsel %vm4160, %v1587, 0.0
      %v4673 = vsel %vm4161, %v1588, 0.0
      %v4674 = vsel %vm4162, %v1589, 0.0
      %v4675 = vsel %vm4163, %v1590, 0.0
      %v4676 = vsel %vm4164, %v1591, 0.0
      %v4677 = vsel %vm4165, %v1592, 0.0
      %v4678 = vsel %vm4166, %v1593, 0.0
      %v4679 = vsel %vm4167, %v1594, 0.0
      %v4680 = vsel %vm4168, %v1595, 0.0
      %v4681 = vsel %vm4169, %v1596, 0.0
      %v4682 = vsel %vm4170, %v1597, 0.0
      %v4683 = vsel %vm4171, %v1598, 0.0
      %v4684 = vsel %vm4172, %v1599, 0.0
      %v4685 = vsel %vm4173, %v1600, 0.0
      %v4686 = vsel %vm4174, %v1601, 0.0
      %v4687 = vsel %vm4175, %v1602, 0.0
      %v4688 = vsel %vm4176, %v1603, 0.0
      %v4689 = vsel %vm4177, %v1604, 0.0
      %v4690 = vsel %vm4178, %v1605, 0.0
      %v4691 = vsel %vm4179, %v1606, 0.0
      %v4692 = vsel %vm4180, %v1607, 0.0
      %v4693 = vsel %vm4181, %v1608, 0.0
      %v4694 = vsel %vm4182, %v1609, 0.0
      %v4695 = vsel %vm4183, %v1610, 0.0
      %v4696 = vsel %vm4184, %v1611, 0.0
      %v4697 = vsel %vm4185, %v1612, 0.0
      %v4698 = vsel %vm4186, %v1613, 0.0
      %v4699 = vld [vmem:[#allocation2] sm:$0xff]
      %v4700 = vmul.f32 %v4187, %v4187
      %v4701 = vmul.f32 %v4188, %v4188
      %v4702 = vmul.f32 %v4189, %v4189
      %v4703 = vmul.f32 %v4190, %v4190
      %v4704 = vmul.f32 %v4191, %v4191
      %v4705 = vmul.f32 %v4192, %v4192
      %v4706 = vmul.f32 %v4193, %v4193
      %v4707 = vmul.f32 %v4194, %v4194
      %v4708 = vmul.f32 %v4195, %v4195
      %v4709 = vmul.f32 %v4196, %v4196
      %v4710 = vmul.f32 %v4197, %v4197
      %v4711 = vmul.f32 %v4198, %v4198
      %v4712 = vmul.f32 %v4199, %v4199
      %v4713 = vmul.f32 %v4200, %v4200
      %v4714 = vmul.f32 %v4201, %v4201
      %v4715 = vmul.f32 %v4202, %v4202
      %v4716 = vmul.f32 %v4203, %v4203
      %v4717 = vmul.f32 %v4204, %v4204
      %v4718 = vmul.f32 %v4205, %v4205
      %v4719 = vmul.f32 %v4206, %v4206
      %v4720 = vmul.f32 %v4207, %v4207
      %v4721 = vmul.f32 %v4208, %v4208
      %v4722 = vmul.f32 %v4209, %v4209
      %v4723 = vmul.f32 %v4210, %v4210
      %v4724 = vmul.f32 %v4211, %v4211
      %v4725 = vmul.f32 %v4212, %v4212
      %v4726 = vmul.f32 %v4213, %v4213
      %v4727 = vmul.f32 %v4214, %v4214
      %v4728 = vmul.f32 %v4215, %v4215
      %v4729 = vmul.f32 %v4216, %v4216
      %v4730 = vmul.f32 %v4217, %v4217
      %v4731 = vmul.f32 %v4218, %v4218
      %v4732 = vmul.f32 %v4219, %v4219
      %v4733 = vmul.f32 %v4220, %v4220
      %v4734 = vmul.f32 %v4221, %v4221
      %v4735 = vmul.f32 %v4222, %v4222
      %v4736 = vmul.f32 %v4223, %v4223
      %v4737 = vmul.f32 %v4224, %v4224
      %v4738 = vmul.f32 %v4225, %v4225
      %v4739 = vmul.f32 %v4226, %v4226
      %v4740 = vmul.f32 %v4227, %v4227
      %v4741 = vmul.f32 %v4228, %v4228
      %v4742 = vmul.f32 %v4229, %v4229
      %v4743 = vmul.f32 %v4230, %v4230
      %v4744 = vmul.f32 %v4231, %v4231
      %v4745 = vmul.f32 %v4232, %v4232
      %v4746 = vmul.f32 %v4233, %v4233
      %v4747 = vmul.f32 %v4234, %v4234
      %v4748 = vmul.f32 %v4235, %v4235
      %v4749 = vmul.f32 %v4236, %v4236
      %v4750 = vmul.f32 %v4237, %v4237
      %v4751 = vmul.f32 %v4238, %v4238
      %v4752 = vmul.f32 %v4239, %v4239
      %v4753 = vmul.f32 %v4240, %v4240
      %v4754 = vmul.f32 %v4241, %v4241
      %v4755 = vmul.f32 %v4242, %v4242
      %v4756 = vmul.f32 %v4243, %v4243
      %v4757 = vmul.f32 %v4244, %v4244
      %v4758 = vmul.f32 %v4245, %v4245
      %v4759 = vmul.f32 %v4246, %v4246
      %v4760 = vmul.f32 %v4247, %v4247
      %v4761 = vmul.f32 %v4248, %v4248
      %v4762 = vmul.f32 %v4249, %v4249
      %v4763 = vmul.f32 %v4250, %v4250
      %v4764 = vmul.f32 %v4251, %v4251
      %v4765 = vmul.f32 %v4252, %v4252
      %v4766 = vmul.f32 %v4253, %v4253
      %v4767 = vmul.f32 %v4254, %v4254
      %v4768 = vmul.f32 %v4255, %v4255
      %v4769 = vmul.f32 %v4256, %v4256
      %v4770 = vmul.f32 %v4257, %v4257
      %v4771 = vmul.f32 %v4258, %v4258
      %v4772 = vmul.f32 %v4259, %v4259
      %v4773 = vmul.f32 %v4260, %v4260
      %v4774 = vmul.f32 %v4261, %v4261
      %v4775 = vmul.f32 %v4262, %v4262
      %v4776 = vmul.f32 %v4263, %v4263
      %v4777 = vmul.f32 %v4264, %v4264
      %v4778 = vmul.f32 %v4265, %v4265
      %v4779 = vmul.f32 %v4266, %v4266
      %v4780 = vmul.f32 %v4267, %v4267
      %v4781 = vmul.f32 %v4268, %v4268
      %v4782 = vmul.f32 %v4269, %v4269
      %v4783 = vmul.f32 %v4270, %v4270
      %v4784 = vmul.f32 %v4271, %v4271
      %v4785 = vmul.f32 %v4272, %v4272
      %v4786 = vmul.f32 %v4273, %v4273
      %v4787 = vmul.f32 %v4274, %v4274
      %v4788 = vmul.f32 %v4275, %v4275
      %v4789 = vmul.f32 %v4276, %v4276
      %v4790 = vmul.f32 %v4277, %v4277
      %v4791 = vmul.f32 %v4278, %v4278
      %v4792 = vmul.f32 %v4279, %v4279
      %v4793 = vmul.f32 %v4280, %v4280
      %v4794 = vmul.f32 %v4281, %v4281
      %v4795 = vmul.f32 %v4282, %v4282
      %v4796 = vmul.f32 %v4283, %v4283
      %v4797 = vmul.f32 %v4284, %v4284
      %v4798 = vmul.f32 %v4285, %v4285
      %v4799 = vmul.f32 %v4286, %v4286
      %v4800 = vmul.f32 %v4287, %v4287
      %v4801 = vmul.f32 %v4288, %v4288
      %v4802 = vmul.f32 %v4289, %v4289
      %v4803 = vmul.f32 %v4290, %v4290
      %v4804 = vmul.f32 %v4291, %v4291
      %v4805 = vmul.f32 %v4292, %v4292
      %v4806 = vmul.f32 %v4293, %v4293
      %v4807 = vmul.f32 %v4294, %v4294
      %v4808 = vmul.f32 %v4295, %v4295
      %v4809 = vmul.f32 %v4296, %v4296
      %v4810 = vmul.f32 %v4297, %v4297
      %v4811 = vmul.f32 %v4298, %v4298
      %v4812 = vmul.f32 %v4299, %v4299
      %v4813 = vmul.f32 %v4300, %v4300
      %v4814 = vmul.f32 %v4301, %v4301
      %v4815 = vmul.f32 %v4302, %v4302
      %v4816 = vmul.f32 %v4303, %v4303
      %v4817 = vmul.f32 %v4304, %v4304
      %v4818 = vmul.f32 %v4305, %v4305
      %v4819 = vmul.f32 %v4306, %v4306
      %v4820 = vmul.f32 %v4307, %v4307
      %v4821 = vmul.f32 %v4308, %v4308
      %v4822 = vmul.f32 %v4309, %v4309
      %v4823 = vmul.f32 %v4310, %v4310
      %v4824 = vmul.f32 %v4311, %v4311
      %v4825 = vmul.f32 %v4312, %v4312
      %v4826 = vmul.f32 %v4313, %v4313
      %v4827 = vmul.f32 %v4314, %v4314
      %v4828 = vmul.f32 %v4315, %v4315
      %v4829 = vmul.f32 %v4316, %v4316
      %v4830 = vmul.f32 %v4317, %v4317
      %v4831 = vmul.f32 %v4318, %v4318
      %v4832 = vmul.f32 %v4319, %v4319
      %v4833 = vmul.f32 %v4320, %v4320
      %v4834 = vmul.f32 %v4321, %v4321
      %v4835 = vmul.f32 %v4322, %v4322
      %v4836 = vmul.f32 %v4323, %v4323
      %v4837 = vmul.f32 %v4324, %v4324
      %v4838 = vmul.f32 %v4325, %v4325
      %v4839 = vmul.f32 %v4326, %v4326
      %v4840 = vmul.f32 %v4327, %v4327
      %v4841 = vmul.f32 %v4328, %v4328
      %v4842 = vmul.f32 %v4329, %v4329
      %v4843 = vmul.f32 %v4330, %v4330
      %v4844 = vmul.f32 %v4331, %v4331
      %v4845 = vmul.f32 %v4332, %v4332
      %v4846 = vmul.f32 %v4333, %v4333
      %v4847 = vmul.f32 %v4334, %v4334
      %v4848 = vmul.f32 %v4335, %v4335
      %v4849 = vmul.f32 %v4336, %v4336
      %v4850 = vmul.f32 %v4337, %v4337
      %v4851 = vmul.f32 %v4338, %v4338
      %v4852 = vmul.f32 %v4339, %v4339
      %v4853 = vmul.f32 %v4340, %v4340
      %v4854 = vmul.f32 %v4341, %v4341
      %v4855 = vmul.f32 %v4342, %v4342
      %v4856 = vmul.f32 %v4343, %v4343
      %v4857 = vmul.f32 %v4344, %v4344
      %v4858 = vmul.f32 %v4345, %v4345
      %v4859 = vmul.f32 %v4346, %v4346
      %v4860 = vmul.f32 %v4347, %v4347
      %v4861 = vmul.f32 %v4348, %v4348
      %v4862 = vmul.f32 %v4349, %v4349
      %v4863 = vmul.f32 %v4350, %v4350
      %v4864 = vmul.f32 %v4351, %v4351
      %v4865 = vmul.f32 %v4352, %v4352
      %v4866 = vmul.f32 %v4353, %v4353
      %v4867 = vmul.f32 %v4354, %v4354
      %v4868 = vmul.f32 %v4355, %v4355
      %v4869 = vmul.f32 %v4356, %v4356
      %v4870 = vmul.f32 %v4357, %v4357
      %v4871 = vmul.f32 %v4358, %v4358
      %v4872 = vmul.f32 %v4359, %v4359
      %v4873 = vmul.f32 %v4360, %v4360
      %v4874 = vmul.f32 %v4361, %v4361
      %v4875 = vmul.f32 %v4362, %v4362
      %v4876 = vmul.f32 %v4363, %v4363
      %v4877 = vmul.f32 %v4364, %v4364
      %v4878 = vmul.f32 %v4365, %v4365
      %v4879 = vmul.f32 %v4366, %v4366
      %v4880 = vmul.f32 %v4367, %v4367
      %v4881 = vmul.f32 %v4368, %v4368
      %v4882 = vmul.f32 %v4369, %v4369
      %v4883 = vmul.f32 %v4370, %v4370
      %v4884 = vmul.f32 %v4371, %v4371
      %v4885 = vmul.f32 %v4372, %v4372
      %v4886 = vmul.f32 %v4373, %v4373
      %v4887 = vmul.f32 %v4374, %v4374
      %v4888 = vmul.f32 %v4375, %v4375
      %v4889 = vmul.f32 %v4376, %v4376
      %v4890 = vmul.f32 %v4377, %v4377
      %v4891 = vmul.f32 %v4378, %v4378
      %v4892 = vmul.f32 %v4379, %v4379
      %v4893 = vmul.f32 %v4380, %v4380
      %v4894 = vmul.f32 %v4381, %v4381
      %v4895 = vmul.f32 %v4382, %v4382
      %v4896 = vmul.f32 %v4383, %v4383
      %v4897 = vmul.f32 %v4384, %v4384
      %v4898 = vmul.f32 %v4385, %v4385
      %v4899 = vmul.f32 %v4386, %v4386
      %v4900 = vmul.f32 %v4387, %v4387
      %v4901 = vmul.f32 %v4388, %v4388
      %v4902 = vmul.f32 %v4389, %v4389
      %v4903 = vmul.f32 %v4390, %v4390
      %v4904 = vmul.f32 %v4391, %v4391
      %v4905 = vmul.f32 %v4392, %v4392
      %v4906 = vmul.f32 %v4393, %v4393
      %v4907 = vmul.f32 %v4394, %v4394
      %v4908 = vmul.f32 %v4395, %v4395
      %v4909 = vmul.f32 %v4396, %v4396
      %v4910 = vmul.f32 %v4397, %v4397
      %v4911 = vmul.f32 %v4398, %v4398
      %v4912 = vmul.f32 %v4399, %v4399
      %v4913 = vmul.f32 %v4400, %v4400
      %v4914 = vmul.f32 %v4401, %v4401
      %v4915 = vmul.f32 %v4402, %v4402
      %v4916 = vmul.f32 %v4403, %v4403
      %v4917 = vmul.f32 %v4404, %v4404
      %v4918 = vmul.f32 %v4405, %v4405
      %v4919 = vmul.f32 %v4406, %v4406
      %v4920 = vmul.f32 %v4407, %v4407
      %v4921 = vmul.f32 %v4408, %v4408
      %v4922 = vmul.f32 %v4409, %v4409
      %v4923 = vmul.f32 %v4410, %v4410
      %v4924 = vmul.f32 %v4411, %v4411
      %v4925 = vmul.f32 %v4412, %v4412
      %v4926 = vmul.f32 %v4413, %v4413
      %v4927 = vmul.f32 %v4414, %v4414
      %v4928 = vmul.f32 %v4415, %v4415
      %v4929 = vmul.f32 %v4416, %v4416
      %v4930 = vmul.f32 %v4417, %v4417
      %v4931 = vmul.f32 %v4418, %v4418
      %v4932 = vmul.f32 %v4419, %v4419
      %v4933 = vmul.f32 %v4420, %v4420
      %v4934 = vmul.f32 %v4421, %v4421
      %v4935 = vmul.f32 %v4422, %v4422
      %v4936 = vmul.f32 %v4423, %v4423
      %v4937 = vmul.f32 %v4424, %v4424
      %v4938 = vmul.f32 %v4425, %v4425
      %v4939 = vmul.f32 %v4426, %v4426
      %v4940 = vmul.f32 %v4427, %v4427
      %v4941 = vmul.f32 %v4428, %v4428
      %v4942 = vmul.f32 %v4429, %v4429
      %v4943 = vmul.f32 %v4430, %v4430
      %v4944 = vmul.f32 %v4431, %v4431
      %v4945 = vmul.f32 %v4432, %v4432
      %v4946 = vmul.f32 %v4433, %v4433
      %v4947 = vmul.f32 %v4434, %v4434
      %v4948 = vmul.f32 %v4435, %v4435
      %v4949 = vmul.f32 %v4436, %v4436
      %v4950 = vmul.f32 %v4437, %v4437
      %v4951 = vmul.f32 %v4438, %v4438
      %v4952 = vmul.f32 %v4439, %v4439
      %v4953 = vmul.f32 %v4440, %v4440
      %v4954 = vmul.f32 %v4441, %v4441
      %v4955 = vmul.f32 %v4442, %v4442
      %v4956 = vmul.f32 %v4443, %v4443
      %v4957 = vmul.f32 %v4444, %v4444
      %v4958 = vmul.f32 %v4445, %v4445
      %v4959 = vmul.f32 %v4446, %v4446
      %v4960 = vmul.f32 %v4447, %v4447
      %v4961 = vmul.f32 %v4448, %v4448
      %v4962 = vmul.f32 %v4449, %v4449
      %v4963 = vmul.f32 %v4450, %v4450
      %v4964 = vmul.f32 %v4451, %v4451
      %v4965 = vmul.f32 %v4452, %v4452
      %v4966 = vmul.f32 %v4453, %v4453
      %v4967 = vmul.f32 %v4454, %v4454
      %v4968 = vmul.f32 %v4455, %v4455
      %v4969 = vmul.f32 %v4456, %v4456
      %v4970 = vmul.f32 %v4457, %v4457
      %v4971 = vmul.f32 %v4458, %v4458
      %v4972 = vmul.f32 %v4459, %v4459
      %v4973 = vmul.f32 %v4460, %v4460
      %v4974 = vmul.f32 %v4461, %v4461
      %v4975 = vmul.f32 %v4462, %v4462
      %v4976 = vmul.f32 %v4463, %v4463
      %v4977 = vmul.f32 %v4464, %v4464
      %v4978 = vmul.f32 %v4465, %v4465
      %v4979 = vmul.f32 %v4466, %v4466
      %v4980 = vmul.f32 %v4467, %v4467
      %v4981 = vmul.f32 %v4468, %v4468
      %v4982 = vmul.f32 %v4469, %v4469
      %v4983 = vmul.f32 %v4470, %v4470
      %v4984 = vmul.f32 %v4471, %v4471
      %v4985 = vmul.f32 %v4472, %v4472
      %v4986 = vmul.f32 %v4473, %v4473
      %v4987 = vmul.f32 %v4474, %v4474
      %v4988 = vmul.f32 %v4475, %v4475
      %v4989 = vmul.f32 %v4476, %v4476
      %v4990 = vmul.f32 %v4477, %v4477
      %v4991 = vmul.f32 %v4478, %v4478
      %v4992 = vmul.f32 %v4479, %v4479
      %v4993 = vmul.f32 %v4480, %v4480
      %v4994 = vmul.f32 %v4481, %v4481
      %v4995 = vmul.f32 %v4482, %v4482
      %v4996 = vmul.f32 %v4483, %v4483
      %v4997 = vmul.f32 %v4484, %v4484
      %v4998 = vmul.f32 %v4485, %v4485
      %v4999 = vmul.f32 %v4486, %v4486
      %v5000 = vmul.f32 %v4487, %v4487
      %v5001 = vmul.f32 %v4488, %v4488
      %v5002 = vmul.f32 %v4489, %v4489
      %v5003 = vmul.f32 %v4490, %v4490
      %v5004 = vmul.f32 %v4491, %v4491
      %v5005 = vmul.f32 %v4492, %v4492
      %v5006 = vmul.f32 %v4493, %v4493
      %v5007 = vmul.f32 %v4494, %v4494
      %v5008 = vmul.f32 %v4495, %v4495
      %v5009 = vmul.f32 %v4496, %v4496
      %v5010 = vmul.f32 %v4497, %v4497
      %v5011 = vmul.f32 %v4498, %v4498
      %v5012 = vmul.f32 %v4499, %v4499
      %v5013 = vmul.f32 %v4500, %v4500
      %v5014 = vmul.f32 %v4501, %v4501
      %v5015 = vmul.f32 %v4502, %v4502
      %v5016 = vmul.f32 %v4503, %v4503
      %v5017 = vmul.f32 %v4504, %v4504
      %v5018 = vmul.f32 %v4505, %v4505
      %v5019 = vmul.f32 %v4506, %v4506
      %v5020 = vmul.f32 %v4507, %v4507
      %v5021 = vmul.f32 %v4508, %v4508
      %v5022 = vmul.f32 %v4509, %v4509
      %v5023 = vmul.f32 %v4510, %v4510
      %v5024 = vmul.f32 %v4511, %v4511
      %v5025 = vmul.f32 %v4512, %v4512
      %v5026 = vmul.f32 %v4513, %v4513
      %v5027 = vmul.f32 %v4514, %v4514
      %v5028 = vmul.f32 %v4515, %v4515
      %v5029 = vmul.f32 %v4516, %v4516
      %v5030 = vmul.f32 %v4517, %v4517
      %v5031 = vmul.f32 %v4518, %v4518
      %v5032 = vmul.f32 %v4519, %v4519
      %v5033 = vmul.f32 %v4520, %v4520
      %v5034 = vmul.f32 %v4521, %v4521
      %v5035 = vmul.f32 %v4522, %v4522
      %v5036 = vmul.f32 %v4523, %v4523
      %v5037 = vmul.f32 %v4524, %v4524
      %v5038 = vmul.f32 %v4525, %v4525
      %v5039 = vmul.f32 %v4526, %v4526
      %v5040 = vmul.f32 %v4527, %v4527
      %v5041 = vmul.f32 %v4528, %v4528
      %v5042 = vmul.f32 %v4529, %v4529
      %v5043 = vmul.f32 %v4530, %v4530
      %v5044 = vmul.f32 %v4531, %v4531
      %v5045 = vmul.f32 %v4532, %v4532
      %v5046 = vmul.f32 %v4533, %v4533
      %v5047 = vmul.f32 %v4534, %v4534
      %v5048 = vmul.f32 %v4535, %v4535
      %v5049 = vmul.f32 %v4536, %v4536
      %v5050 = vmul.f32 %v4537, %v4537
      %v5051 = vmul.f32 %v4538, %v4538
      %v5052 = vmul.f32 %v4539, %v4539
      %v5053 = vmul.f32 %v4540, %v4540
      %v5054 = vmul.f32 %v4541, %v4541
      %v5055 = vmul.f32 %v4542, %v4542
      %v5056 = vmul.f32 %v4543, %v4543
      %v5057 = vmul.f32 %v4544, %v4544
      %v5058 = vmul.f32 %v4545, %v4545
      %v5059 = vmul.f32 %v4546, %v4546
      %v5060 = vmul.f32 %v4547, %v4547
      %v5061 = vmul.f32 %v4548, %v4548
      %v5062 = vmul.f32 %v4549, %v4549
      %v5063 = vmul.f32 %v4550, %v4550
      %v5064 = vmul.f32 %v4551, %v4551
      %v5065 = vmul.f32 %v4552, %v4552
      %v5066 = vmul.f32 %v4553, %v4553
      %v5067 = vmul.f32 %v4554, %v4554
      %v5068 = vmul.f32 %v4555, %v4555
      %v5069 = vmul.f32 %v4556, %v4556
      %v5070 = vmul.f32 %v4557, %v4557
      %v5071 = vmul.f32 %v4558, %v4558
      %v5072 = vmul.f32 %v4559, %v4559
      %v5073 = vmul.f32 %v4560, %v4560
      %v5074 = vmul.f32 %v4561, %v4561
      %v5075 = vmul.f32 %v4562, %v4562
      %v5076 = vmul.f32 %v4563, %v4563
      %v5077 = vmul.f32 %v4564, %v4564
      %v5078 = vmul.f32 %v4565, %v4565
      %v5079 = vmul.f32 %v4566, %v4566
      %v5080 = vmul.f32 %v4567, %v4567
      %v5081 = vmul.f32 %v4568, %v4568
      %v5082 = vmul.f32 %v4569, %v4569
      %v5083 = vmul.f32 %v4570, %v4570
      %v5084 = vmul.f32 %v4571, %v4571
      %v5085 = vmul.f32 %v4572, %v4572
      %v5086 = vmul.f32 %v4573, %v4573
      %v5087 = vmul.f32 %v4574, %v4574
      %v5088 = vmul.f32 %v4575, %v4575
      %v5089 = vmul.f32 %v4576, %v4576
      %v5090 = vmul.f32 %v4577, %v4577
      %v5091 = vmul.f32 %v4578, %v4578
      %v5092 = vmul.f32 %v4579, %v4579
      %v5093 = vmul.f32 %v4580, %v4580
      %v5094 = vmul.f32 %v4581, %v4581
      %v5095 = vmul.f32 %v4582, %v4582
      %v5096 = vmul.f32 %v4583, %v4583
      %v5097 = vmul.f32 %v4584, %v4584
      %v5098 = vmul.f32 %v4585, %v4585
      %v5099 = vmul.f32 %v4586, %v4586
      %v5100 = vmul.f32 %v4587, %v4587
      %v5101 = vmul.f32 %v4588, %v4588
      %v5102 = vmul.f32 %v4589, %v4589
      %v5103 = vmul.f32 %v4590, %v4590
      %v5104 = vmul.f32 %v4591, %v4591
      %v5105 = vmul.f32 %v4592, %v4592
      %v5106 = vmul.f32 %v4593, %v4593
      %v5107 = vmul.f32 %v4594, %v4594
      %v5108 = vmul.f32 %v4595, %v4595
      %v5109 = vmul.f32 %v4596, %v4596
      %v5110 = vmul.f32 %v4597, %v4597
      %v5111 = vmul.f32 %v4598, %v4598
      %v5112 = vmul.f32 %v4599, %v4599
      %v5113 = vmul.f32 %v4600, %v4600
      %v5114 = vmul.f32 %v4601, %v4601
      %v5115 = vmul.f32 %v4602, %v4602
      %v5116 = vmul.f32 %v4603, %v4603
      %v5117 = vmul.f32 %v4604, %v4604
      %v5118 = vmul.f32 %v4605, %v4605
      %v5119 = vmul.f32 %v4606, %v4606
      %v5120 = vmul.f32 %v4607, %v4607
      %v5121 = vmul.f32 %v4608, %v4608
      %v5122 = vmul.f32 %v4609, %v4609
      %v5123 = vmul.f32 %v4610, %v4610
      %v5124 = vmul.f32 %v4611, %v4611
      %v5125 = vmul.f32 %v4612, %v4612
      %v5126 = vmul.f32 %v4613, %v4613
      %v5127 = vmul.f32 %v4614, %v4614
      %v5128 = vmul.f32 %v4615, %v4615
      %v5129 = vmul.f32 %v4616, %v4616
      %v5130 = vmul.f32 %v4617, %v4617
      %v5131 = vmul.f32 %v4618, %v4618
      %v5132 = vmul.f32 %v4619, %v4619
      %v5133 = vmul.f32 %v4620, %v4620
      %v5134 = vmul.f32 %v4621, %v4621
      %v5135 = vmul.f32 %v4622, %v4622
      %v5136 = vmul.f32 %v4623, %v4623
      %v5137 = vmul.f32 %v4624, %v4624
      %v5138 = vmul.f32 %v4625, %v4625
      %v5139 = vmul.f32 %v4626, %v4626
      %v5140 = vmul.f32 %v4627, %v4627
      %v5141 = vmul.f32 %v4628, %v4628
      %v5142 = vmul.f32 %v4629, %v4629
      %v5143 = vmul.f32 %v4630, %v4630
      %v5144 = vmul.f32 %v4631, %v4631
      %v5145 = vmul.f32 %v4632, %v4632
      %v5146 = vmul.f32 %v4633, %v4633
      %v5147 = vmul.f32 %v4634, %v4634
      %v5148 = vmul.f32 %v4635, %v4635
      %v5149 = vmul.f32 %v4636, %v4636
      %v5150 = vmul.f32 %v4637, %v4637
      %v5151 = vmul.f32 %v4638, %v4638
      %v5152 = vmul.f32 %v4639, %v4639
      %v5153 = vmul.f32 %v4640, %v4640
      %v5154 = vmul.f32 %v4641, %v4641
      %v5155 = vmul.f32 %v4642, %v4642
      %v5156 = vmul.f32 %v4643, %v4643
      %v5157 = vmul.f32 %v4644, %v4644
      %v5158 = vmul.f32 %v4645, %v4645
      %v5159 = vmul.f32 %v4646, %v4646
      %v5160 = vmul.f32 %v4647, %v4647
      %v5161 = vmul.f32 %v4648, %v4648
      %v5162 = vmul.f32 %v4649, %v4649
      %v5163 = vmul.f32 %v4650, %v4650
      %v5164 = vmul.f32 %v4651, %v4651
      %v5165 = vmul.f32 %v4652, %v4652
      %v5166 = vmul.f32 %v4653, %v4653
      %v5167 = vmul.f32 %v4654, %v4654
      %v5168 = vmul.f32 %v4655, %v4655
      %v5169 = vmul.f32 %v4656, %v4656
      %v5170 = vmul.f32 %v4657, %v4657
      %v5171 = vmul.f32 %v4658, %v4658
      %v5172 = vmul.f32 %v4659, %v4659
      %v5173 = vmul.f32 %v4660, %v4660
      %v5174 = vmul.f32 %v4661, %v4661
      %v5175 = vmul.f32 %v4662, %v4662
      %v5176 = vmul.f32 %v4663, %v4663
      %v5177 = vmul.f32 %v4664, %v4664
      %v5178 = vmul.f32 %v4665, %v4665
      %v5179 = vmul.f32 %v4666, %v4666
      %v5180 = vmul.f32 %v4667, %v4667
      %v5181 = vmul.f32 %v4668, %v4668
      %v5182 = vmul.f32 %v4669, %v4669
      %v5183 = vmul.f32 %v4670, %v4670
      %v5184 = vmul.f32 %v4671, %v4671
      %v5185 = vmul.f32 %v4672, %v4672
      %v5186 = vmul.f32 %v4673, %v4673
      %v5187 = vmul.f32 %v4674, %v4674
      %v5188 = vmul.f32 %v4675, %v4675
      %v5189 = vmul.f32 %v4676, %v4676
      %v5190 = vmul.f32 %v4677, %v4677
      %v5191 = vmul.f32 %v4678, %v4678
      %v5192 = vmul.f32 %v4679, %v4679
      %v5193 = vmul.f32 %v4680, %v4680
      %v5194 = vmul.f32 %v4681, %v4681
      %v5195 = vmul.f32 %v4682, %v4682
      %v5196 = vmul.f32 %v4683, %v4683
      %v5197 = vmul.f32 %v4684, %v4684
      %v5198 = vmul.f32 %v4685, %v4685
      %v5199 = vmul.f32 %v4686, %v4686
      %v5200 = vmul.f32 %v4687, %v4687
      %v5201 = vmul.f32 %v4688, %v4688
      %v5202 = vmul.f32 %v4689, %v4689
      %v5203 = vmul.f32 %v4690, %v4690
      %v5204 = vmul.f32 %v4691, %v4691
      %v5205 = vmul.f32 %v4692, %v4692
      %v5206 = vmul.f32 %v4693, %v4693
      %v5207 = vmul.f32 %v4694, %v4694
      %v5208 = vmul.f32 %v4695, %v4695
      %v5209 = vmul.f32 %v4696, %v4696
      %v5210 = vmul.f32 %v4697, %v4697
      %v5211 = vmul.f32 %v4698, %v4698
      %v5212 = vadd.f32 %v4700, %v4701
      %v5213 = vadd.f32 %v5212, %v4702
      %v5214 = vadd.f32 %v5213, %v4703
      %v5215 = vadd.f32 %v5214, %v4704
      %v5216 = vadd.f32 %v5215, %v4705
      %v5217 = vadd.f32 %v5216, %v4706
      %v5218 = vadd.f32 %v5217, %v4707
      %v5219 = vadd.f32 %v5218, %v4708
      %v5220 = vadd.f32 %v5219, %v4709
      %v5221 = vadd.f32 %v5220, %v4710
      %v5222 = vadd.f32 %v5221, %v4711
      %v5223 = vadd.f32 %v5222, %v4712
      %v5224 = vadd.f32 %v5223, %v4713
      %v5225 = vadd.f32 %v5224, %v4714
      %v5226 = vadd.f32 %v5225, %v4715
      %v5227 = vadd.f32 %v5226, %v4716
      %v5228 = vadd.f32 %v5227, %v4717
      %v5229 = vadd.f32 %v5228, %v4718
      %v5230 = vadd.f32 %v5229, %v4719
      %v5231 = vadd.f32 %v5230, %v4720
      %v5232 = vadd.f32 %v5231, %v4721
      %v5233 = vadd.f32 %v5232, %v4722
      %v5234 = vadd.f32 %v5233, %v4723
      %v5235 = vadd.f32 %v5234, %v4724
      %v5236 = vadd.f32 %v5235, %v4725
      %v5237 = vadd.f32 %v5236, %v4726
      %v5238 = vadd.f32 %v5237, %v4727
      %v5239 = vadd.f32 %v5238, %v4728
      %v5240 = vadd.f32 %v5239, %v4729
      %v5241 = vadd.f32 %v5240, %v4730
      %v5242 = vadd.f32 %v5241, %v4731
      %v5243 = vadd.f32 %v5242, %v4732
      %v5244 = vadd.f32 %v5243, %v4733
      %v5245 = vadd.f32 %v5244, %v4734
      %v5246 = vadd.f32 %v5245, %v4735
      %v5247 = vadd.f32 %v5246, %v4736
      %v5248 = vadd.f32 %v5247, %v4737
      %v5249 = vadd.f32 %v5248, %v4738
      %v5250 = vadd.f32 %v5249, %v4739
      %v5251 = vadd.f32 %v5250, %v4740
      %v5252 = vadd.f32 %v5251, %v4741
      %v5253 = vadd.f32 %v5252, %v4742
      %v5254 = vadd.f32 %v5253, %v4743
      %v5255 = vadd.f32 %v5254, %v4744
      %v5256 = vadd.f32 %v5255, %v4745
      %v5257 = vadd.f32 %v5256, %v4746
      %v5258 = vadd.f32 %v5257, %v4747
      %v5259 = vadd.f32 %v5258, %v4748
      %v5260 = vadd.f32 %v5259, %v4749
      %v5261 = vadd.f32 %v5260, %v4750
      %v5262 = vadd.f32 %v5261, %v4751
      %v5263 = vadd.f32 %v5262, %v4752
      %v5264 = vadd.f32 %v5263, %v4753
      %v5265 = vadd.f32 %v5264, %v4754
      %v5266 = vadd.f32 %v5265, %v4755
      %v5267 = vadd.f32 %v5266, %v4756
      %v5268 = vadd.f32 %v5267, %v4757
      %v5269 = vadd.f32 %v5268, %v4758
      %v5270 = vadd.f32 %v5269, %v4759
      %v5271 = vadd.f32 %v5270, %v4760
      %v5272 = vadd.f32 %v5271, %v4761
      %v5273 = vadd.f32 %v5272, %v4762
      %v5274 = vadd.f32 %v5273, %v4763
      %v5275 = vadd.f32 %v5274, %v4764
      %v5276 = vadd.f32 %v5275, %v4765
      %v5277 = vadd.f32 %v5276, %v4766
      %v5278 = vadd.f32 %v5277, %v4767
      %v5279 = vadd.f32 %v5278, %v4768
      %v5280 = vadd.f32 %v5279, %v4769
      %v5281 = vadd.f32 %v5280, %v4770
      %v5282 = vadd.f32 %v5281, %v4771
      %v5283 = vadd.f32 %v5282, %v4772
      %v5284 = vadd.f32 %v5283, %v4773
      %v5285 = vadd.f32 %v5284, %v4774
      %v5286 = vadd.f32 %v5285, %v4775
      %v5287 = vadd.f32 %v5286, %v4776
      %v5288 = vadd.f32 %v5287, %v4777
      %v5289 = vadd.f32 %v5288, %v4778
      %v5290 = vadd.f32 %v5289, %v4779
      %v5291 = vadd.f32 %v5290, %v4780
      %v5292 = vadd.f32 %v5291, %v4781
      %v5293 = vadd.f32 %v5292, %v4782
      %v5294 = vadd.f32 %v5293, %v4783
      %v5295 = vadd.f32 %v5294, %v4784
      %v5296 = vadd.f32 %v5295, %v4785
      %v5297 = vadd.f32 %v5296, %v4786
      %v5298 = vadd.f32 %v5297, %v4787
      %v5299 = vadd.f32 %v5298, %v4788
      %v5300 = vadd.f32 %v5299, %v4789
      %v5301 = vadd.f32 %v5300, %v4790
      %v5302 = vadd.f32 %v5301, %v4791
      %v5303 = vadd.f32 %v5302, %v4792
      %v5304 = vadd.f32 %v5303, %v4793
      %v5305 = vadd.f32 %v5304, %v4794
      %v5306 = vadd.f32 %v5305, %v4795
      %v5307 = vadd.f32 %v5306, %v4796
      %v5308 = vadd.f32 %v5307, %v4797
      %v5309 = vadd.f32 %v5308, %v4798
      %v5310 = vadd.f32 %v5309, %v4799
      %v5311 = vadd.f32 %v5310, %v4800
      %v5312 = vadd.f32 %v5311, %v4801
      %v5313 = vadd.f32 %v5312, %v4802
      %v5314 = vadd.f32 %v5313, %v4803
      %v5315 = vadd.f32 %v5314, %v4804
      %v5316 = vadd.f32 %v5315, %v4805
      %v5317 = vadd.f32 %v5316, %v4806
      %v5318 = vadd.f32 %v5317, %v4807
      %v5319 = vadd.f32 %v5318, %v4808
      %v5320 = vadd.f32 %v5319, %v4809
      %v5321 = vadd.f32 %v5320, %v4810
      %v5322 = vadd.f32 %v5321, %v4811
      %v5323 = vadd.f32 %v5322, %v4812
      %v5324 = vadd.f32 %v5323, %v4813
      %v5325 = vadd.f32 %v5324, %v4814
      %v5326 = vadd.f32 %v5325, %v4815
      %v5327 = vadd.f32 %v5326, %v4816
      %v5328 = vadd.f32 %v5327, %v4817
      %v5329 = vadd.f32 %v5328, %v4818
      %v5330 = vadd.f32 %v5329, %v4819
      %v5331 = vadd.f32 %v5330, %v4820
      %v5332 = vadd.f32 %v5331, %v4821
      %v5333 = vadd.f32 %v5332, %v4822
      %v5334 = vadd.f32 %v5333, %v4823
      %v5335 = vadd.f32 %v5334, %v4824
      %v5336 = vadd.f32 %v5335, %v4825
      %v5337 = vadd.f32 %v5336, %v4826
      %v5338 = vadd.f32 %v5337, %v4827
      %v5339 = vadd.f32 %v5338, %v4828
      %v5340 = vadd.f32 %v5339, %v4829
      %v5341 = vadd.f32 %v5340, %v4830
      %v5342 = vadd.f32 %v5341, %v4831
      %v5343 = vadd.f32 %v5342, %v4832
      %v5344 = vadd.f32 %v5343, %v4833
      %v5345 = vadd.f32 %v5344, %v4834
      %v5346 = vadd.f32 %v5345, %v4835
      %v5347 = vadd.f32 %v5346, %v4836
      %v5348 = vadd.f32 %v5347, %v4837
      %v5349 = vadd.f32 %v5348, %v4838
      %v5350 = vadd.f32 %v5349, %v4839
      %v5351 = vadd.f32 %v5350, %v4840
      %v5352 = vadd.f32 %v5351, %v4841
      %v5353 = vadd.f32 %v5352, %v4842
      %v5354 = vadd.f32 %v5353, %v4843
      %v5355 = vadd.f32 %v5354, %v4844
      %v5356 = vadd.f32 %v5355, %v4845
      %v5357 = vadd.f32 %v5356, %v4846
      %v5358 = vadd.f32 %v5357, %v4847
      %v5359 = vadd.f32 %v5358, %v4848
      %v5360 = vadd.f32 %v5359, %v4849
      %v5361 = vadd.f32 %v5360, %v4850
      %v5362 = vadd.f32 %v5361, %v4851
      %v5363 = vadd.f32 %v5362, %v4852
      %v5364 = vadd.f32 %v5363, %v4853
      %v5365 = vadd.f32 %v5364, %v4854
      %v5366 = vadd.f32 %v5365, %v4855
      %v5367 = vadd.f32 %v5366, %v4856
      %v5368 = vadd.f32 %v5367, %v4857
      %v5369 = vadd.f32 %v5368, %v4858
      %v5370 = vadd.f32 %v5369, %v4859
      %v5371 = vadd.f32 %v5370, %v4860
      %v5372 = vadd.f32 %v5371, %v4861
      %v5373 = vadd.f32 %v5372, %v4862
      %v5374 = vadd.f32 %v5373, %v4863
      %v5375 = vadd.f32 %v5374, %v4864
      %v5376 = vadd.f32 %v5375, %v4865
      %v5377 = vadd.f32 %v5376, %v4866
      %v5378 = vadd.f32 %v5377, %v4867
      %v5379 = vadd.f32 %v5378, %v4868
      %v5380 = vadd.f32 %v5379, %v4869
      %v5381 = vadd.f32 %v5380, %v4870
      %v5382 = vadd.f32 %v5381, %v4871
      %v5383 = vadd.f32 %v5382, %v4872
      %v5384 = vadd.f32 %v5383, %v4873
      %v5385 = vadd.f32 %v5384, %v4874
      %v5386 = vadd.f32 %v5385, %v4875
      %v5387 = vadd.f32 %v5386, %v4876
      %v5388 = vadd.f32 %v5387, %v4877
      %v5389 = vadd.f32 %v5388, %v4878
      %v5390 = vadd.f32 %v5389, %v4879
      %v5391 = vadd.f32 %v5390, %v4880
      %v5392 = vadd.f32 %v5391, %v4881
      %v5393 = vadd.f32 %v5392, %v4882
      %v5394 = vadd.f32 %v5393, %v4883
      %v5395 = vadd.f32 %v5394, %v4884
      %v5396 = vadd.f32 %v5395, %v4885
      %v5397 = vadd.f32 %v5396, %v4886
      %v5398 = vadd.f32 %v5397, %v4887
      %v5399 = vadd.f32 %v5398, %v4888
      %v5400 = vadd.f32 %v5399, %v4889
      %v5401 = vadd.f32 %v5400, %v4890
      %v5402 = vadd.f32 %v5401, %v4891
      %v5403 = vadd.f32 %v5402, %v4892
      %v5404 = vadd.f32 %v5403, %v4893
      %v5405 = vadd.f32 %v5404, %v4894
      %v5406 = vadd.f32 %v5405, %v4895
      %v5407 = vadd.f32 %v5406, %v4896
      %v5408 = vadd.f32 %v5407, %v4897
      %v5409 = vadd.f32 %v5408, %v4898
      %v5410 = vadd.f32 %v5409, %v4899
      %v5411 = vadd.f32 %v5410, %v4900
      %v5412 = vadd.f32 %v5411, %v4901
      %v5413 = vadd.f32 %v5412, %v4902
      %v5414 = vadd.f32 %v5413, %v4903
      %v5415 = vadd.f32 %v5414, %v4904
      %v5416 = vadd.f32 %v5415, %v4905
      %v5417 = vadd.f32 %v5416, %v4906
      %v5418 = vadd.f32 %v5417, %v4907
      %v5419 = vadd.f32 %v5418, %v4908
      %v5420 = vadd.f32 %v5419, %v4909
      %v5421 = vadd.f32 %v5420, %v4910
      %v5422 = vadd.f32 %v5421, %v4911
      %v5423 = vadd.f32 %v5422, %v4912
      %v5424 = vadd.f32 %v5423, %v4913
      %v5425 = vadd.f32 %v5424, %v4914
      %v5426 = vadd.f32 %v5425, %v4915
      %v5427 = vadd.f32 %v5426, %v4916
      %v5428 = vadd.f32 %v5427, %v4917
      %v5429 = vadd.f32 %v5428, %v4918
      %v5430 = vadd.f32 %v5429, %v4919
      %v5431 = vadd.f32 %v5430, %v4920
      %v5432 = vadd.f32 %v5431, %v4921
      %v5433 = vadd.f32 %v5432, %v4922
      %v5434 = vadd.f32 %v5433, %v4923
      %v5435 = vadd.f32 %v5434, %v4924
      %v5436 = vadd.f32 %v5435, %v4925
      %v5437 = vadd.f32 %v5436, %v4926
      %v5438 = vadd.f32 %v5437, %v4927
      %v5439 = vadd.f32 %v5438, %v4928
      %v5440 = vadd.f32 %v5439, %v4929
      %v5441 = vadd.f32 %v5440, %v4930
      %v5442 = vadd.f32 %v5441, %v4931
      %v5443 = vadd.f32 %v5442, %v4932
      %v5444 = vadd.f32 %v5443, %v4933
      %v5445 = vadd.f32 %v5444, %v4934
      %v5446 = vadd.f32 %v5445, %v4935
      %v5447 = vadd.f32 %v5446, %v4936
      %v5448 = vadd.f32 %v5447, %v4937
      %v5449 = vadd.f32 %v5448, %v4938
      %v5450 = vadd.f32 %v5449, %v4939
      %v5451 = vadd.f32 %v5450, %v4940
      %v5452 = vadd.f32 %v5451, %v4941
      %v5453 = vadd.f32 %v5452, %v4942
      %v5454 = vadd.f32 %v5453, %v4943
      %v5455 = vadd.f32 %v5454, %v4944
      %v5456 = vadd.f32 %v5455, %v4945
      %v5457 = vadd.f32 %v5456, %v4946
      %v5458 = vadd.f32 %v5457, %v4947
      %v5459 = vadd.f32 %v5458, %v4948
      %v5460 = vadd.f32 %v5459, %v4949
      %v5461 = vadd.f32 %v5460, %v4950
      %v5462 = vadd.f32 %v5461, %v4951
      %v5463 = vadd.f32 %v5462, %v4952
      %v5464 = vadd.f32 %v5463, %v4953
      %v5465 = vadd.f32 %v5464, %v4954
      %v5466 = vadd.f32 %v5465, %v4955
      %v5467 = vadd.f32 %v5466, %v4956
      %v5468 = vadd.f32 %v5467, %v4957
      %v5469 = vadd.f32 %v5468, %v4958
      %v5470 = vadd.f32 %v5469, %v4959
      %v5471 = vadd.f32 %v5470, %v4960
      %v5472 = vadd.f32 %v5471, %v4961
      %v5473 = vadd.f32 %v5472, %v4962
      %v5474 = vadd.f32 %v5473, %v4963
      %v5475 = vadd.f32 %v5474, %v4964
      %v5476 = vadd.f32 %v5475, %v4965
      %v5477 = vadd.f32 %v5476, %v4966
      %v5478 = vadd.f32 %v5477, %v4967
      %v5479 = vadd.f32 %v5478, %v4968
      %v5480 = vadd.f32 %v5479, %v4969
      %v5481 = vadd.f32 %v5480, %v4970
      %v5482 = vadd.f32 %v5481, %v4971
      %v5483 = vadd.f32 %v5482, %v4972
      %v5484 = vadd.f32 %v5483, %v4973
      %v5485 = vadd.f32 %v5484, %v4974
      %v5486 = vadd.f32 %v5485, %v4975
      %v5487 = vadd.f32 %v5486, %v4976
      %v5488 = vadd.f32 %v5487, %v4977
      %v5489 = vadd.f32 %v5488, %v4978
      %v5490 = vadd.f32 %v5489, %v4979
      %v5491 = vadd.f32 %v5490, %v4980
      %v5492 = vadd.f32 %v5491, %v4981
      %v5493 = vadd.f32 %v5492, %v4982
      %v5494 = vadd.f32 %v5493, %v4983
      %v5495 = vadd.f32 %v5494, %v4984
      %v5496 = vadd.f32 %v5495, %v4985
      %v5497 = vadd.f32 %v5496, %v4986
      %v5498 = vadd.f32 %v5497, %v4987
      %v5499 = vadd.f32 %v5498, %v4988
      %v5500 = vadd.f32 %v5499, %v4989
      %v5501 = vadd.f32 %v5500, %v4990
      %v5502 = vadd.f32 %v5501, %v4991
      %v5503 = vadd.f32 %v5502, %v4992
      %v5504 = vadd.f32 %v5503, %v4993
      %v5505 = vadd.f32 %v5504, %v4994
      %v5506 = vadd.f32 %v5505, %v4995
      %v5507 = vadd.f32 %v5506, %v4996
      %v5508 = vadd.f32 %v5507, %v4997
      %v5509 = vadd.f32 %v5508, %v4998
      %v5510 = vadd.f32 %v5509, %v4999
      %v5511 = vadd.f32 %v5510, %v5000
      %v5512 = vadd.f32 %v5511, %v5001
      %v5513 = vadd.f32 %v5512, %v5002
      %v5514 = vadd.f32 %v5513, %v5003
      %v5515 = vadd.f32 %v5514, %v5004
      %v5516 = vadd.f32 %v5515, %v5005
      %v5517 = vadd.f32 %v5516, %v5006
      %v5518 = vadd.f32 %v5517, %v5007
      %v5519 = vadd.f32 %v5518, %v5008
      %v5520 = vadd.f32 %v5519, %v5009
      %v5521 = vadd.f32 %v5520, %v5010
      %v5522 = vadd.f32 %v5521, %v5011
      %v5523 = vadd.f32 %v5522, %v5012
      %v5524 = vadd.f32 %v5523, %v5013
      %v5525 = vadd.f32 %v5524, %v5014
      %v5526 = vadd.f32 %v5525, %v5015
      %v5527 = vadd.f32 %v5526, %v5016
      %v5528 = vadd.f32 %v5527, %v5017
      %v5529 = vadd.f32 %v5528, %v5018
      %v5530 = vadd.f32 %v5529, %v5019
      %v5531 = vadd.f32 %v5530, %v5020
      %v5532 = vadd.f32 %v5531, %v5021
      %v5533 = vadd.f32 %v5532, %v5022
      %v5534 = vadd.f32 %v5533, %v5023
      %v5535 = vadd.f32 %v5534, %v5024
      %v5536 = vadd.f32 %v5535, %v5025
      %v5537 = vadd.f32 %v5536, %v5026
      %v5538 = vadd.f32 %v5537, %v5027
      %v5539 = vadd.f32 %v5538, %v5028
      %v5540 = vadd.f32 %v5539, %v5029
      %v5541 = vadd.f32 %v5540, %v5030
      %v5542 = vadd.f32 %v5541, %v5031
      %v5543 = vadd.f32 %v5542, %v5032
      %v5544 = vadd.f32 %v5543, %v5033
      %v5545 = vadd.f32 %v5544, %v5034
      %v5546 = vadd.f32 %v5545, %v5035
      %v5547 = vadd.f32 %v5546, %v5036
      %v5548 = vadd.f32 %v5547, %v5037
      %v5549 = vadd.f32 %v5548, %v5038
      %v5550 = vadd.f32 %v5549, %v5039
      %v5551 = vadd.f32 %v5550, %v5040
      %v5552 = vadd.f32 %v5551, %v5041
      %v5553 = vadd.f32 %v5552, %v5042
      %v5554 = vadd.f32 %v5553, %v5043
      %v5555 = vadd.f32 %v5554, %v5044
      %v5556 = vadd.f32 %v5555, %v5045
      %v5557 = vadd.f32 %v5556, %v5046
      %v5558 = vadd.f32 %v5557, %v5047
      %v5559 = vadd.f32 %v5558, %v5048
      %v5560 = vadd.f32 %v5559, %v5049
      %v5561 = vadd.f32 %v5560, %v5050
      %v5562 = vadd.f32 %v5561, %v5051
      %v5563 = vadd.f32 %v5562, %v5052
      %v5564 = vadd.f32 %v5563, %v5053
      %v5565 = vadd.f32 %v5564, %v5054
      %v5566 = vadd.f32 %v5565, %v5055
      %v5567 = vadd.f32 %v5566, %v5056
      %v5568 = vadd.f32 %v5567, %v5057
      %v5569 = vadd.f32 %v5568, %v5058
      %v5570 = vadd.f32 %v5569, %v5059
      %v5571 = vadd.f32 %v5570, %v5060
      %v5572 = vadd.f32 %v5571, %v5061
      %v5573 = vadd.f32 %v5572, %v5062
      %v5574 = vadd.f32 %v5573, %v5063
      %v5575 = vadd.f32 %v5574, %v5064
      %v5576 = vadd.f32 %v5575, %v5065
      %v5577 = vadd.f32 %v5576, %v5066
      %v5578 = vadd.f32 %v5577, %v5067
      %v5579 = vadd.f32 %v5578, %v5068
      %v5580 = vadd.f32 %v5579, %v5069
      %v5581 = vadd.f32 %v5580, %v5070
      %v5582 = vadd.f32 %v5581, %v5071
      %v5583 = vadd.f32 %v5582, %v5072
      %v5584 = vadd.f32 %v5583, %v5073
      %v5585 = vadd.f32 %v5584, %v5074
      %v5586 = vadd.f32 %v5585, %v5075
      %v5587 = vadd.f32 %v5586, %v5076
      %v5588 = vadd.f32 %v5587, %v5077
      %v5589 = vadd.f32 %v5588, %v5078
      %v5590 = vadd.f32 %v5589, %v5079
      %v5591 = vadd.f32 %v5590, %v5080
      %v5592 = vadd.f32 %v5591, %v5081
      %v5593 = vadd.f32 %v5592, %v5082
      %v5594 = vadd.f32 %v5593, %v5083
      %v5595 = vadd.f32 %v5594, %v5084
      %v5596 = vadd.f32 %v5595, %v5085
      %v5597 = vadd.f32 %v5596, %v5086
      %v5598 = vadd.f32 %v5597, %v5087
      %v5599 = vadd.f32 %v5598, %v5088
      %v5600 = vadd.f32 %v5599, %v5089
      %v5601 = vadd.f32 %v5600, %v5090
      %v5602 = vadd.f32 %v5601, %v5091
      %v5603 = vadd.f32 %v5602, %v5092
      %v5604 = vadd.f32 %v5603, %v5093
      %v5605 = vadd.f32 %v5604, %v5094
      %v5606 = vadd.f32 %v5605, %v5095
      %v5607 = vadd.f32 %v5606, %v5096
      %v5608 = vadd.f32 %v5607, %v5097
      %v5609 = vadd.f32 %v5608, %v5098
      %v5610 = vadd.f32 %v5609, %v5099
      %v5611 = vadd.f32 %v5610, %v5100
      %v5612 = vadd.f32 %v5611, %v5101
      %v5613 = vadd.f32 %v5612, %v5102
      %v5614 = vadd.f32 %v5613, %v5103
      %v5615 = vadd.f32 %v5614, %v5104
      %v5616 = vadd.f32 %v5615, %v5105
      %v5617 = vadd.f32 %v5616, %v5106
      %v5618 = vadd.f32 %v5617, %v5107
      %v5619 = vadd.f32 %v5618, %v5108
      %v5620 = vadd.f32 %v5619, %v5109
      %v5621 = vadd.f32 %v5620, %v5110
      %v5622 = vadd.f32 %v5621, %v5111
      %v5623 = vadd.f32 %v5622, %v5112
      %v5624 = vadd.f32 %v5623, %v5113
      %v5625 = vadd.f32 %v5624, %v5114
      %v5626 = vadd.f32 %v5625, %v5115
      %v5627 = vadd.f32 %v5626, %v5116
      %v5628 = vadd.f32 %v5627, %v5117
      %v5629 = vadd.f32 %v5628, %v5118
      %v5630 = vadd.f32 %v5629, %v5119
      %v5631 = vadd.f32 %v5630, %v5120
      %v5632 = vadd.f32 %v5631, %v5121
      %v5633 = vadd.f32 %v5632, %v5122
      %v5634 = vadd.f32 %v5633, %v5123
      %v5635 = vadd.f32 %v5634, %v5124
      %v5636 = vadd.f32 %v5635, %v5125
      %v5637 = vadd.f32 %v5636, %v5126
      %v5638 = vadd.f32 %v5637, %v5127
      %v5639 = vadd.f32 %v5638, %v5128
      %v5640 = vadd.f32 %v5639, %v5129
      %v5641 = vadd.f32 %v5640, %v5130
      %v5642 = vadd.f32 %v5641, %v5131
      %v5643 = vadd.f32 %v5642, %v5132
      %v5644 = vadd.f32 %v5643, %v5133
      %v5645 = vadd.f32 %v5644, %v5134
      %v5646 = vadd.f32 %v5645, %v5135
      %v5647 = vadd.f32 %v5646, %v5136
      %v5648 = vadd.f32 %v5647, %v5137
      %v5649 = vadd.f32 %v5648, %v5138
      %v5650 = vadd.f32 %v5649, %v5139
      %v5651 = vadd.f32 %v5650, %v5140
      %v5652 = vadd.f32 %v5651, %v5141
      %v5653 = vadd.f32 %v5652, %v5142
      %v5654 = vadd.f32 %v5653, %v5143
      %v5655 = vadd.f32 %v5654, %v5144
      %v5656 = vadd.f32 %v5655, %v5145
      %v5657 = vadd.f32 %v5656, %v5146
      %v5658 = vadd.f32 %v5657, %v5147
      %v5659 = vadd.f32 %v5658, %v5148
      %v5660 = vadd.f32 %v5659, %v5149
      %v5661 = vadd.f32 %v5660, %v5150
      %v5662 = vadd.f32 %v5661, %v5151
      %v5663 = vadd.f32 %v5662, %v5152
      %v5664 = vadd.f32 %v5663, %v5153
      %v5665 = vadd.f32 %v5664, %v5154
      %v5666 = vadd.f32 %v5665, %v5155
      %v5667 = vadd.f32 %v5666, %v5156
      %v5668 = vadd.f32 %v5667, %v5157
      %v5669 = vadd.f32 %v5668, %v5158
      %v5670 = vadd.f32 %v5669, %v5159
      %v5671 = vadd.f32 %v5670, %v5160
      %v5672 = vadd.f32 %v5671, %v5161
      %v5673 = vadd.f32 %v5672, %v5162
      %v5674 = vadd.f32 %v5673, %v5163
      %v5675 = vadd.f32 %v5674, %v5164
      %v5676 = vadd.f32 %v5675, %v5165
      %v5677 = vadd.f32 %v5676, %v5166
      %v5678 = vadd.f32 %v5677, %v5167
      %v5679 = vadd.f32 %v5678, %v5168
      %v5680 = vadd.f32 %v5679, %v5169
      %v5681 = vadd.f32 %v5680, %v5170
      %v5682 = vadd.f32 %v5681, %v5171
      %v5683 = vadd.f32 %v5682, %v5172
      %v5684 = vadd.f32 %v5683, %v5173
      %v5685 = vadd.f32 %v5684, %v5174
      %v5686 = vadd.f32 %v5685, %v5175
      %v5687 = vadd.f32 %v5686, %v5176
      %v5688 = vadd.f32 %v5687, %v5177
      %v5689 = vadd.f32 %v5688, %v5178
      %v5690 = vadd.f32 %v5689, %v5179
      %v5691 = vadd.f32 %v5690, %v5180
      %v5692 = vadd.f32 %v5691, %v5181
      %v5693 = vadd.f32 %v5692, %v5182
      %v5694 = vadd.f32 %v5693, %v5183
      %v5695 = vadd.f32 %v5694, %v5184
      %v5696 = vadd.f32 %v5695, %v5185
      %v5697 = vadd.f32 %v5696, %v5186
      %v5698 = vadd.f32 %v5697, %v5187
      %v5699 = vadd.f32 %v5698, %v5188
      %v5700 = vadd.f32 %v5699, %v5189
      %v5701 = vadd.f32 %v5700, %v5190
      %v5702 = vadd.f32 %v5701, %v5191
      %v5703 = vadd.f32 %v5702, %v5192
      %v5704 = vadd.f32 %v5703, %v5193
      %v5705 = vadd.f32 %v5704, %v5194
      %v5706 = vadd.f32 %v5705, %v5195
      %v5707 = vadd.f32 %v5706, %v5196
      %v5708 = vadd.f32 %v5707, %v5197
      %v5709 = vadd.f32 %v5708, %v5198
      %v5710 = vadd.f32 %v5709, %v5199
      %v5711 = vadd.f32 %v5710, %v5200
      %v5712 = vadd.f32 %v5711, %v5201
      %v5713 = vadd.f32 %v5712, %v5202
      %v5714 = vadd.f32 %v5713, %v5203
      %v5715 = vadd.f32 %v5714, %v5204
      %v5716 = vadd.f32 %v5715, %v5205
      %v5717 = vadd.f32 %v5716, %v5206
      %v5718 = vadd.f32 %v5717, %v5207
      %v5719 = vadd.f32 %v5718, %v5208
      %v5720 = vadd.f32 %v5719, %v5209
      %v5721 = vadd.f32 %v5720, %v5210
      %v5722 = vadd.f32 %v5721, %v5211
      %v5723 = vadd.f32 %v4699, %v5722
      %5724 = vst [vmem:[#allocation2] sm:$0xff] %v5723
    $region29: #{tpu_custom_call.1} parent=1 // pred_fallthru
      _
    // Predicated region
    $region30: #{tpu_custom_call.1} parent=1 // pred_check
      %p5725 = pneg %p73
    $region31: #{tpu_custom_call.1} parent=1 // pred_check_branch
      %5727 = sbr.rel (%p5725) target = $region33
    $region32: #{tpu_custom_call.1} parent=1 // pred_region
      %v5728 = vld [vmem:[#allocation2] sm:$0xff]
      %5729 = vadd.xlane.f32.xlu0 %v5728
      %v5730 = vpop.xlane.xlu0 %5729
      %v5731 = vrot.slane %v5730, 4
      %v5732 = vadd.f32 %v5730, %v5731
      %v5733 = vrot.slane %v5732, 2
      %v5734 = vadd.f32 %v5732, %v5733
      %v5735 = vrot.slane %v5734, 1
      %v5736 = vadd.f32 %v5734, %v5735
      %s5737 = vtos %v5736
      %s5738 = scalar_lea.smem [#allocation8], 0
      %5739 = sst [smem:[%s5738]] %s5737
    $region33: #{tpu_custom_call.1} parent=1 // pred_fallthru
      _
    // Predicated region
    $region34: #{tpu_custom_call.1} parent=1 // pred_check
      _
    $region35: #{tpu_custom_call.1} parent=1 // pred_check_branch
      %5741 = sbr.rel (0) target = $region37
    $region36: #{tpu_custom_call.1} parent=1 // pred_region
      %s5743 = ssub.s32 16, 16
      %5744 = vsyncadd [#allocation5], %s5743
      %5747 = dma.smem_to_hbm [#allocation8], 16, %s2, [#allocation5]
    $region37: #{tpu_custom_call.1} parent=1 // pred_fallthru
      _
    // Predicated region
    $region38: #{tpu_custom_call.1} parent=1 // pred_check
      _
    $region39: #{tpu_custom_call.1} parent=1 // pred_check_branch
      %5749 = sbr.rel (0) target = $region41
    $region40: #{tpu_custom_call.1} parent=1 // pred_region
      %5750 = dma.done [#allocation5], 16
    $region41: #{tpu_custom_call.1} parent=1 // pred_fallthru
      _
    %5751 = sfence
    %5752 = vsyncpa [#allocation4], 1
    %5753 = vsyncpa [#allocation7], 1
    %5754 = vsyncpa [#allocation5], 1

</llo_original>
